<compile_context>
chip_gen: v7x
topology: tpu7x:2x2x1
jax: 0.10.0
libtpu: 0.0.40
codegen_flags: <defaults>
</compile_context>

<pallas_src>
import jax
import jax.numpy as jnp
from jax import lax
from jax.experimental import pallas as pl
from jax.experimental.pallas import tpu as pltpu

NUM_INPUTS = 28 * 28   # 784
NUM_OUTPUTS = 10
N_PAD = 128            # lane-dense output width (>= NUM_OUTPUTS, multiple of 128)


def _round_up(x, m):
    return (x + m - 1) // m * m


def flatten_forward(x):
    """Literal FlattenLayer.forward: x.view(x.shape[0], -1) (metadata-only reshape)."""
    return x.reshape(x.shape[0], -1)


def linear_kernel(x_ref, w_ref, b_ref, o_ref):
    # x_ref: (TB, 784), w_ref: (128, 784), b_ref: (1, 128), o_ref: (TB, 128)
    # Contract dim 1 of x with dim 1 of w  ->  x @ W^T on the MXU, f32 accumulator.
    acc = lax.dot_general(
        x_ref[...], w_ref[...],
        dimension_numbers=(((1,), (1,)), ((), ())),
        preferred_element_type=jnp.float32,
        precision=lax.Precision.HIGHEST,   # exact f32 parity with the reference
    )
    o_ref[...] = acc + b_ref[...]


def prepare_linear_params(weight, bias):
    """One-time parameter prep: zero-pad N 10 -> 128 so the kernel's weight / bias /
    output slabs are lane-dense.  Call once, reuse across forward calls."""
    w_pad = jnp.zeros((N_PAD, NUM_INPUTS), jnp.float32).at[:NUM_OUTPUTS].set(
        weight.astype(jnp.float32))
    b_pad = jnp.zeros((1, N_PAD), jnp.float32).at[0, :NUM_OUTPUTS].set(
        bias.astype(jnp.float32))
    return w_pad, b_pad


def _choose_batch_tile(B, block_b):
    """Batch tile: multiple of 8 sublanes, capped by block_b, and sized so the grid has
    at least 2 steps when B > 8 (keeps both v7x TensorCores busy)."""
    if B <= 8:
        return B                       # single tiny block == full batch (no masking)
    half = _round_up(pl.cdiv(B, 2), 8)
    return max(8, min(block_b, half))


def linear_net_forward(x_nchw, w_pad, b_pad, *, block_b=1024):
    """Forward of main3.7's LinearNet (FlattenLayer followed by nn.Linear).

    x_nchw: (B, 1, 28, 28) float32  (PyTorch NCHW convention)
    w_pad:  (128, 784) float32      (from prepare_linear_params)
    b_pad:  (1, 128)   float32      (from prepare_linear_params)
    returns (B, 10) float32
    """
    B = x_nchw.shape[0]
    x_flat = flatten_forward(x_nchw).astype(jnp.float32)      # (B, 784)
    D = x_flat.shape[1]

    TB = _choose_batch_tile(B, block_b)
    grid = (pl.cdiv(B, TB),)           # partial last block handled by Pallas masking

    # VMEM budget: double-buffered x + out tiles, double-buffered grid-invariant W / b,
    # plus headroom.  Floor 32 MiB (safe on every chip), cap 64 MiB (v7x physical/TC).
    vmem_bytes = 4 * (2 * TB * D + 2 * TB * N_PAD + 2 * N_PAD * D + 2 * N_PAD) + (2 << 20)
    vmem_limit = int(min(max(vmem_bytes, 32 << 20), 64 << 20))

    out = pl.pallas_call(
        linear_kernel,
        out_shape=jax.ShapeDtypeStruct((B, N_PAD), jnp.float32),
        grid=grid,
        in_specs=[
            pl.BlockSpec((TB, D), lambda i: (i, 0)),        # activations, tiled over B
            pl.BlockSpec((N_PAD, D), lambda i: (0, 0)),     # weight, resident
            pl.BlockSpec((1, N_PAD), lambda i: (0, 0)),     # bias, resident
        ],
        out_specs=pl.BlockSpec((TB, N_PAD), lambda i: (i, 0)),
        compiler_params=pltpu.CompilerParams(
            dimension_semantics=("parallel",),              # batch axis -> 2 TCs on v7x
            vmem_limit_bytes=vmem_limit,
        ),
        cost_estimate=pl.CostEstimate(
            flops=2 * B * D * N_PAD,
            transcendentals=0,
            bytes_accessed=4 * (B * D + N_PAD * D + B * N_PAD),
        ),
    )(x_flat, w_pad, b_pad)

    # Drop the padded output columns (batch dim already exact: no wrapper pad copy).
    return out[:, :NUM_OUTPUTS]


if __name__ == "__main__":
    key = jax.random.PRNGKey(0)
    kx, kw, kb, kx2 = jax.random.split(key, 4)

    # Deterministic parameter init (mimics nn.Linear's uniform(-1/sqrt(in), 1/sqrt(in)))
    bound = 1.0 / jnp.sqrt(jnp.float32(NUM_INPUTS))
    weight = jax.random.uniform(kw, (NUM_OUTPUTS, NUM_INPUTS),
                                minval=-bound, maxval=bound, dtype=jnp.float32)
    bias = jax.random.uniform(kb, (NUM_OUTPUTS,),
                              minval=-bound, maxval=bound, dtype=jnp.float32)
    w_pad, b_pad = prepare_linear_params(weight, bias)       # hoisted, one-time prep

    # Primary test: batch = 8, MNIST-shaped NCHW input.
    B = 8
    x = jax.random.normal(kx, (B, 1, 28, 28), dtype=jnp.float32)

    # FlattenLayer semantics check (metadata-only reshape).
    assert flatten_forward(x).shape == (B, NUM_INPUTS)
    assert jnp.array_equal(flatten_forward(x), x.reshape(B, -1))

    y = linear_net_forward(x, w_pad, b_pad)
    jax.block_until_ready(y)
    y_ref = lax.dot_general(x.reshape(B, -1), weight,
                            dimension_numbers=(((1,), (1,)), ((), ())),
                            precision=lax.Precision.HIGHEST) + bias
    assert y.shape == (B, NUM_OUTPUTS)
    assert jnp.allclose(y, y_ref, atol=1e-4, rtol=1e-4)

    # Secondary test: ragged batch + small tile -> multi-step grid with a masked
    # partial last block (no wrapper-side pad copy).
    B2 = 50
    x2 = jax.random.normal(kx2, (B2, 1, 28, 28), dtype=jnp.float32)
    y2 = linear_net_forward(x2, w_pad, b_pad, block_b=16)
    jax.block_until_ready(y2)
    y2_ref = lax.dot_general(x2.reshape(B2, -1), weight,
                             dimension_numbers=(((1,), (1,)), ((), ())),
                             precision=lax.Precision.HIGHEST) + bias
    assert y2.shape == (B2, NUM_OUTPUTS)
    assert jnp.allclose(y2, y2_ref, atol=1e-4, rtol=1e-4)

    print("KERNEL_OK")
</pallas_src>

<mosaic_0001>
module attributes {stable_mosaic.version = 11 : i64} {
  func.func @linear_kernel(%arg0: i32, %arg1: memref<8x784xf32, #tpu.memory_space<vmem>>, %arg2: memref<128x784xf32, #tpu.memory_space<vmem>>, %arg3: memref<1x128xf32, #tpu.memory_space<vmem>>, %arg4: memref<8x128xf32, #tpu.memory_space<vmem>>) attributes {dimension_semantics = [#tpu.dimension_semantics<parallel>], iteration_bounds = array<i64: 1>, scalar_prefetch = 0 : i64, scratch_operands = 0 : i64, tpu.core_type = #tpu.core_type<tc>, window_params = [{transform_indices = @transform_0, window_bounds = array<i64: 8, 784>}, {pipeline_mode = #tpu.pipeline_mode<synchronous>, transform_indices = @transform_1, window_bounds = array<i64: 128, 784>}, {pipeline_mode = #tpu.pipeline_mode<synchronous>, transform_indices = @transform_2, window_bounds = array<i64: 1, 128>}, {transform_indices = @transform_3, window_bounds = array<i64: 8, 128>}]} {
    %c0 = arith.constant 0 : index
    %c0_0 = arith.constant 0 : index
    %0 = vector.load %arg1[%c0, %c0_0] : memref<8x784xf32, #tpu.memory_space<vmem>>, vector<8x784xf32>
    %c0_1 = arith.constant 0 : index
    %c0_2 = arith.constant 0 : index
    %1 = vector.load %arg2[%c0_1, %c0_2] : memref<128x784xf32, #tpu.memory_space<vmem>>, vector<128x784xf32>
    %cst = arith.constant dense<0.000000e+00> : vector<8x128xf32>
    %2 = tpu.matmul %0, %1, %cst {dimension_numbers = #tpu.dot_dimension_numbers<[1], [1], [0], [0], [0, 0, 1, 0], [], []>, precision = #tpu.contract_precision<fp32>} : vector<8x784xf32>, vector<128x784xf32>, vector<8x128xf32> -> vector<8x128xf32>
    %c0_3 = arith.constant 0 : index
    %c0_4 = arith.constant 0 : index
    %3 = vector.load %arg3[%c0_3, %c0_4] : memref<1x128xf32, #tpu.memory_space<vmem>>, vector<1x128xf32>
    %4 = vector.broadcast %3 : vector<1x128xf32> to vector<8x128xf32>
    %5 = arith.addf %2, %4 : vector<8x128xf32>
    %c0_5 = arith.constant 0 : index
    %c0_6 = arith.constant 0 : index
    %6 = vector.load %arg4[%c0_5, %c0_6] : memref<8x128xf32, #tpu.memory_space<vmem>>, vector<8x128xf32>
    tpu.vector_store %arg4[%c0_5, %c0_6], %5 {strides = array<i32>} : memref<8x128xf32, #tpu.memory_space<vmem>>, vector<8x128xf32>,
    return
  }
  func.func @transform_0(%arg0: i32) -> (i32, i32) {
    %c0_i32 = arith.constant 0 : i32
    %c0_i32_0 = arith.constant 0 : i32
    return %arg0, %c0_i32 : i32, i32
  }
  func.func @transform_1(%arg0: i32) -> (i32, i32) {
    %c0_i32 = arith.constant 0 : i32
    %c0_i32_0 = arith.constant 0 : i32
    %c0_i32_1 = arith.constant 0 : i32
    return %c0_i32, %c0_i32_0 : i32, i32
  }
  func.func @transform_2(%arg0: i32) -> (i32, i32) {
    %c0_i32 = arith.constant 0 : i32
    %c0_i32_0 = arith.constant 0 : i32
    %c0_i32_1 = arith.constant 0 : i32
    return %c0_i32, %c0_i32_0 : i32, i32
  }
  func.func @transform_3(%arg0: i32) -> (i32, i32) {
    %c0_i32 = arith.constant 0 : i32
    %c0_i32_0 = arith.constant 0 : i32
    return %arg0, %c0_i32 : i32, i32
  }
}

</mosaic_0001>

<llo_original>
// kernel: tpu_custom_call.1
$region0: #{tpu_custom_call.1}
  #allocation0 [shape = 'u32[]', space=smem, size = 0x4, offset = 0x4, fixed_abs, tag = 'smem constant byte address 0x4 - core index']
  #allocation1 [shape = 'u32[144,128]{1,0:T(1,128)}', space=vmem, size = 0x12000, scoped, tag = 'internal scratch']
  %s0 = inlined_call_operand.vmem [shape: f32[8,784], index: 0, kind: input, shape index: {}]
  %s1 = inlined_call_operand.vmem [shape: f32[128,784], index: 1, kind: input, shape index: {}]
  %s2 = inlined_call_operand.vmem [shape: f32[1,128], index: 2, kind: input, shape index: {}]
  %s3 = inlined_call_operand.hbm [shape: f32[8,128], index: 3, kind: output, shape index: {}]
  %s4 = sld [smem:[#allocation0]]
  $region22: #{tpu_custom_call.1} parent=0
    _
  %s6 = ssub.s32 1, %s4
  %s7 = scalar_select 0, %s6, %s4
  $region1: #{tpu_custom_call.1} parent=0
    #allocation2 [shape = 'u8[4096]{0}', space=vmem, size = 0x1000, scoped, tag = 'output window, operand 0, single buffered']
    #allocation3 [shape = 's32[1]{0}', space=sflag, size = 0x4, scoped, tag = 'scoped memory for tpu_custom_call.1']
    %8 = vsyncpa [#allocation3], 0
    // Predicated region
    $region2: #{tpu_custom_call.1} parent=1 // pred_check
      _
    $region3: #{tpu_custom_call.1} parent=1 // pred_check_branch
      %10 = sbr.rel (0) target = $region5
    $region4: #{tpu_custom_call.1} parent=1 // pred_region
      _
    $region5: #{tpu_custom_call.1} parent=1 // pred_fallthru
      _
    // Predicated region
    $region6: #{tpu_custom_call.1} parent=1 // pred_check
      _
    $region7: #{tpu_custom_call.1} parent=1 // pred_check_branch
      %12 = sbr.rel (0) target = $region9
    $region8: #{tpu_custom_call.1} parent=1 // pred_region
      _
    $region9: #{tpu_custom_call.1} parent=1 // pred_fallthru
      _
    // Predicated region
    $region10: #{tpu_custom_call.1} parent=1 // pred_check
      _
    $region11: #{tpu_custom_call.1} parent=1 // pred_check_branch
      %14 = sbr.rel (0) target = $region13
    $region12: #{tpu_custom_call.1} parent=1 // pred_region
      _
    $region13: #{tpu_custom_call.1} parent=1 // pred_fallthru
      _
    %v15 = vld [vmem:[%s0] sm:$0xff]
    %v16 = vld [vmem:[%s0 + $0x8] sm:$0xff]
    %v17 = vld [vmem:[%s0 + $0x10] sm:$0xff]
    %v18 = vld [vmem:[%s0 + $0x18] sm:$0xff]
    %v19 = vld [vmem:[%s0 + $0x20] sm:$0xff]
    %v20 = vld [vmem:[%s0 + $0x28] sm:$0xff]
    %v21 = vld [vmem:[%s0 + $0x30] sm:$0xff]
    %v22 = vld [vmem:[%s1] sm:$0xff]
    %v23 = vld [vmem:[%s1 + $0x8] sm:$0xff]
    %v24 = vld [vmem:[%s1 + $0x10] sm:$0xff]
    %v25 = vld [vmem:[%s1 + $0x18] sm:$0xff]
    %v26 = vld [vmem:[%s1 + $0x20] sm:$0xff]
    %v27 = vld [vmem:[%s1 + $0x28] sm:$0xff]
    %v28 = vld [vmem:[%s1 + $0x30] sm:$0xff]
    %v29 = vld [vmem:[%s1 + $0x38] sm:$0xff]
    %v30 = vld [vmem:[%s1 + $0x40] sm:$0xff]
    %v31 = vld [vmem:[%s1 + $0x48] sm:$0xff]
    %v32 = vld [vmem:[%s1 + $0x50] sm:$0xff]
    %v33 = vld [vmem:[%s1 + $0x58] sm:$0xff]
    %v34 = vld [vmem:[%s1 + $0x60] sm:$0xff]
    %v35 = vld [vmem:[%s1 + $0x68] sm:$0xff]
    %v36 = vld [vmem:[%s1 + $0x70] sm:$0xff]
    %v37 = vld [vmem:[%s1 + $0x78] sm:$0xff]
    %v38 = vld [vmem:[%s1 + $0x80] sm:$0xff]
    %v39 = vld [vmem:[%s1 + $0x88] sm:$0xff]
    %v40 = vld [vmem:[%s1 + $0x90] sm:$0xff]
    %v41 = vld [vmem:[%s1 + $0x98] sm:$0xff]
    %v42 = vld [vmem:[%s1 + $0xa0] sm:$0xff]
    %v43 = vld [vmem:[%s1 + $0xa8] sm:$0xff]
    %v44 = vld [vmem:[%s1 + $0xb0] sm:$0xff]
    %v45 = vld [vmem:[%s1 + $0xb8] sm:$0xff]
    %v46 = vld [vmem:[%s1 + $0xc0] sm:$0xff]
    %v47 = vld [vmem:[%s1 + $0xc8] sm:$0xff]
    %v48 = vld [vmem:[%s1 + $0xd0] sm:$0xff]
    %v49 = vld [vmem:[%s1 + $0xd8] sm:$0xff]
    %v50 = vld [vmem:[%s1 + $0xe0] sm:$0xff]
    %v51 = vld [vmem:[%s1 + $0xe8] sm:$0xff]
    %v52 = vld [vmem:[%s1 + $0xf0] sm:$0xff]
    %v53 = vld [vmem:[%s1 + $0xf8] sm:$0xff]
    %v54 = vld [vmem:[%s1 + $0x100] sm:$0xff]
    %v55 = vld [vmem:[%s1 + $0x108] sm:$0xff]
    %v56 = vld [vmem:[%s1 + $0x110] sm:$0xff]
    %v57 = vld [vmem:[%s1 + $0x118] sm:$0xff]
    %v58 = vld [vmem:[%s1 + $0x120] sm:$0xff]
    %v59 = vld [vmem:[%s1 + $0x128] sm:$0xff]
    %v60 = vld [vmem:[%s1 + $0x130] sm:$0xff]
    %v61 = vld [vmem:[%s1 + $0x138] sm:$0xff]
    %v62 = vld [vmem:[%s1 + $0x140] sm:$0xff]
    %v63 = vld [vmem:[%s1 + $0x148] sm:$0xff]
    %v64 = vld [vmem:[%s1 + $0x150] sm:$0xff]
    %v65 = vld [vmem:[%s1 + $0x158] sm:$0xff]
    %v66 = vld [vmem:[%s1 + $0x160] sm:$0xff]
    %v67 = vld [vmem:[%s1 + $0x168] sm:$0xff]
    %v68 = vld [vmem:[%s1 + $0x170] sm:$0xff]
    %v69 = vld [vmem:[%s1 + $0x178] sm:$0xff]
    %v70 = vld [vmem:[%s1 + $0x180] sm:$0xff]
    %v71 = vld [vmem:[%s1 + $0x188] sm:$0xff]
    %v72 = vld [vmem:[%s1 + $0x190] sm:$0xff]
    %v73 = vld [vmem:[%s1 + $0x198] sm:$0xff]
    %v74 = vld [vmem:[%s1 + $0x1a0] sm:$0xff]
    %v75 = vld [vmem:[%s1 + $0x1a8] sm:$0xff]
    %v76 = vld [vmem:[%s1 + $0x1b0] sm:$0xff]
    %v77 = vld [vmem:[%s1 + $0x1b8] sm:$0xff]
    %v78 = vld [vmem:[%s1 + $0x1c0] sm:$0xff]
    %v79 = vld [vmem:[%s1 + $0x1c8] sm:$0xff]
    %v80 = vld [vmem:[%s1 + $0x1d0] sm:$0xff]
    %v81 = vld [vmem:[%s1 + $0x1d8] sm:$0xff]
    %v82 = vld [vmem:[%s1 + $0x1e0] sm:$0xff]
    %v83 = vld [vmem:[%s1 + $0x1e8] sm:$0xff]
    %v84 = vld [vmem:[%s1 + $0x1f0] sm:$0xff]
    %v85 = vld [vmem:[%s1 + $0x1f8] sm:$0xff]
    %v86 = vld [vmem:[%s1 + $0x200] sm:$0xff]
    %v87 = vld [vmem:[%s1 + $0x208] sm:$0xff]
    %v88 = vld [vmem:[%s1 + $0x210] sm:$0xff]
    %v89 = vld [vmem:[%s1 + $0x218] sm:$0xff]
    %v90 = vld [vmem:[%s1 + $0x220] sm:$0xff]
    %v91 = vld [vmem:[%s1 + $0x228] sm:$0xff]
    %v92 = vld [vmem:[%s1 + $0x230] sm:$0xff]
    %v93 = vld [vmem:[%s1 + $0x238] sm:$0xff]
    %v94 = vld [vmem:[%s1 + $0x240] sm:$0xff]
    %v95 = vld [vmem:[%s1 + $0x248] sm:$0xff]
    %v96 = vld [vmem:[%s1 + $0x250] sm:$0xff]
    %v97 = vld [vmem:[%s1 + $0x258] sm:$0xff]
    %v98 = vld [vmem:[%s1 + $0x260] sm:$0xff]
    %v99 = vld [vmem:[%s1 + $0x268] sm:$0xff]
    %v100 = vld [vmem:[%s1 + $0x270] sm:$0xff]
    %v101 = vld [vmem:[%s1 + $0x278] sm:$0xff]
    %v102 = vld [vmem:[%s1 + $0x280] sm:$0xff]
    %v103 = vld [vmem:[%s1 + $0x288] sm:$0xff]
    %v104 = vld [vmem:[%s1 + $0x290] sm:$0xff]
    %v105 = vld [vmem:[%s1 + $0x298] sm:$0xff]
    %v106 = vld [vmem:[%s1 + $0x2a0] sm:$0xff]
    %v107 = vld [vmem:[%s1 + $0x2a8] sm:$0xff]
    %v108 = vld [vmem:[%s1 + $0x2b0] sm:$0xff]
    %v109 = vld [vmem:[%s1 + $0x2b8] sm:$0xff]
    %v110 = vld [vmem:[%s1 + $0x2c0] sm:$0xff]
    %v111 = vld [vmem:[%s1 + $0x2c8] sm:$0xff]
    %v112 = vld [vmem:[%s1 + $0x2d0] sm:$0xff]
    %v113 = vld [vmem:[%s1 + $0x2d8] sm:$0xff]
    %v114 = vld [vmem:[%s1 + $0x2e0] sm:$0xff]
    %v115 = vld [vmem:[%s1 + $0x2e8] sm:$0xff]
    %v116 = vld [vmem:[%s1 + $0x2f0] sm:$0xff]
    %v117 = vld [vmem:[%s1 + $0x2f8] sm:$0xff]
    %v118 = vld [vmem:[%s1 + $0x300] sm:$0xff]
    %v119 = vld [vmem:[%s1 + $0x308] sm:$0xff]
    %v120 = vld [vmem:[%s1 + $0x310] sm:$0xff]
    %v121 = vld [vmem:[%s1 + $0x318] sm:$0xff]
    %v122 = vld [vmem:[%s1 + $0x320] sm:$0xff]
    %v123 = vld [vmem:[%s1 + $0x328] sm:$0xff]
    %v124 = vld [vmem:[%s1 + $0x330] sm:$0xff]
    %v125 = vld [vmem:[%s1 + $0x338] sm:$0xff]
    %v126 = vld [vmem:[%s1 + $0x340] sm:$0xff]
    %v127 = vld [vmem:[%s1 + $0x348] sm:$0xff]
    %v128 = vld [vmem:[%s1 + $0x350] sm:$0xff]
    %v129 = vld [vmem:[%s1 + $0x358] sm:$0xff]
    %v130 = vld [vmem:[%s1 + $0x360] sm:$0xff]
    %v131 = vld [vmem:[%s1 + $0x368] sm:$0xff]
    %v132 = vld [vmem:[%s1 + $0x370] sm:$0xff]
    %v133 = vld [vmem:[%s1 + $0x378] sm:$0xff]
    %v134 = vld [vmem:[%s2] sm:$0x1]
    %v136 = vlaneseq
    %v137 = vshrl.u32 %v136, 7
    %v138 = vsub.s32 0, %v137
    %v139 = vrot.slane %v134, %v138
    %vm141 = vcmask 130048
    %v143 = vsel %vm141, %v21, 0
    %v146 = vsel %vm141, %v28, 0
    %v149 = vsel %vm141, %v35, 0
    %v152 = vsel %vm141, %v42, 0
    %v155 = vsel %vm141, %v49, 0
    %v158 = vsel %vm141, %v56, 0
    %v161 = vsel %vm141, %v63, 0
    %v164 = vsel %vm141, %v70, 0
    %v167 = vsel %vm141, %v77, 0
    %v170 = vsel %vm141, %v84, 0
    %v173 = vsel %vm141, %v91, 0
    %v176 = vsel %vm141, %v98, 0
    %v179 = vsel %vm141, %v105, 0
    %v182 = vsel %vm141, %v112, 0
    %v185 = vsel %vm141, %v119, 0
    %v188 = vsel %vm141, %v126, 0
    %v191 = vsel %vm141, %v133, 0
    %v193 = vand.u32 %v23, 4294901760
    %194 = vmatprep.subr.mxu0 %v193
    %v195 = vand.u32 %v22, 4294901760
    %196 = vmatpush1.xpose.msra.mxu0 %v195
    %v197 = vand.u32 %v30, 4294901760
    %198 = vmatprep.subr.mxu0 %v197
    %v199 = vand.u32 %v29, 4294901760
    %200 = vmatpush1.xpose.msra.mxu0 %v199
    %v201 = vand.u32 %v37, 4294901760
    %202 = vmatprep.subr.mxu0 %v201
    %v203 = vand.u32 %v36, 4294901760
    %204 = vmatpush1.xpose.msra.mxu0 %v203
    %v205 = vand.u32 %v44, 4294901760
    %206 = vmatprep.subr.mxu0 %v205
    %v207 = vand.u32 %v43, 4294901760
    %208 = vmatpush1.xpose.msra.mxu0 %v207
    %v209 = vand.u32 %v51, 4294901760
    %210 = vmatprep.subr.mxu0 %v209
    %v211 = vand.u32 %v50, 4294901760
    %212 = vmatpush1.xpose.msra.mxu0 %v211
    %v213 = vand.u32 %v58, 4294901760
    %214 = vmatprep.subr.mxu0 %v213
    %v215 = vand.u32 %v57, 4294901760
    %216 = vmatpush1.xpose.msra.mxu0 %v215
    %v217 = vand.u32 %v65, 4294901760
    %218 = vmatprep.subr.mxu0 %v217
    %v219 = vand.u32 %v64, 4294901760
    %220 = vmatpush1.xpose.msra.mxu0 %v219
    %v221 = vand.u32 %v72, 4294901760
    %222 = vmatprep.subr.mxu0 %v221
    %v223 = vand.u32 %v71, 4294901760
    %224 = vmatpush1.xpose.msra.mxu0 %v223
    %v225 = vand.u32 %v79, 4294901760
    %226 = vmatprep.subr.mxu0 %v225
    %v227 = vand.u32 %v78, 4294901760
    %228 = vmatpush1.xpose.msra.mxu0 %v227
    %v229 = vand.u32 %v86, 4294901760
    %230 = vmatprep.subr.mxu0 %v229
    %v231 = vand.u32 %v85, 4294901760
    %232 = vmatpush1.xpose.msra.mxu0 %v231
    %v233 = vand.u32 %v93, 4294901760
    %234 = vmatprep.subr.mxu0 %v233
    %v235 = vand.u32 %v92, 4294901760
    %236 = vmatpush1.xpose.msra.mxu0 %v235
    %v237 = vand.u32 %v100, 4294901760
    %238 = vmatprep.subr.mxu0 %v237
    %v239 = vand.u32 %v99, 4294901760
    %240 = vmatpush1.xpose.msra.mxu0 %v239
    %v241 = vand.u32 %v107, 4294901760
    %242 = vmatprep.subr.mxu0 %v241
    %v243 = vand.u32 %v106, 4294901760
    %244 = vmatpush1.xpose.msra.mxu0 %v243
    %v245 = vand.u32 %v114, 4294901760
    %246 = vmatprep.subr.mxu0 %v245
    %v247 = vand.u32 %v113, 4294901760
    %248 = vmatpush1.xpose.msra.mxu0 %v247
    %v249 = vand.u32 %v121, 4294901760
    %250 = vmatprep.subr.mxu0 %v249
    %v251 = vand.u32 %v120, 4294901760
    %252 = vmatpush1.xpose.msra.mxu0 %v251
    %v253 = vand.u32 %v128, 4294901760
    %254 = vmatprep.subr.mxu0 %v253
    %v255 = vand.u32 %v127, 4294901760
    %256 = vmatpush1.xpose.msra.mxu0 %v255
    %257 = vmatprep.subr.mxu0 0.0
    %258 = vmatpush1.xpose.msra.mxu0 0.0
    %259 = vmatprep.subr.mxu0 0.0
    %260 = vmatpush1.xpose.msra.mxu0 0.0
    %261 = vmatprep.subr.mxu0 0.0
    %262 = vmatpush1.xpose.msra.mxu0 0.0
    %263 = vmatprep.subr.mxu0 0.0
    %264 = vmatpush1.xpose.msra.mxu0 0.0
    %265 = vmatprep.subr.mxu0 0.0
    %266 = vmatpush1.xpose.msra.mxu0 0.0
    %267 = vmatprep.subr.mxu0 0.0
    %268 = vmatpush1.xpose.msra.mxu0 0.0
    %269 = vmatprep.subr.mxu0 0.0
    %270 = vmatpush1.xpose.msra.mxu0 0.0
    %271 = vmatprep.subr.mxu0 0.0
    %272 = vmatpush1.xpose.msra.mxu0 0.0
    %273 = vmatprep.subr.mxu0 0.0
    %274 = vmatpush1.xpose.msra.mxu0 0.0
    %275 = vmatprep.subr.mxu0 0.0
    %276 = vmatpush1.xpose.msra.mxu0 0.0
    %277 = vmatprep.subr.mxu0 0.0
    %278 = vmatpush1.xpose.msra.mxu0 0.0
    %279 = vmatprep.subr.mxu0 0.0
    %280 = vmatpush1.xpose.msra.mxu0 0.0
    %281 = vmatprep.subr.mxu0 0.0
    %282 = vmatpush1.xpose.msra.mxu0 0.0
    %283 = vmatprep.subr.mxu0 0.0
    %284 = vmatpush1.xpose.msra.mxu0 0.0
    %285 = vmatprep.subr.mxu0 0.0
    %286 = vmatpush1.xpose.msra.mxu0 0.0
    %287 = vmatprep.subr.mxu0 0.0
    %288 = vmatpush1.xpose.msra.mxu0 0.0
    %v289 = vand.u32 %v16, 4294901760
    %v290 = vsub.f32 %v16, %v289
    %v291 = vand.u32 %v290, 4294901760
    %v292 = vsub.f32 %v290, %v291
    %v293 = vand.u32 %v292, 4294901760
    %294 = vmatprep.mubr.f32.mxu0 %v293
    %v295 = vand.u32 %v15, 4294901760
    %v296 = vsub.f32 %v15, %v295
    %v297 = vand.u32 %v296, 4294901760
    %v298 = vsub.f32 %v296, %v297
    %v299 = vand.u32 %v298, 4294901760
    %300 = vmatmul.mubr.f32.gmra.mrb[0].mxu0 %v299
    %v301 = vpop.f32.mrb[0].mxu0
    %v302 = vadd.f32 %v139, %v301
    %v303 = vpop.f32.mrb[0].mxu0
    %304 = vdwg.mxu0
    %v305 = vand.u32 %v23, 4294901760
    %v306 = vsub.f32 %v23, %v305
    %v307 = vand.u32 %v306, 4294901760
    %v308 = vsub.f32 %v306, %v307
    %v309 = vand.u32 %v308, 4294901760
    %310 = vmatprep.subr.mxu0 %v309
    %v311 = vand.u32 %v22, 4294901760
    %v312 = vsub.f32 %v22, %v311
    %v313 = vand.u32 %v312, 4294901760
    %v314 = vsub.f32 %v312, %v313
    %v315 = vand.u32 %v314, 4294901760
    %316 = vmatpush1.xpose.msra.mxu0 %v315
    %v317 = vand.u32 %v30, 4294901760
    %v318 = vsub.f32 %v30, %v317
    %v319 = vand.u32 %v318, 4294901760
    %v320 = vsub.f32 %v318, %v319
    %v321 = vand.u32 %v320, 4294901760
    %322 = vmatprep.subr.mxu0 %v321
    %v323 = vand.u32 %v29, 4294901760
    %v324 = vsub.f32 %v29, %v323
    %v325 = vand.u32 %v324, 4294901760
    %v326 = vsub.f32 %v324, %v325
    %v327 = vand.u32 %v326, 4294901760
    %328 = vmatpush1.xpose.msra.mxu0 %v327
    %v329 = vand.u32 %v37, 4294901760
    %v330 = vsub.f32 %v37, %v329
    %v331 = vand.u32 %v330, 4294901760
    %v332 = vsub.f32 %v330, %v331
    %v333 = vand.u32 %v332, 4294901760
    %334 = vmatprep.subr.mxu0 %v333
    %v335 = vand.u32 %v36, 4294901760
    %v336 = vsub.f32 %v36, %v335
    %v337 = vand.u32 %v336, 4294901760
    %v338 = vsub.f32 %v336, %v337
    %v339 = vand.u32 %v338, 4294901760
    %340 = vmatpush1.xpose.msra.mxu0 %v339
    %v341 = vand.u32 %v44, 4294901760
    %v342 = vsub.f32 %v44, %v341
    %v343 = vand.u32 %v342, 4294901760
    %v344 = vsub.f32 %v342, %v343
    %v345 = vand.u32 %v344, 4294901760
    %346 = vmatprep.subr.mxu0 %v345
    %v347 = vand.u32 %v43, 4294901760
    %v348 = vsub.f32 %v43, %v347
    %v349 = vand.u32 %v348, 4294901760
    %v350 = vsub.f32 %v348, %v349
    %v351 = vand.u32 %v350, 4294901760
    %352 = vmatpush1.xpose.msra.mxu0 %v351
    %v353 = vand.u32 %v51, 4294901760
    %v354 = vsub.f32 %v51, %v353
    %v355 = vand.u32 %v354, 4294901760
    %v356 = vsub.f32 %v354, %v355
    %v357 = vand.u32 %v356, 4294901760
    %358 = vmatprep.subr.mxu0 %v357
    %v359 = vand.u32 %v50, 4294901760
    %v360 = vsub.f32 %v50, %v359
    %v361 = vand.u32 %v360, 4294901760
    %v362 = vsub.f32 %v360, %v361
    %v363 = vand.u32 %v362, 4294901760
    %364 = vmatpush1.xpose.msra.mxu0 %v363
    %v365 = vand.u32 %v58, 4294901760
    %v366 = vsub.f32 %v58, %v365
    %v367 = vand.u32 %v366, 4294901760
    %v368 = vsub.f32 %v366, %v367
    %v369 = vand.u32 %v368, 4294901760
    %370 = vmatprep.subr.mxu0 %v369
    %v371 = vand.u32 %v57, 4294901760
    %v372 = vsub.f32 %v57, %v371
    %v373 = vand.u32 %v372, 4294901760
    %v374 = vsub.f32 %v372, %v373
    %v375 = vand.u32 %v374, 4294901760
    %376 = vmatpush1.xpose.msra.mxu0 %v375
    %v377 = vand.u32 %v65, 4294901760
    %v378 = vsub.f32 %v65, %v377
    %v379 = vand.u32 %v378, 4294901760
    %v380 = vsub.f32 %v378, %v379
    %v381 = vand.u32 %v380, 4294901760
    %382 = vmatprep.subr.mxu0 %v381
    %v383 = vand.u32 %v64, 4294901760
    %v384 = vsub.f32 %v64, %v383
    %v385 = vand.u32 %v384, 4294901760
    %v386 = vsub.f32 %v384, %v385
    %v387 = vand.u32 %v386, 4294901760
    %388 = vmatpush1.xpose.msra.mxu0 %v387
    %v389 = vand.u32 %v72, 4294901760
    %v390 = vsub.f32 %v72, %v389
    %v391 = vand.u32 %v390, 4294901760
    %v392 = vsub.f32 %v390, %v391
    %v393 = vand.u32 %v392, 4294901760
    %394 = vmatprep.subr.mxu0 %v393
    %v395 = vand.u32 %v71, 4294901760
    %v396 = vsub.f32 %v71, %v395
    %v397 = vand.u32 %v396, 4294901760
    %v398 = vsub.f32 %v396, %v397
    %v399 = vand.u32 %v398, 4294901760
    %400 = vmatpush1.xpose.msra.mxu0 %v399
    %v401 = vand.u32 %v79, 4294901760
    %v402 = vsub.f32 %v79, %v401
    %v403 = vand.u32 %v402, 4294901760
    %v404 = vsub.f32 %v402, %v403
    %v405 = vand.u32 %v404, 4294901760
    %406 = vmatprep.subr.mxu0 %v405
    %v407 = vand.u32 %v78, 4294901760
    %v408 = vsub.f32 %v78, %v407
    %v409 = vand.u32 %v408, 4294901760
    %v410 = vsub.f32 %v408, %v409
    %v411 = vand.u32 %v410, 4294901760
    %412 = vmatpush1.xpose.msra.mxu0 %v411
    %v413 = vand.u32 %v86, 4294901760
    %v414 = vsub.f32 %v86, %v413
    %v415 = vand.u32 %v414, 4294901760
    %v416 = vsub.f32 %v414, %v415
    %v417 = vand.u32 %v416, 4294901760
    %418 = vmatprep.subr.mxu0 %v417
    %v419 = vand.u32 %v85, 4294901760
    %v420 = vsub.f32 %v85, %v419
    %v421 = vand.u32 %v420, 4294901760
    %v422 = vsub.f32 %v420, %v421
    %v423 = vand.u32 %v422, 4294901760
    %424 = vmatpush1.xpose.msra.mxu0 %v423
    %v425 = vand.u32 %v93, 4294901760
    %v426 = vsub.f32 %v93, %v425
    %v427 = vand.u32 %v426, 4294901760
    %v428 = vsub.f32 %v426, %v427
    %v429 = vand.u32 %v428, 4294901760
    %430 = vmatprep.subr.mxu0 %v429
    %v431 = vand.u32 %v92, 4294901760
    %v432 = vsub.f32 %v92, %v431
    %v433 = vand.u32 %v432, 4294901760
    %v434 = vsub.f32 %v432, %v433
    %v435 = vand.u32 %v434, 4294901760
    %436 = vmatpush1.xpose.msra.mxu0 %v435
    %v437 = vand.u32 %v100, 4294901760
    %v438 = vsub.f32 %v100, %v437
    %v439 = vand.u32 %v438, 4294901760
    %v440 = vsub.f32 %v438, %v439
    %v441 = vand.u32 %v440, 4294901760
    %442 = vmatprep.subr.mxu0 %v441
    %v443 = vand.u32 %v99, 4294901760
    %v444 = vsub.f32 %v99, %v443
    %v445 = vand.u32 %v444, 4294901760
    %v446 = vsub.f32 %v444, %v445
    %v447 = vand.u32 %v446, 4294901760
    %448 = vmatpush1.xpose.msra.mxu0 %v447
    %v449 = vand.u32 %v107, 4294901760
    %v450 = vsub.f32 %v107, %v449
    %v451 = vand.u32 %v450, 4294901760
    %v452 = vsub.f32 %v450, %v451
    %v453 = vand.u32 %v452, 4294901760
    %454 = vmatprep.subr.mxu0 %v453
    %v455 = vand.u32 %v106, 4294901760
    %v456 = vsub.f32 %v106, %v455
    %v457 = vand.u32 %v456, 4294901760
    %v458 = vsub.f32 %v456, %v457
    %v459 = vand.u32 %v458, 4294901760
    %460 = vmatpush1.xpose.msra.mxu0 %v459
    %v461 = vand.u32 %v114, 4294901760
    %v462 = vsub.f32 %v114, %v461
    %v463 = vand.u32 %v462, 4294901760
    %v464 = vsub.f32 %v462, %v463
    %v465 = vand.u32 %v464, 4294901760
    %466 = vmatprep.subr.mxu0 %v465
    %v467 = vand.u32 %v113, 4294901760
    %v468 = vsub.f32 %v113, %v467
    %v469 = vand.u32 %v468, 4294901760
    %v470 = vsub.f32 %v468, %v469
    %v471 = vand.u32 %v470, 4294901760
    %472 = vmatpush1.xpose.msra.mxu0 %v471
    %v473 = vand.u32 %v121, 4294901760
    %v474 = vsub.f32 %v121, %v473
    %v475 = vand.u32 %v474, 4294901760
    %v476 = vsub.f32 %v474, %v475
    %v477 = vand.u32 %v476, 4294901760
    %478 = vmatprep.subr.mxu0 %v477
    %v479 = vand.u32 %v120, 4294901760
    %v480 = vsub.f32 %v120, %v479
    %v481 = vand.u32 %v480, 4294901760
    %v482 = vsub.f32 %v480, %v481
    %v483 = vand.u32 %v482, 4294901760
    %484 = vmatpush1.xpose.msra.mxu0 %v483
    %v485 = vand.u32 %v128, 4294901760
    %v486 = vsub.f32 %v128, %v485
    %v487 = vand.u32 %v486, 4294901760
    %v488 = vsub.f32 %v486, %v487
    %v489 = vand.u32 %v488, 4294901760
    %490 = vmatprep.subr.mxu0 %v489
    %v491 = vand.u32 %v127, 4294901760
    %v492 = vsub.f32 %v127, %v491
    %v493 = vand.u32 %v492, 4294901760
    %v494 = vsub.f32 %v492, %v493
    %v495 = vand.u32 %v494, 4294901760
    %496 = vmatpush1.xpose.msra.mxu0 %v495
    %497 = vmatprep.subr.mxu0 0.0
    %498 = vmatpush1.xpose.msra.mxu0 0.0
    %499 = vmatprep.subr.mxu0 0.0
    %500 = vmatpush1.xpose.msra.mxu0 0.0
    %501 = vmatprep.subr.mxu0 0.0
    %502 = vmatpush1.xpose.msra.mxu0 0.0
    %503 = vmatprep.subr.mxu0 0.0
    %504 = vmatpush1.xpose.msra.mxu0 0.0
    %505 = vmatprep.subr.mxu0 0.0
    %506 = vmatpush1.xpose.msra.mxu0 0.0
    %507 = vmatprep.subr.mxu0 0.0
    %508 = vmatpush1.xpose.msra.mxu0 0.0
    %509 = vmatprep.subr.mxu0 0.0
    %510 = vmatpush1.xpose.msra.mxu0 0.0
    %511 = vmatprep.subr.mxu0 0.0
    %512 = vmatpush1.xpose.msra.mxu0 0.0
    %513 = vmatprep.subr.mxu0 0.0
    %514 = vmatpush1.xpose.msra.mxu0 0.0
    %515 = vmatprep.subr.mxu0 0.0
    %516 = vmatpush1.xpose.msra.mxu0 0.0
    %517 = vmatprep.subr.mxu0 0.0
    %518 = vmatpush1.xpose.msra.mxu0 0.0
    %519 = vmatprep.subr.mxu0 0.0
    %520 = vmatpush1.xpose.msra.mxu0 0.0
    %521 = vmatprep.subr.mxu0 0.0
    %522 = vmatpush1.xpose.msra.mxu0 0.0
    %523 = vmatprep.subr.mxu0 0.0
    %524 = vmatpush1.xpose.msra.mxu0 0.0
    %525 = vmatprep.subr.mxu0 0.0
    %526 = vmatpush1.xpose.msra.mxu0 0.0
    %527 = vmatprep.subr.mxu0 0.0
    %528 = vmatpush1.xpose.msra.mxu0 0.0
    %v529 = vand.u32 %v16, 4294901760
    %530 = vmatprep.mubr.f32.mxu0 %v529
    %v531 = vand.u32 %v15, 4294901760
    %532 = vmatmul.mubr.f32.gmra.mrb[0].mxu0 %v531
    %v533 = vpop.f32.mrb[0].mxu0
    %v534 = vadd.f32 %v302, %v533
    %v535 = vpop.f32.mrb[0].mxu0
    %536 = vdwg.mxu0
    %v537 = vand.u32 %v23, 4294901760
    %v538 = vsub.f32 %v23, %v537
    %539 = vmatprep.subr.mxu0 %v538
    %v540 = vand.u32 %v22, 4294901760
    %v541 = vsub.f32 %v22, %v540
    %542 = vmatpush1.xpose.msra.mxu0 %v541
    %v543 = vand.u32 %v30, 4294901760
    %v544 = vsub.f32 %v30, %v543
    %545 = vmatprep.subr.mxu0 %v544
    %v546 = vand.u32 %v29, 4294901760
    %v547 = vsub.f32 %v29, %v546
    %548 = vmatpush1.xpose.msra.mxu0 %v547
    %v549 = vand.u32 %v37, 4294901760
    %v550 = vsub.f32 %v37, %v549
    %551 = vmatprep.subr.mxu0 %v550
    %v552 = vand.u32 %v36, 4294901760
    %v553 = vsub.f32 %v36, %v552
    %554 = vmatpush1.xpose.msra.mxu0 %v553
    %v555 = vand.u32 %v44, 4294901760
    %v556 = vsub.f32 %v44, %v555
    %557 = vmatprep.subr.mxu0 %v556
    %v558 = vand.u32 %v43, 4294901760
    %v559 = vsub.f32 %v43, %v558
    %560 = vmatpush1.xpose.msra.mxu0 %v559
    %v561 = vand.u32 %v51, 4294901760
    %v562 = vsub.f32 %v51, %v561
    %563 = vmatprep.subr.mxu0 %v562
    %v564 = vand.u32 %v50, 4294901760
    %v565 = vsub.f32 %v50, %v564
    %566 = vmatpush1.xpose.msra.mxu0 %v565
    %v567 = vand.u32 %v58, 4294901760
    %v568 = vsub.f32 %v58, %v567
    %569 = vmatprep.subr.mxu0 %v568
    %v570 = vand.u32 %v57, 4294901760
    %v571 = vsub.f32 %v57, %v570
    %572 = vmatpush1.xpose.msra.mxu0 %v571
    %v573 = vand.u32 %v65, 4294901760
    %v574 = vsub.f32 %v65, %v573
    %575 = vmatprep.subr.mxu0 %v574
    %v576 = vand.u32 %v64, 4294901760
    %v577 = vsub.f32 %v64, %v576
    %578 = vmatpush1.xpose.msra.mxu0 %v577
    %v579 = vand.u32 %v72, 4294901760
    %v580 = vsub.f32 %v72, %v579
    %581 = vmatprep.subr.mxu0 %v580
    %v582 = vand.u32 %v71, 4294901760
    %v583 = vsub.f32 %v71, %v582
    %584 = vmatpush1.xpose.msra.mxu0 %v583
    %v585 = vand.u32 %v79, 4294901760
    %v586 = vsub.f32 %v79, %v585
    %587 = vmatprep.subr.mxu0 %v586
    %v588 = vand.u32 %v78, 4294901760
    %v589 = vsub.f32 %v78, %v588
    %590 = vmatpush1.xpose.msra.mxu0 %v589
    %v591 = vand.u32 %v86, 4294901760
    %v592 = vsub.f32 %v86, %v591
    %593 = vmatprep.subr.mxu0 %v592
    %v594 = vand.u32 %v85, 4294901760
    %v595 = vsub.f32 %v85, %v594
    %596 = vmatpush1.xpose.msra.mxu0 %v595
    %v597 = vand.u32 %v93, 4294901760
    %v598 = vsub.f32 %v93, %v597
    %599 = vmatprep.subr.mxu0 %v598
    %v600 = vand.u32 %v92, 4294901760
    %v601 = vsub.f32 %v92, %v600
    %602 = vmatpush1.xpose.msra.mxu0 %v601
    %v603 = vand.u32 %v100, 4294901760
    %v604 = vsub.f32 %v100, %v603
    %605 = vmatprep.subr.mxu0 %v604
    %v606 = vand.u32 %v99, 4294901760
    %v607 = vsub.f32 %v99, %v606
    %608 = vmatpush1.xpose.msra.mxu0 %v607
    %v609 = vand.u32 %v107, 4294901760
    %v610 = vsub.f32 %v107, %v609
    %611 = vmatprep.subr.mxu0 %v610
    %v612 = vand.u32 %v106, 4294901760
    %v613 = vsub.f32 %v106, %v612
    %614 = vmatpush1.xpose.msra.mxu0 %v613
    %v615 = vand.u32 %v114, 4294901760
    %v616 = vsub.f32 %v114, %v615
    %617 = vmatprep.subr.mxu0 %v616
    %v618 = vand.u32 %v113, 4294901760
    %v619 = vsub.f32 %v113, %v618
    %620 = vmatpush1.xpose.msra.mxu0 %v619
    %v621 = vand.u32 %v121, 4294901760
    %v622 = vsub.f32 %v121, %v621
    %623 = vmatprep.subr.mxu0 %v622
    %v624 = vand.u32 %v120, 4294901760
    %v625 = vsub.f32 %v120, %v624
    %626 = vmatpush1.xpose.msra.mxu0 %v625
    %v627 = vand.u32 %v128, 4294901760
    %v628 = vsub.f32 %v128, %v627
    %629 = vmatprep.subr.mxu0 %v628
    %v630 = vand.u32 %v127, 4294901760
    %v631 = vsub.f32 %v127, %v630
    %632 = vmatpush1.xpose.msra.mxu0 %v631
    %633 = vmatprep.subr.mxu0 0.0
    %634 = vmatpush1.xpose.msra.mxu0 0.0
    %635 = vmatprep.subr.mxu0 0.0
    %636 = vmatpush1.xpose.msra.mxu0 0.0
    %637 = vmatprep.subr.mxu0 0.0
    %638 = vmatpush1.xpose.msra.mxu0 0.0
    %639 = vmatprep.subr.mxu0 0.0
    %640 = vmatpush1.xpose.msra.mxu0 0.0
    %641 = vmatprep.subr.mxu0 0.0
    %642 = vmatpush1.xpose.msra.mxu0 0.0
    %643 = vmatprep.subr.mxu0 0.0
    %644 = vmatpush1.xpose.msra.mxu0 0.0
    %645 = vmatprep.subr.mxu0 0.0
    %646 = vmatpush1.xpose.msra.mxu0 0.0
    %647 = vmatprep.subr.mxu0 0.0
    %648 = vmatpush1.xpose.msra.mxu0 0.0
    %649 = vmatprep.subr.mxu0 0.0
    %650 = vmatpush1.xpose.msra.mxu0 0.0
    %651 = vmatprep.subr.mxu0 0.0
    %652 = vmatpush1.xpose.msra.mxu0 0.0
    %653 = vmatprep.subr.mxu0 0.0
    %654 = vmatpush1.xpose.msra.mxu0 0.0
    %655 = vmatprep.subr.mxu0 0.0
    %656 = vmatpush1.xpose.msra.mxu0 0.0
    %657 = vmatprep.subr.mxu0 0.0
    %658 = vmatpush1.xpose.msra.mxu0 0.0
    %659 = vmatprep.subr.mxu0 0.0
    %660 = vmatpush1.xpose.msra.mxu0 0.0
    %661 = vmatprep.subr.mxu0 0.0
    %662 = vmatpush1.xpose.msra.mxu0 0.0
    %663 = vmatprep.subr.mxu0 0.0
    %664 = vmatpush1.xpose.msra.mxu0 0.0
    %v665 = vand.u32 %v16, 4294901760
    %v666 = vsub.f32 %v16, %v665
    %667 = vmatprep.mubr.f32.mxu0 %v666
    %v668 = vand.u32 %v15, 4294901760
    %v669 = vsub.f32 %v15, %v668
    %670 = vmatmul.mubr.f32.gmra.mrb[0].mxu0 %v669
    %v671 = vpop.f32.mrb[0].mxu0
    %v672 = vadd.f32 %v534, %v671
    %v673 = vpop.f32.mrb[0].mxu0
    %674 = vdwg.mxu0
    %v675 = vand.u32 %v23, 4294901760
    %676 = vmatprep.subr.mxu0 %v675
    %v677 = vand.u32 %v22, 4294901760
    %678 = vmatpush1.xpose.msra.mxu0 %v677
    %v679 = vand.u32 %v30, 4294901760
    %680 = vmatprep.subr.mxu0 %v679
    %v681 = vand.u32 %v29, 4294901760
    %682 = vmatpush1.xpose.msra.mxu0 %v681
    %v683 = vand.u32 %v37, 4294901760
    %684 = vmatprep.subr.mxu0 %v683
    %v685 = vand.u32 %v36, 4294901760
    %686 = vmatpush1.xpose.msra.mxu0 %v685
    %v687 = vand.u32 %v44, 4294901760
    %688 = vmatprep.subr.mxu0 %v687
    %v689 = vand.u32 %v43, 4294901760
    %690 = vmatpush1.xpose.msra.mxu0 %v689
    %v691 = vand.u32 %v51, 4294901760
    %692 = vmatprep.subr.mxu0 %v691
    %v693 = vand.u32 %v50, 4294901760
    %694 = vmatpush1.xpose.msra.mxu0 %v693
    %v695 = vand.u32 %v58, 4294901760
    %696 = vmatprep.subr.mxu0 %v695
    %v697 = vand.u32 %v57, 4294901760
    %698 = vmatpush1.xpose.msra.mxu0 %v697
    %v699 = vand.u32 %v65, 4294901760
    %700 = vmatprep.subr.mxu0 %v699
    %v701 = vand.u32 %v64, 4294901760
    %702 = vmatpush1.xpose.msra.mxu0 %v701
    %v703 = vand.u32 %v72, 4294901760
    %704 = vmatprep.subr.mxu0 %v703
    %v705 = vand.u32 %v71, 4294901760
    %706 = vmatpush1.xpose.msra.mxu0 %v705
    %v707 = vand.u32 %v79, 4294901760
    %708 = vmatprep.subr.mxu0 %v707
    %v709 = vand.u32 %v78, 4294901760
    %710 = vmatpush1.xpose.msra.mxu0 %v709
    %v711 = vand.u32 %v86, 4294901760
    %712 = vmatprep.subr.mxu0 %v711
    %v713 = vand.u32 %v85, 4294901760
    %714 = vmatpush1.xpose.msra.mxu0 %v713
    %v715 = vand.u32 %v93, 4294901760
    %716 = vmatprep.subr.mxu0 %v715
    %v717 = vand.u32 %v92, 4294901760
    %718 = vmatpush1.xpose.msra.mxu0 %v717
    %v719 = vand.u32 %v100, 4294901760
    %720 = vmatprep.subr.mxu0 %v719
    %v721 = vand.u32 %v99, 4294901760
    %722 = vmatpush1.xpose.msra.mxu0 %v721
    %v723 = vand.u32 %v107, 4294901760
    %724 = vmatprep.subr.mxu0 %v723
    %v725 = vand.u32 %v106, 4294901760
    %726 = vmatpush1.xpose.msra.mxu0 %v725
    %v727 = vand.u32 %v114, 4294901760
    %728 = vmatprep.subr.mxu0 %v727
    %v729 = vand.u32 %v113, 4294901760
    %730 = vmatpush1.xpose.msra.mxu0 %v729
    %v731 = vand.u32 %v121, 4294901760
    %732 = vmatprep.subr.mxu0 %v731
    %v733 = vand.u32 %v120, 4294901760
    %734 = vmatpush1.xpose.msra.mxu0 %v733
    %v735 = vand.u32 %v128, 4294901760
    %736 = vmatprep.subr.mxu0 %v735
    %v737 = vand.u32 %v127, 4294901760
    %738 = vmatpush1.xpose.msra.mxu0 %v737
    %739 = vmatprep.subr.mxu0 0.0
    %740 = vmatpush1.xpose.msra.mxu0 0.0
    %741 = vmatprep.subr.mxu0 0.0
    %742 = vmatpush1.xpose.msra.mxu0 0.0
    %743 = vmatprep.subr.mxu0 0.0
    %744 = vmatpush1.xpose.msra.mxu0 0.0
    %745 = vmatprep.subr.mxu0 0.0
    %746 = vmatpush1.xpose.msra.mxu0 0.0
    %747 = vmatprep.subr.mxu0 0.0
    %748 = vmatpush1.xpose.msra.mxu0 0.0
    %749 = vmatprep.subr.mxu0 0.0
    %750 = vmatpush1.xpose.msra.mxu0 0.0
    %751 = vmatprep.subr.mxu0 0.0
    %752 = vmatpush1.xpose.msra.mxu0 0.0
    %753 = vmatprep.subr.mxu0 0.0
    %754 = vmatpush1.xpose.msra.mxu0 0.0
    %755 = vmatprep.subr.mxu0 0.0
    %756 = vmatpush1.xpose.msra.mxu0 0.0
    %757 = vmatprep.subr.mxu0 0.0
    %758 = vmatpush1.xpose.msra.mxu0 0.0
    %759 = vmatprep.subr.mxu0 0.0
    %760 = vmatpush1.xpose.msra.mxu0 0.0
    %761 = vmatprep.subr.mxu0 0.0
    %762 = vmatpush1.xpose.msra.mxu0 0.0
    %763 = vmatprep.subr.mxu0 0.0
    %764 = vmatpush1.xpose.msra.mxu0 0.0
    %765 = vmatprep.subr.mxu0 0.0
    %766 = vmatpush1.xpose.msra.mxu0 0.0
    %767 = vmatprep.subr.mxu0 0.0
    %768 = vmatpush1.xpose.msra.mxu0 0.0
    %769 = vmatprep.subr.mxu0 0.0
    %770 = vmatpush1.xpose.msra.mxu0 0.0
    %v771 = vand.u32 %v16, 4294901760
    %v772 = vsub.f32 %v16, %v771
    %v773 = vand.u32 %v772, 4294901760
    %774 = vmatprep.mubr.f32.mxu0 %v773
    %v775 = vand.u32 %v15, 4294901760
    %v776 = vsub.f32 %v15, %v775
    %v777 = vand.u32 %v776, 4294901760
    %778 = vmatmul.mubr.f32.gmra.mrb[0].mxu0 %v777
    %v779 = vpop.f32.mrb[0].mxu0
    %v780 = vadd.f32 %v672, %v779
    %v781 = vpop.f32.mrb[0].mxu0
    %782 = vdwg.mxu0
    %v783 = vand.u32 %v23, 4294901760
    %v784 = vsub.f32 %v23, %v783
    %v785 = vand.u32 %v784, 4294901760
    %786 = vmatprep.subr.mxu0 %v785
    %v787 = vand.u32 %v22, 4294901760
    %v788 = vsub.f32 %v22, %v787
    %v789 = vand.u32 %v788, 4294901760
    %790 = vmatpush1.xpose.msra.mxu0 %v789
    %v791 = vand.u32 %v30, 4294901760
    %v792 = vsub.f32 %v30, %v791
    %v793 = vand.u32 %v792, 4294901760
    %794 = vmatprep.subr.mxu0 %v793
    %v795 = vand.u32 %v29, 4294901760
    %v796 = vsub.f32 %v29, %v795
    %v797 = vand.u32 %v796, 4294901760
    %798 = vmatpush1.xpose.msra.mxu0 %v797
    %v799 = vand.u32 %v37, 4294901760
    %v800 = vsub.f32 %v37, %v799
    %v801 = vand.u32 %v800, 4294901760
    %802 = vmatprep.subr.mxu0 %v801
    %v803 = vand.u32 %v36, 4294901760
    %v804 = vsub.f32 %v36, %v803
    %v805 = vand.u32 %v804, 4294901760
    %806 = vmatpush1.xpose.msra.mxu0 %v805
    %v807 = vand.u32 %v44, 4294901760
    %v808 = vsub.f32 %v44, %v807
    %v809 = vand.u32 %v808, 4294901760
    %810 = vmatprep.subr.mxu0 %v809
    %v811 = vand.u32 %v43, 4294901760
    %v812 = vsub.f32 %v43, %v811
    %v813 = vand.u32 %v812, 4294901760
    %814 = vmatpush1.xpose.msra.mxu0 %v813
    %v815 = vand.u32 %v51, 4294901760
    %v816 = vsub.f32 %v51, %v815
    %v817 = vand.u32 %v816, 4294901760
    %818 = vmatprep.subr.mxu0 %v817
    %v819 = vand.u32 %v50, 4294901760
    %v820 = vsub.f32 %v50, %v819
    %v821 = vand.u32 %v820, 4294901760
    %822 = vmatpush1.xpose.msra.mxu0 %v821
    %v823 = vand.u32 %v58, 4294901760
    %v824 = vsub.f32 %v58, %v823
    %v825 = vand.u32 %v824, 4294901760
    %826 = vmatprep.subr.mxu0 %v825
    %v827 = vand.u32 %v57, 4294901760
    %v828 = vsub.f32 %v57, %v827
    %v829 = vand.u32 %v828, 4294901760
    %830 = vmatpush1.xpose.msra.mxu0 %v829
    %v831 = vand.u32 %v65, 4294901760
    %v832 = vsub.f32 %v65, %v831
    %v833 = vand.u32 %v832, 4294901760
    %834 = vmatprep.subr.mxu0 %v833
    %v835 = vand.u32 %v64, 4294901760
    %v836 = vsub.f32 %v64, %v835
    %v837 = vand.u32 %v836, 4294901760
    %838 = vmatpush1.xpose.msra.mxu0 %v837
    %v839 = vand.u32 %v72, 4294901760
    %v840 = vsub.f32 %v72, %v839
    %v841 = vand.u32 %v840, 4294901760
    %842 = vmatprep.subr.mxu0 %v841
    %v843 = vand.u32 %v71, 4294901760
    %v844 = vsub.f32 %v71, %v843
    %v845 = vand.u32 %v844, 4294901760
    %846 = vmatpush1.xpose.msra.mxu0 %v845
    %v847 = vand.u32 %v79, 4294901760
    %v848 = vsub.f32 %v79, %v847
    %v849 = vand.u32 %v848, 4294901760
    %850 = vmatprep.subr.mxu0 %v849
    %v851 = vand.u32 %v78, 4294901760
    %v852 = vsub.f32 %v78, %v851
    %v853 = vand.u32 %v852, 4294901760
    %854 = vmatpush1.xpose.msra.mxu0 %v853
    %v855 = vand.u32 %v86, 4294901760
    %v856 = vsub.f32 %v86, %v855
    %v857 = vand.u32 %v856, 4294901760
    %858 = vmatprep.subr.mxu0 %v857
    %v859 = vand.u32 %v85, 4294901760
    %v860 = vsub.f32 %v85, %v859
    %v861 = vand.u32 %v860, 4294901760
    %862 = vmatpush1.xpose.msra.mxu0 %v861
    %v863 = vand.u32 %v93, 4294901760
    %v864 = vsub.f32 %v93, %v863
    %v865 = vand.u32 %v864, 4294901760
    %866 = vmatprep.subr.mxu0 %v865
    %v867 = vand.u32 %v92, 4294901760
    %v868 = vsub.f32 %v92, %v867
    %v869 = vand.u32 %v868, 4294901760
    %870 = vmatpush1.xpose.msra.mxu0 %v869
    %v871 = vand.u32 %v100, 4294901760
    %v872 = vsub.f32 %v100, %v871
    %v873 = vand.u32 %v872, 4294901760
    %874 = vmatprep.subr.mxu0 %v873
    %v875 = vand.u32 %v99, 4294901760
    %v876 = vsub.f32 %v99, %v875
    %v877 = vand.u32 %v876, 4294901760
    %878 = vmatpush1.xpose.msra.mxu0 %v877
    %v879 = vand.u32 %v107, 4294901760
    %v880 = vsub.f32 %v107, %v879
    %v881 = vand.u32 %v880, 4294901760
    %882 = vmatprep.subr.mxu0 %v881
    %v883 = vand.u32 %v106, 4294901760
    %v884 = vsub.f32 %v106, %v883
    %v885 = vand.u32 %v884, 4294901760
    %886 = vmatpush1.xpose.msra.mxu0 %v885
    %v887 = vand.u32 %v114, 4294901760
    %v888 = vsub.f32 %v114, %v887
    %v889 = vand.u32 %v888, 4294901760
    %890 = vmatprep.subr.mxu0 %v889
    %v891 = vand.u32 %v113, 4294901760
    %v892 = vsub.f32 %v113, %v891
    %v893 = vand.u32 %v892, 4294901760
    %894 = vmatpush1.xpose.msra.mxu0 %v893
    %v895 = vand.u32 %v121, 4294901760
    %v896 = vsub.f32 %v121, %v895
    %v897 = vand.u32 %v896, 4294901760
    %898 = vmatprep.subr.mxu0 %v897
    %v899 = vand.u32 %v120, 4294901760
    %v900 = vsub.f32 %v120, %v899
    %v901 = vand.u32 %v900, 4294901760
    %902 = vmatpush1.xpose.msra.mxu0 %v901
    %v903 = vand.u32 %v128, 4294901760
    %v904 = vsub.f32 %v128, %v903
    %v905 = vand.u32 %v904, 4294901760
    %906 = vmatprep.subr.mxu0 %v905
    %v907 = vand.u32 %v127, 4294901760
    %v908 = vsub.f32 %v127, %v907
    %v909 = vand.u32 %v908, 4294901760
    %910 = vmatpush1.xpose.msra.mxu0 %v909
    %911 = vmatprep.subr.mxu0 0.0
    %912 = vmatpush1.xpose.msra.mxu0 0.0
    %913 = vmatprep.subr.mxu0 0.0
    %914 = vmatpush1.xpose.msra.mxu0 0.0
    %915 = vmatprep.subr.mxu0 0.0
    %916 = vmatpush1.xpose.msra.mxu0 0.0
    %917 = vmatprep.subr.mxu0 0.0
    %918 = vmatpush1.xpose.msra.mxu0 0.0
    %919 = vmatprep.subr.mxu0 0.0
    %920 = vmatpush1.xpose.msra.mxu0 0.0
    %921 = vmatprep.subr.mxu0 0.0
    %922 = vmatpush1.xpose.msra.mxu0 0.0
    %923 = vmatprep.subr.mxu0 0.0
    %924 = vmatpush1.xpose.msra.mxu0 0.0
    %925 = vmatprep.subr.mxu0 0.0
    %926 = vmatpush1.xpose.msra.mxu0 0.0
    %927 = vmatprep.subr.mxu0 0.0
    %928 = vmatpush1.xpose.msra.mxu0 0.0
    %929 = vmatprep.subr.mxu0 0.0
    %930 = vmatpush1.xpose.msra.mxu0 0.0
    %931 = vmatprep.subr.mxu0 0.0
    %932 = vmatpush1.xpose.msra.mxu0 0.0
    %933 = vmatprep.subr.mxu0 0.0
    %934 = vmatpush1.xpose.msra.mxu0 0.0
    %935 = vmatprep.subr.mxu0 0.0
    %936 = vmatpush1.xpose.msra.mxu0 0.0
    %937 = vmatprep.subr.mxu0 0.0
    %938 = vmatpush1.xpose.msra.mxu0 0.0
    %939 = vmatprep.subr.mxu0 0.0
    %940 = vmatpush1.xpose.msra.mxu0 0.0
    %941 = vmatprep.subr.mxu0 0.0
    %942 = vmatpush1.xpose.msra.mxu0 0.0
    %v943 = vand.u32 %v16, 4294901760
    %944 = vmatprep.mubr.f32.mxu0 %v943
    %v945 = vand.u32 %v15, 4294901760
    %946 = vmatmul.mubr.f32.gmra.mrb[0].mxu0 %v945
    %v947 = vpop.f32.mrb[0].mxu0
    %v948 = vadd.f32 %v780, %v947
    %v949 = vpop.f32.mrb[0].mxu0
    %950 = vdwg.mxu0
    %v951 = vand.u32 %v23, 4294901760
    %952 = vmatprep.subr.mxu0 %v951
    %v953 = vand.u32 %v22, 4294901760
    %954 = vmatpush1.xpose.msra.mxu0 %v953
    %v955 = vand.u32 %v30, 4294901760
    %956 = vmatprep.subr.mxu0 %v955
    %v957 = vand.u32 %v29, 4294901760
    %958 = vmatpush1.xpose.msra.mxu0 %v957
    %v959 = vand.u32 %v37, 4294901760
    %960 = vmatprep.subr.mxu0 %v959
    %v961 = vand.u32 %v36, 4294901760
    %962 = vmatpush1.xpose.msra.mxu0 %v961
    %v963 = vand.u32 %v44, 4294901760
    %964 = vmatprep.subr.mxu0 %v963
    %v965 = vand.u32 %v43, 4294901760
    %966 = vmatpush1.xpose.msra.mxu0 %v965
    %v967 = vand.u32 %v51, 4294901760
    %968 = vmatprep.subr.mxu0 %v967
    %v969 = vand.u32 %v50, 4294901760
    %970 = vmatpush1.xpose.msra.mxu0 %v969
    %v971 = vand.u32 %v58, 4294901760
    %972 = vmatprep.subr.mxu0 %v971
    %v973 = vand.u32 %v57, 4294901760
    %974 = vmatpush1.xpose.msra.mxu0 %v973
    %v975 = vand.u32 %v65, 4294901760
    %976 = vmatprep.subr.mxu0 %v975
    %v977 = vand.u32 %v64, 4294901760
    %978 = vmatpush1.xpose.msra.mxu0 %v977
    %v979 = vand.u32 %v72, 4294901760
    %980 = vmatprep.subr.mxu0 %v979
    %v981 = vand.u32 %v71, 4294901760
    %982 = vmatpush1.xpose.msra.mxu0 %v981
    %v983 = vand.u32 %v79, 4294901760
    %984 = vmatprep.subr.mxu0 %v983
    %v985 = vand.u32 %v78, 4294901760
    %986 = vmatpush1.xpose.msra.mxu0 %v985
    %v987 = vand.u32 %v86, 4294901760
    %988 = vmatprep.subr.mxu0 %v987
    %v989 = vand.u32 %v85, 4294901760
    %990 = vmatpush1.xpose.msra.mxu0 %v989
    %v991 = vand.u32 %v93, 4294901760
    %992 = vmatprep.subr.mxu0 %v991
    %v993 = vand.u32 %v92, 4294901760
    %994 = vmatpush1.xpose.msra.mxu0 %v993
    %v995 = vand.u32 %v100, 4294901760
    %996 = vmatprep.subr.mxu0 %v995
    %v997 = vand.u32 %v99, 4294901760
    %998 = vmatpush1.xpose.msra.mxu0 %v997
    %v999 = vand.u32 %v107, 4294901760
    %1000 = vmatprep.subr.mxu0 %v999
    %v1001 = vand.u32 %v106, 4294901760
    %1002 = vmatpush1.xpose.msra.mxu0 %v1001
    %v1003 = vand.u32 %v114, 4294901760
    %1004 = vmatprep.subr.mxu0 %v1003
    %v1005 = vand.u32 %v113, 4294901760
    %1006 = vmatpush1.xpose.msra.mxu0 %v1005
    %v1007 = vand.u32 %v121, 4294901760
    %1008 = vmatprep.subr.mxu0 %v1007
    %v1009 = vand.u32 %v120, 4294901760
    %1010 = vmatpush1.xpose.msra.mxu0 %v1009
    %v1011 = vand.u32 %v128, 4294901760
    %1012 = vmatprep.subr.mxu0 %v1011
    %v1013 = vand.u32 %v127, 4294901760
    %1014 = vmatpush1.xpose.msra.mxu0 %v1013
    %1015 = vmatprep.subr.mxu0 0.0
    %1016 = vmatpush1.xpose.msra.mxu0 0.0
    %1017 = vmatprep.subr.mxu0 0.0
    %1018 = vmatpush1.xpose.msra.mxu0 0.0
    %1019 = vmatprep.subr.mxu0 0.0
    %1020 = vmatpush1.xpose.msra.mxu0 0.0
    %1021 = vmatprep.subr.mxu0 0.0
    %1022 = vmatpush1.xpose.msra.mxu0 0.0
    %1023 = vmatprep.subr.mxu0 0.0
    %1024 = vmatpush1.xpose.msra.mxu0 0.0
    %1025 = vmatprep.subr.mxu0 0.0
    %1026 = vmatpush1.xpose.msra.mxu0 0.0
    %1027 = vmatprep.subr.mxu0 0.0
    %1028 = vmatpush1.xpose.msra.mxu0 0.0
    %1029 = vmatprep.subr.mxu0 0.0
    %1030 = vmatpush1.xpose.msra.mxu0 0.0
    %1031 = vmatprep.subr.mxu0 0.0
    %1032 = vmatpush1.xpose.msra.mxu0 0.0
    %1033 = vmatprep.subr.mxu0 0.0
    %1034 = vmatpush1.xpose.msra.mxu0 0.0
    %1035 = vmatprep.subr.mxu0 0.0
    %1036 = vmatpush1.xpose.msra.mxu0 0.0
    %1037 = vmatprep.subr.mxu0 0.0
    %1038 = vmatpush1.xpose.msra.mxu0 0.0
    %1039 = vmatprep.subr.mxu0 0.0
    %1040 = vmatpush1.xpose.msra.mxu0 0.0
    %1041 = vmatprep.subr.mxu0 0.0
    %1042 = vmatpush1.xpose.msra.mxu0 0.0
    %1043 = vmatprep.subr.mxu0 0.0
    %1044 = vmatpush1.xpose.msra.mxu0 0.0
    %1045 = vmatprep.subr.mxu0 0.0
    %1046 = vmatpush1.xpose.msra.mxu0 0.0
    %v1047 = vand.u32 %v16, 4294901760
    %1048 = vmatprep.mubr.f32.mxu0 %v1047
    %v1049 = vand.u32 %v15, 4294901760
    %1050 = vmatmul.mubr.f32.gmra.mrb[0].mxu0 %v1049
    %v1051 = vpop.f32.mrb[0].mxu0
    %v1052 = vadd.f32 %v948, %v1051
    %v1053 = vpop.f32.mrb[0].mxu0
    %1054 = vdwg.mxu0
    %v1055 = vand.u32 %v25, 4294901760
    %1056 = vmatprep.subr.mxu0 %v1055
    %v1057 = vand.u32 %v24, 4294901760
    %1058 = vmatpush1.xpose.msra.mxu0 %v1057
    %v1059 = vand.u32 %v32, 4294901760
    %1060 = vmatprep.subr.mxu0 %v1059
    %v1061 = vand.u32 %v31, 4294901760
    %1062 = vmatpush1.xpose.msra.mxu0 %v1061
    %v1063 = vand.u32 %v39, 4294901760
    %1064 = vmatprep.subr.mxu0 %v1063
    %v1065 = vand.u32 %v38, 4294901760
    %1066 = vmatpush1.xpose.msra.mxu0 %v1065
    %v1067 = vand.u32 %v46, 4294901760
    %1068 = vmatprep.subr.mxu0 %v1067
    %v1069 = vand.u32 %v45, 4294901760
    %1070 = vmatpush1.xpose.msra.mxu0 %v1069
    %v1071 = vand.u32 %v53, 4294901760
    %1072 = vmatprep.subr.mxu0 %v1071
    %v1073 = vand.u32 %v52, 4294901760
    %1074 = vmatpush1.xpose.msra.mxu0 %v1073
    %v1075 = vand.u32 %v60, 4294901760
    %1076 = vmatprep.subr.mxu0 %v1075
    %v1077 = vand.u32 %v59, 4294901760
    %1078 = vmatpush1.xpose.msra.mxu0 %v1077
    %v1079 = vand.u32 %v67, 4294901760
    %1080 = vmatprep.subr.mxu0 %v1079
    %v1081 = vand.u32 %v66, 4294901760
    %1082 = vmatpush1.xpose.msra.mxu0 %v1081
    %v1083 = vand.u32 %v74, 4294901760
    %1084 = vmatprep.subr.mxu0 %v1083
    %v1085 = vand.u32 %v73, 4294901760
    %1086 = vmatpush1.xpose.msra.mxu0 %v1085
    %v1087 = vand.u32 %v81, 4294901760
    %1088 = vmatprep.subr.mxu0 %v1087
    %v1089 = vand.u32 %v80, 4294901760
    %1090 = vmatpush1.xpose.msra.mxu0 %v1089
    %v1091 = vand.u32 %v88, 4294901760
    %1092 = vmatprep.subr.mxu0 %v1091
    %v1093 = vand.u32 %v87, 4294901760
    %1094 = vmatpush1.xpose.msra.mxu0 %v1093
    %v1095 = vand.u32 %v95, 4294901760
    %1096 = vmatprep.subr.mxu0 %v1095
    %v1097 = vand.u32 %v94, 4294901760
    %1098 = vmatpush1.xpose.msra.mxu0 %v1097
    %v1099 = vand.u32 %v102, 4294901760
    %1100 = vmatprep.subr.mxu0 %v1099
    %v1101 = vand.u32 %v101, 4294901760
    %1102 = vmatpush1.xpose.msra.mxu0 %v1101
    %v1103 = vand.u32 %v109, 4294901760
    %1104 = vmatprep.subr.mxu0 %v1103
    %v1105 = vand.u32 %v108, 4294901760
    %1106 = vmatpush1.xpose.msra.mxu0 %v1105
    %v1107 = vand.u32 %v116, 4294901760
    %1108 = vmatprep.subr.mxu0 %v1107
    %v1109 = vand.u32 %v115, 4294901760
    %1110 = vmatpush1.xpose.msra.mxu0 %v1109
    %v1111 = vand.u32 %v123, 4294901760
    %1112 = vmatprep.subr.mxu0 %v1111
    %v1113 = vand.u32 %v122, 4294901760
    %1114 = vmatpush1.xpose.msra.mxu0 %v1113
    %v1115 = vand.u32 %v130, 4294901760
    %1116 = vmatprep.subr.mxu0 %v1115
    %v1117 = vand.u32 %v129, 4294901760
    %1118 = vmatpush1.xpose.msra.mxu0 %v1117
    %1119 = vmatprep.subr.mxu0 0.0
    %1120 = vmatpush1.xpose.msra.mxu0 0.0
    %1121 = vmatprep.subr.mxu0 0.0
    %1122 = vmatpush1.xpose.msra.mxu0 0.0
    %1123 = vmatprep.subr.mxu0 0.0
    %1124 = vmatpush1.xpose.msra.mxu0 0.0
    %1125 = vmatprep.subr.mxu0 0.0
    %1126 = vmatpush1.xpose.msra.mxu0 0.0
    %1127 = vmatprep.subr.mxu0 0.0
    %1128 = vmatpush1.xpose.msra.mxu0 0.0
    %1129 = vmatprep.subr.mxu0 0.0
    %1130 = vmatpush1.xpose.msra.mxu0 0.0
    %1131 = vmatprep.subr.mxu0 0.0
    %1132 = vmatpush1.xpose.msra.mxu0 0.0
    %1133 = vmatprep.subr.mxu0 0.0
    %1134 = vmatpush1.xpose.msra.mxu0 0.0
    %1135 = vmatprep.subr.mxu0 0.0
    %1136 = vmatpush1.xpose.msra.mxu0 0.0
    %1137 = vmatprep.subr.mxu0 0.0
    %1138 = vmatpush1.xpose.msra.mxu0 0.0
    %1139 = vmatprep.subr.mxu0 0.0
    %1140 = vmatpush1.xpose.msra.mxu0 0.0
    %1141 = vmatprep.subr.mxu0 0.0
    %1142 = vmatpush1.xpose.msra.mxu0 0.0
    %1143 = vmatprep.subr.mxu0 0.0
    %1144 = vmatpush1.xpose.msra.mxu0 0.0
    %1145 = vmatprep.subr.mxu0 0.0
    %1146 = vmatpush1.xpose.msra.mxu0 0.0
    %1147 = vmatprep.subr.mxu0 0.0
    %1148 = vmatpush1.xpose.msra.mxu0 0.0
    %1149 = vmatprep.subr.mxu0 0.0
    %1150 = vmatpush1.xpose.msra.mxu0 0.0
    %v1151 = vand.u32 %v18, 4294901760
    %v1152 = vsub.f32 %v18, %v1151
    %v1153 = vand.u32 %v1152, 4294901760
    %v1154 = vsub.f32 %v1152, %v1153
    %v1155 = vand.u32 %v1154, 4294901760
    %1156 = vmatprep.mubr.f32.mxu0 %v1155
    %v1157 = vand.u32 %v17, 4294901760
    %v1158 = vsub.f32 %v17, %v1157
    %v1159 = vand.u32 %v1158, 4294901760
    %v1160 = vsub.f32 %v1158, %v1159
    %v1161 = vand.u32 %v1160, 4294901760
    %1162 = vmatmul.mubr.f32.gmra.mrb[0].mxu0 %v1161
    %v1163 = vpop.f32.mrb[0].mxu0
    %v1164 = vadd.f32 %v1052, %v1163
    %v1165 = vpop.f32.mrb[0].mxu0
    %1166 = vdwg.mxu0
    %v1167 = vand.u32 %v25, 4294901760
    %v1168 = vsub.f32 %v25, %v1167
    %v1169 = vand.u32 %v1168, 4294901760
    %v1170 = vsub.f32 %v1168, %v1169
    %v1171 = vand.u32 %v1170, 4294901760
    %1172 = vmatprep.subr.mxu0 %v1171
    %v1173 = vand.u32 %v24, 4294901760
    %v1174 = vsub.f32 %v24, %v1173
    %v1175 = vand.u32 %v1174, 4294901760
    %v1176 = vsub.f32 %v1174, %v1175
    %v1177 = vand.u32 %v1176, 4294901760
    %1178 = vmatpush1.xpose.msra.mxu0 %v1177
    %v1179 = vand.u32 %v32, 4294901760
    %v1180 = vsub.f32 %v32, %v1179
    %v1181 = vand.u32 %v1180, 4294901760
    %v1182 = vsub.f32 %v1180, %v1181
    %v1183 = vand.u32 %v1182, 4294901760
    %1184 = vmatprep.subr.mxu0 %v1183
    %v1185 = vand.u32 %v31, 4294901760
    %v1186 = vsub.f32 %v31, %v1185
    %v1187 = vand.u32 %v1186, 4294901760
    %v1188 = vsub.f32 %v1186, %v1187
    %v1189 = vand.u32 %v1188, 4294901760
    %1190 = vmatpush1.xpose.msra.mxu0 %v1189
    %v1191 = vand.u32 %v39, 4294901760
    %v1192 = vsub.f32 %v39, %v1191
    %v1193 = vand.u32 %v1192, 4294901760
    %v1194 = vsub.f32 %v1192, %v1193
    %v1195 = vand.u32 %v1194, 4294901760
    %1196 = vmatprep.subr.mxu0 %v1195
    %v1197 = vand.u32 %v38, 4294901760
    %v1198 = vsub.f32 %v38, %v1197
    %v1199 = vand.u32 %v1198, 4294901760
    %v1200 = vsub.f32 %v1198, %v1199
    %v1201 = vand.u32 %v1200, 4294901760
    %1202 = vmatpush1.xpose.msra.mxu0 %v1201
    %v1203 = vand.u32 %v46, 4294901760
    %v1204 = vsub.f32 %v46, %v1203
    %v1205 = vand.u32 %v1204, 4294901760
    %v1206 = vsub.f32 %v1204, %v1205
    %v1207 = vand.u32 %v1206, 4294901760
    %1208 = vmatprep.subr.mxu0 %v1207
    %v1209 = vand.u32 %v45, 4294901760
    %v1210 = vsub.f32 %v45, %v1209
    %v1211 = vand.u32 %v1210, 4294901760
    %v1212 = vsub.f32 %v1210, %v1211
    %v1213 = vand.u32 %v1212, 4294901760
    %1214 = vmatpush1.xpose.msra.mxu0 %v1213
    %v1215 = vand.u32 %v53, 4294901760
    %v1216 = vsub.f32 %v53, %v1215
    %v1217 = vand.u32 %v1216, 4294901760
    %v1218 = vsub.f32 %v1216, %v1217
    %v1219 = vand.u32 %v1218, 4294901760
    %1220 = vmatprep.subr.mxu0 %v1219
    %v1221 = vand.u32 %v52, 4294901760
    %v1222 = vsub.f32 %v52, %v1221
    %v1223 = vand.u32 %v1222, 4294901760
    %v1224 = vsub.f32 %v1222, %v1223
    %v1225 = vand.u32 %v1224, 4294901760
    %1226 = vmatpush1.xpose.msra.mxu0 %v1225
    %v1227 = vand.u32 %v60, 4294901760
    %v1228 = vsub.f32 %v60, %v1227
    %v1229 = vand.u32 %v1228, 4294901760
    %v1230 = vsub.f32 %v1228, %v1229
    %v1231 = vand.u32 %v1230, 4294901760
    %1232 = vmatprep.subr.mxu0 %v1231
    %v1233 = vand.u32 %v59, 4294901760
    %v1234 = vsub.f32 %v59, %v1233
    %v1235 = vand.u32 %v1234, 4294901760
    %v1236 = vsub.f32 %v1234, %v1235
    %v1237 = vand.u32 %v1236, 4294901760
    %1238 = vmatpush1.xpose.msra.mxu0 %v1237
    %v1239 = vand.u32 %v67, 4294901760
    %v1240 = vsub.f32 %v67, %v1239
    %v1241 = vand.u32 %v1240, 4294901760
    %v1242 = vsub.f32 %v1240, %v1241
    %v1243 = vand.u32 %v1242, 4294901760
    %1244 = vmatprep.subr.mxu0 %v1243
    %v1245 = vand.u32 %v66, 4294901760
    %v1246 = vsub.f32 %v66, %v1245
    %v1247 = vand.u32 %v1246, 4294901760
    %v1248 = vsub.f32 %v1246, %v1247
    %v1249 = vand.u32 %v1248, 4294901760
    %1250 = vmatpush1.xpose.msra.mxu0 %v1249
    %v1251 = vand.u32 %v74, 4294901760
    %v1252 = vsub.f32 %v74, %v1251
    %v1253 = vand.u32 %v1252, 4294901760
    %v1254 = vsub.f32 %v1252, %v1253
    %v1255 = vand.u32 %v1254, 4294901760
    %1256 = vmatprep.subr.mxu0 %v1255
    %v1257 = vand.u32 %v73, 4294901760
    %v1258 = vsub.f32 %v73, %v1257
    %v1259 = vand.u32 %v1258, 4294901760
    %v1260 = vsub.f32 %v1258, %v1259
    %v1261 = vand.u32 %v1260, 4294901760
    %1262 = vmatpush1.xpose.msra.mxu0 %v1261
    %v1263 = vand.u32 %v81, 4294901760
    %v1264 = vsub.f32 %v81, %v1263
    %v1265 = vand.u32 %v1264, 4294901760
    %v1266 = vsub.f32 %v1264, %v1265
    %v1267 = vand.u32 %v1266, 4294901760
    %1268 = vmatprep.subr.mxu0 %v1267
    %v1269 = vand.u32 %v80, 4294901760
    %v1270 = vsub.f32 %v80, %v1269
    %v1271 = vand.u32 %v1270, 4294901760
    %v1272 = vsub.f32 %v1270, %v1271
    %v1273 = vand.u32 %v1272, 4294901760
    %1274 = vmatpush1.xpose.msra.mxu0 %v1273
    %v1275 = vand.u32 %v88, 4294901760
    %v1276 = vsub.f32 %v88, %v1275
    %v1277 = vand.u32 %v1276, 4294901760
    %v1278 = vsub.f32 %v1276, %v1277
    %v1279 = vand.u32 %v1278, 4294901760
    %1280 = vmatprep.subr.mxu0 %v1279
    %v1281 = vand.u32 %v87, 4294901760
    %v1282 = vsub.f32 %v87, %v1281
    %v1283 = vand.u32 %v1282, 4294901760
    %v1284 = vsub.f32 %v1282, %v1283
    %v1285 = vand.u32 %v1284, 4294901760
    %1286 = vmatpush1.xpose.msra.mxu0 %v1285
    %v1287 = vand.u32 %v95, 4294901760
    %v1288 = vsub.f32 %v95, %v1287
    %v1289 = vand.u32 %v1288, 4294901760
    %v1290 = vsub.f32 %v1288, %v1289
    %v1291 = vand.u32 %v1290, 4294901760
    %1292 = vmatprep.subr.mxu0 %v1291
    %v1293 = vand.u32 %v94, 4294901760
    %v1294 = vsub.f32 %v94, %v1293
    %v1295 = vand.u32 %v1294, 4294901760
    %v1296 = vsub.f32 %v1294, %v1295
    %v1297 = vand.u32 %v1296, 4294901760
    %1298 = vmatpush1.xpose.msra.mxu0 %v1297
    %v1299 = vand.u32 %v102, 4294901760
    %v1300 = vsub.f32 %v102, %v1299
    %v1301 = vand.u32 %v1300, 4294901760
    %v1302 = vsub.f32 %v1300, %v1301
    %v1303 = vand.u32 %v1302, 4294901760
    %1304 = vmatprep.subr.mxu0 %v1303
    %v1305 = vand.u32 %v101, 4294901760
    %v1306 = vsub.f32 %v101, %v1305
    %v1307 = vand.u32 %v1306, 4294901760
    %v1308 = vsub.f32 %v1306, %v1307
    %v1309 = vand.u32 %v1308, 4294901760
    %1310 = vmatpush1.xpose.msra.mxu0 %v1309
    %v1311 = vand.u32 %v109, 4294901760
    %v1312 = vsub.f32 %v109, %v1311
    %v1313 = vand.u32 %v1312, 4294901760
    %v1314 = vsub.f32 %v1312, %v1313
    %v1315 = vand.u32 %v1314, 4294901760
    %1316 = vmatprep.subr.mxu0 %v1315
    %v1317 = vand.u32 %v108, 4294901760
    %v1318 = vsub.f32 %v108, %v1317
    %v1319 = vand.u32 %v1318, 4294901760
    %v1320 = vsub.f32 %v1318, %v1319
    %v1321 = vand.u32 %v1320, 4294901760
    %1322 = vmatpush1.xpose.msra.mxu0 %v1321
    %v1323 = vand.u32 %v116, 4294901760
    %v1324 = vsub.f32 %v116, %v1323
    %v1325 = vand.u32 %v1324, 4294901760
    %v1326 = vsub.f32 %v1324, %v1325
    %v1327 = vand.u32 %v1326, 4294901760
    %1328 = vmatprep.subr.mxu0 %v1327
    %v1329 = vand.u32 %v115, 4294901760
    %v1330 = vsub.f32 %v115, %v1329
    %v1331 = vand.u32 %v1330, 4294901760
    %v1332 = vsub.f32 %v1330, %v1331
    %v1333 = vand.u32 %v1332, 4294901760
    %1334 = vmatpush1.xpose.msra.mxu0 %v1333
    %v1335 = vand.u32 %v123, 4294901760
    %v1336 = vsub.f32 %v123, %v1335
    %v1337 = vand.u32 %v1336, 4294901760
    %v1338 = vsub.f32 %v1336, %v1337
    %v1339 = vand.u32 %v1338, 4294901760
    %1340 = vmatprep.subr.mxu0 %v1339
    %v1341 = vand.u32 %v122, 4294901760
    %v1342 = vsub.f32 %v122, %v1341
    %v1343 = vand.u32 %v1342, 4294901760
    %v1344 = vsub.f32 %v1342, %v1343
    %v1345 = vand.u32 %v1344, 4294901760
    %1346 = vmatpush1.xpose.msra.mxu0 %v1345
    %v1347 = vand.u32 %v130, 4294901760
    %v1348 = vsub.f32 %v130, %v1347
    %v1349 = vand.u32 %v1348, 4294901760
    %v1350 = vsub.f32 %v1348, %v1349
    %v1351 = vand.u32 %v1350, 4294901760
    %1352 = vmatprep.subr.mxu0 %v1351
    %v1353 = vand.u32 %v129, 4294901760
    %v1354 = vsub.f32 %v129, %v1353
    %v1355 = vand.u32 %v1354, 4294901760
    %v1356 = vsub.f32 %v1354, %v1355
    %v1357 = vand.u32 %v1356, 4294901760
    %1358 = vmatpush1.xpose.msra.mxu0 %v1357
    %1359 = vmatprep.subr.mxu0 0.0
    %1360 = vmatpush1.xpose.msra.mxu0 0.0
    %1361 = vmatprep.subr.mxu0 0.0
    %1362 = vmatpush1.xpose.msra.mxu0 0.0
    %1363 = vmatprep.subr.mxu0 0.0
    %1364 = vmatpush1.xpose.msra.mxu0 0.0
    %1365 = vmatprep.subr.mxu0 0.0
    %1366 = vmatpush1.xpose.msra.mxu0 0.0
    %1367 = vmatprep.subr.mxu0 0.0
    %1368 = vmatpush1.xpose.msra.mxu0 0.0
    %1369 = vmatprep.subr.mxu0 0.0
    %1370 = vmatpush1.xpose.msra.mxu0 0.0
    %1371 = vmatprep.subr.mxu0 0.0
    %1372 = vmatpush1.xpose.msra.mxu0 0.0
    %1373 = vmatprep.subr.mxu0 0.0
    %1374 = vmatpush1.xpose.msra.mxu0 0.0
    %1375 = vmatprep.subr.mxu0 0.0
    %1376 = vmatpush1.xpose.msra.mxu0 0.0
    %1377 = vmatprep.subr.mxu0 0.0
    %1378 = vmatpush1.xpose.msra.mxu0 0.0
    %1379 = vmatprep.subr.mxu0 0.0
    %1380 = vmatpush1.xpose.msra.mxu0 0.0
    %1381 = vmatprep.subr.mxu0 0.0
    %1382 = vmatpush1.xpose.msra.mxu0 0.0
    %1383 = vmatprep.subr.mxu0 0.0
    %1384 = vmatpush1.xpose.msra.mxu0 0.0
    %1385 = vmatprep.subr.mxu0 0.0
    %1386 = vmatpush1.xpose.msra.mxu0 0.0
    %1387 = vmatprep.subr.mxu0 0.0
    %1388 = vmatpush1.xpose.msra.mxu0 0.0
    %1389 = vmatprep.subr.mxu0 0.0
    %1390 = vmatpush1.xpose.msra.mxu0 0.0
    %v1391 = vand.u32 %v18, 4294901760
    %1392 = vmatprep.mubr.f32.mxu0 %v1391
    %v1393 = vand.u32 %v17, 4294901760
    %1394 = vmatmul.mubr.f32.gmra.mrb[0].mxu0 %v1393
    %v1395 = vpop.f32.mrb[0].mxu0
    %v1396 = vadd.f32 %v1164, %v1395
    %v1397 = vpop.f32.mrb[0].mxu0
    %1398 = vdwg.mxu0
    %v1399 = vand.u32 %v25, 4294901760
    %v1400 = vsub.f32 %v25, %v1399
    %1401 = vmatprep.subr.mxu0 %v1400
    %v1402 = vand.u32 %v24, 4294901760
    %v1403 = vsub.f32 %v24, %v1402
    %1404 = vmatpush1.xpose.msra.mxu0 %v1403
    %v1405 = vand.u32 %v32, 4294901760
    %v1406 = vsub.f32 %v32, %v1405
    %1407 = vmatprep.subr.mxu0 %v1406
    %v1408 = vand.u32 %v31, 4294901760
    %v1409 = vsub.f32 %v31, %v1408
    %1410 = vmatpush1.xpose.msra.mxu0 %v1409
    %v1411 = vand.u32 %v39, 4294901760
    %v1412 = vsub.f32 %v39, %v1411
    %1413 = vmatprep.subr.mxu0 %v1412
    %v1414 = vand.u32 %v38, 4294901760
    %v1415 = vsub.f32 %v38, %v1414
    %1416 = vmatpush1.xpose.msra.mxu0 %v1415
    %v1417 = vand.u32 %v46, 4294901760
    %v1418 = vsub.f32 %v46, %v1417
    %1419 = vmatprep.subr.mxu0 %v1418
    %v1420 = vand.u32 %v45, 4294901760
    %v1421 = vsub.f32 %v45, %v1420
    %1422 = vmatpush1.xpose.msra.mxu0 %v1421
    %v1423 = vand.u32 %v53, 4294901760
    %v1424 = vsub.f32 %v53, %v1423
    %1425 = vmatprep.subr.mxu0 %v1424
    %v1426 = vand.u32 %v52, 4294901760
    %v1427 = vsub.f32 %v52, %v1426
    %1428 = vmatpush1.xpose.msra.mxu0 %v1427
    %v1429 = vand.u32 %v60, 4294901760
    %v1430 = vsub.f32 %v60, %v1429
    %1431 = vmatprep.subr.mxu0 %v1430
    %v1432 = vand.u32 %v59, 4294901760
    %v1433 = vsub.f32 %v59, %v1432
    %1434 = vmatpush1.xpose.msra.mxu0 %v1433
    %v1435 = vand.u32 %v67, 4294901760
    %v1436 = vsub.f32 %v67, %v1435
    %1437 = vmatprep.subr.mxu0 %v1436
    %v1438 = vand.u32 %v66, 4294901760
    %v1439 = vsub.f32 %v66, %v1438
    %1440 = vmatpush1.xpose.msra.mxu0 %v1439
    %v1441 = vand.u32 %v74, 4294901760
    %v1442 = vsub.f32 %v74, %v1441
    %1443 = vmatprep.subr.mxu0 %v1442
    %v1444 = vand.u32 %v73, 4294901760
    %v1445 = vsub.f32 %v73, %v1444
    %1446 = vmatpush1.xpose.msra.mxu0 %v1445
    %v1447 = vand.u32 %v81, 4294901760
    %v1448 = vsub.f32 %v81, %v1447
    %1449 = vmatprep.subr.mxu0 %v1448
    %v1450 = vand.u32 %v80, 4294901760
    %v1451 = vsub.f32 %v80, %v1450
    %1452 = vmatpush1.xpose.msra.mxu0 %v1451
    %v1453 = vand.u32 %v88, 4294901760
    %v1454 = vsub.f32 %v88, %v1453
    %1455 = vmatprep.subr.mxu0 %v1454
    %v1456 = vand.u32 %v87, 4294901760
    %v1457 = vsub.f32 %v87, %v1456
    %1458 = vmatpush1.xpose.msra.mxu0 %v1457
    %v1459 = vand.u32 %v95, 4294901760
    %v1460 = vsub.f32 %v95, %v1459
    %1461 = vmatprep.subr.mxu0 %v1460
    %v1462 = vand.u32 %v94, 4294901760
    %v1463 = vsub.f32 %v94, %v1462
    %1464 = vmatpush1.xpose.msra.mxu0 %v1463
    %v1465 = vand.u32 %v102, 4294901760
    %v1466 = vsub.f32 %v102, %v1465
    %1467 = vmatprep.subr.mxu0 %v1466
    %v1468 = vand.u32 %v101, 4294901760
    %v1469 = vsub.f32 %v101, %v1468
    %1470 = vmatpush1.xpose.msra.mxu0 %v1469
    %v1471 = vand.u32 %v109, 4294901760
    %v1472 = vsub.f32 %v109, %v1471
    %1473 = vmatprep.subr.mxu0 %v1472
    %v1474 = vand.u32 %v108, 4294901760
    %v1475 = vsub.f32 %v108, %v1474
    %1476 = vmatpush1.xpose.msra.mxu0 %v1475
    %v1477 = vand.u32 %v116, 4294901760
    %v1478 = vsub.f32 %v116, %v1477
    %1479 = vmatprep.subr.mxu0 %v1478
    %v1480 = vand.u32 %v115, 4294901760
    %v1481 = vsub.f32 %v115, %v1480
    %1482 = vmatpush1.xpose.msra.mxu0 %v1481
    %v1483 = vand.u32 %v123, 4294901760
    %v1484 = vsub.f32 %v123, %v1483
    %1485 = vmatprep.subr.mxu0 %v1484
    %v1486 = vand.u32 %v122, 4294901760
    %v1487 = vsub.f32 %v122, %v1486
    %1488 = vmatpush1.xpose.msra.mxu0 %v1487
    %v1489 = vand.u32 %v130, 4294901760
    %v1490 = vsub.f32 %v130, %v1489
    %1491 = vmatprep.subr.mxu0 %v1490
    %v1492 = vand.u32 %v129, 4294901760
    %v1493 = vsub.f32 %v129, %v1492
    %1494 = vmatpush1.xpose.msra.mxu0 %v1493
    %1495 = vmatprep.subr.mxu0 0.0
    %1496 = vmatpush1.xpose.msra.mxu0 0.0
    %1497 = vmatprep.subr.mxu0 0.0
    %1498 = vmatpush1.xpose.msra.mxu0 0.0
    %1499 = vmatprep.subr.mxu0 0.0
    %1500 = vmatpush1.xpose.msra.mxu0 0.0
    %1501 = vmatprep.subr.mxu0 0.0
    %1502 = vmatpush1.xpose.msra.mxu0 0.0
    %1503 = vmatprep.subr.mxu0 0.0
    %1504 = vmatpush1.xpose.msra.mxu0 0.0
    %1505 = vmatprep.subr.mxu0 0.0
    %1506 = vmatpush1.xpose.msra.mxu0 0.0
    %1507 = vmatprep.subr.mxu0 0.0
    %1508 = vmatpush1.xpose.msra.mxu0 0.0
    %1509 = vmatprep.subr.mxu0 0.0
    %1510 = vmatpush1.xpose.msra.mxu0 0.0
    %1511 = vmatprep.subr.mxu0 0.0
    %1512 = vmatpush1.xpose.msra.mxu0 0.0
    %1513 = vmatprep.subr.mxu0 0.0
    %1514 = vmatpush1.xpose.msra.mxu0 0.0
    %1515 = vmatprep.subr.mxu0 0.0
    %1516 = vmatpush1.xpose.msra.mxu0 0.0
    %1517 = vmatprep.subr.mxu0 0.0
    %1518 = vmatpush1.xpose.msra.mxu0 0.0
    %1519 = vmatprep.subr.mxu0 0.0
    %1520 = vmatpush1.xpose.msra.mxu0 0.0
    %1521 = vmatprep.subr.mxu0 0.0
    %1522 = vmatpush1.xpose.msra.mxu0 0.0
    %1523 = vmatprep.subr.mxu0 0.0
    %1524 = vmatpush1.xpose.msra.mxu0 0.0
    %1525 = vmatprep.subr.mxu0 0.0
    %1526 = vmatpush1.xpose.msra.mxu0 0.0
    %v1527 = vand.u32 %v18, 4294901760
    %v1528 = vsub.f32 %v18, %v1527
    %1529 = vmatprep.mubr.f32.mxu0 %v1528
    %v1530 = vand.u32 %v17, 4294901760
    %v1531 = vsub.f32 %v17, %v1530
    %1532 = vmatmul.mubr.f32.gmra.mrb[0].mxu0 %v1531
    %v1533 = vpop.f32.mrb[0].mxu0
    %v1534 = vadd.f32 %v1396, %v1533
    %v1535 = vpop.f32.mrb[0].mxu0
    %1536 = vdwg.mxu0
    %v1537 = vand.u32 %v25, 4294901760
    %1538 = vmatprep.subr.mxu0 %v1537
    %v1539 = vand.u32 %v24, 4294901760
    %1540 = vmatpush1.xpose.msra.mxu0 %v1539
    %v1541 = vand.u32 %v32, 4294901760
    %1542 = vmatprep.subr.mxu0 %v1541
    %v1543 = vand.u32 %v31, 4294901760
    %1544 = vmatpush1.xpose.msra.mxu0 %v1543
    %v1545 = vand.u32 %v39, 4294901760
    %1546 = vmatprep.subr.mxu0 %v1545
    %v1547 = vand.u32 %v38, 4294901760
    %1548 = vmatpush1.xpose.msra.mxu0 %v1547
    %v1549 = vand.u32 %v46, 4294901760
    %1550 = vmatprep.subr.mxu0 %v1549
    %v1551 = vand.u32 %v45, 4294901760
    %1552 = vmatpush1.xpose.msra.mxu0 %v1551
    %v1553 = vand.u32 %v53, 4294901760
    %1554 = vmatprep.subr.mxu0 %v1553
    %v1555 = vand.u32 %v52, 4294901760
    %1556 = vmatpush1.xpose.msra.mxu0 %v1555
    %v1557 = vand.u32 %v60, 4294901760
    %1558 = vmatprep.subr.mxu0 %v1557
    %v1559 = vand.u32 %v59, 4294901760
    %1560 = vmatpush1.xpose.msra.mxu0 %v1559
    %v1561 = vand.u32 %v67, 4294901760
    %1562 = vmatprep.subr.mxu0 %v1561
    %v1563 = vand.u32 %v66, 4294901760
    %1564 = vmatpush1.xpose.msra.mxu0 %v1563
    %v1565 = vand.u32 %v74, 4294901760
    %1566 = vmatprep.subr.mxu0 %v1565
    %v1567 = vand.u32 %v73, 4294901760
    %1568 = vmatpush1.xpose.msra.mxu0 %v1567
    %v1569 = vand.u32 %v81, 4294901760
    %1570 = vmatprep.subr.mxu0 %v1569
    %v1571 = vand.u32 %v80, 4294901760
    %1572 = vmatpush1.xpose.msra.mxu0 %v1571
    %v1573 = vand.u32 %v88, 4294901760
    %1574 = vmatprep.subr.mxu0 %v1573
    %v1575 = vand.u32 %v87, 4294901760
    %1576 = vmatpush1.xpose.msra.mxu0 %v1575
    %v1577 = vand.u32 %v95, 4294901760
    %1578 = vmatprep.subr.mxu0 %v1577
    %v1579 = vand.u32 %v94, 4294901760
    %1580 = vmatpush1.xpose.msra.mxu0 %v1579
    %v1581 = vand.u32 %v102, 4294901760
    %1582 = vmatprep.subr.mxu0 %v1581
    %v1583 = vand.u32 %v101, 4294901760
    %1584 = vmatpush1.xpose.msra.mxu0 %v1583
    %v1585 = vand.u32 %v109, 4294901760
    %1586 = vmatprep.subr.mxu0 %v1585
    %v1587 = vand.u32 %v108, 4294901760
    %1588 = vmatpush1.xpose.msra.mxu0 %v1587
    %v1589 = vand.u32 %v116, 4294901760
    %1590 = vmatprep.subr.mxu0 %v1589
    %v1591 = vand.u32 %v115, 4294901760
    %1592 = vmatpush1.xpose.msra.mxu0 %v1591
    %v1593 = vand.u32 %v123, 4294901760
    %1594 = vmatprep.subr.mxu0 %v1593
    %v1595 = vand.u32 %v122, 4294901760
    %1596 = vmatpush1.xpose.msra.mxu0 %v1595
    %v1597 = vand.u32 %v130, 4294901760
    %1598 = vmatprep.subr.mxu0 %v1597
    %v1599 = vand.u32 %v129, 4294901760
    %1600 = vmatpush1.xpose.msra.mxu0 %v1599
    %1601 = vmatprep.subr.mxu0 0.0
    %1602 = vmatpush1.xpose.msra.mxu0 0.0
    %1603 = vmatprep.subr.mxu0 0.0
    %1604 = vmatpush1.xpose.msra.mxu0 0.0
    %1605 = vmatprep.subr.mxu0 0.0
    %1606 = vmatpush1.xpose.msra.mxu0 0.0
    %1607 = vmatprep.subr.mxu0 0.0
    %1608 = vmatpush1.xpose.msra.mxu0 0.0
    %1609 = vmatprep.subr.mxu0 0.0
    %1610 = vmatpush1.xpose.msra.mxu0 0.0
    %1611 = vmatprep.subr.mxu0 0.0
    %1612 = vmatpush1.xpose.msra.mxu0 0.0
    %1613 = vmatprep.subr.mxu0 0.0
    %1614 = vmatpush1.xpose.msra.mxu0 0.0
    %1615 = vmatprep.subr.mxu0 0.0
    %1616 = vmatpush1.xpose.msra.mxu0 0.0
    %1617 = vmatprep.subr.mxu0 0.0
    %1618 = vmatpush1.xpose.msra.mxu0 0.0
    %1619 = vmatprep.subr.mxu0 0.0
    %1620 = vmatpush1.xpose.msra.mxu0 0.0
    %1621 = vmatprep.subr.mxu0 0.0
    %1622 = vmatpush1.xpose.msra.mxu0 0.0
    %1623 = vmatprep.subr.mxu0 0.0
    %1624 = vmatpush1.xpose.msra.mxu0 0.0
    %1625 = vmatprep.subr.mxu0 0.0
    %1626 = vmatpush1.xpose.msra.mxu0 0.0
    %1627 = vmatprep.subr.mxu0 0.0
    %1628 = vmatpush1.xpose.msra.mxu0 0.0
    %1629 = vmatprep.subr.mxu0 0.0
    %1630 = vmatpush1.xpose.msra.mxu0 0.0
    %1631 = vmatprep.subr.mxu0 0.0
    %1632 = vmatpush1.xpose.msra.mxu0 0.0
    %v1633 = vand.u32 %v18, 4294901760
    %v1634 = vsub.f32 %v18, %v1633
    %v1635 = vand.u32 %v1634, 4294901760
    %1636 = vmatprep.mubr.f32.mxu0 %v1635
    %v1637 = vand.u32 %v17, 4294901760
    %v1638 = vsub.f32 %v17, %v1637
    %v1639 = vand.u32 %v1638, 4294901760
    %1640 = vmatmul.mubr.f32.gmra.mrb[0].mxu0 %v1639
    %v1641 = vpop.f32.mrb[0].mxu0
    %v1642 = vadd.f32 %v1534, %v1641
    %v1643 = vpop.f32.mrb[0].mxu0
    %1644 = vdwg.mxu0
    %v1645 = vand.u32 %v25, 4294901760
    %v1646 = vsub.f32 %v25, %v1645
    %v1647 = vand.u32 %v1646, 4294901760
    %1648 = vmatprep.subr.mxu0 %v1647
    %v1649 = vand.u32 %v24, 4294901760
    %v1650 = vsub.f32 %v24, %v1649
    %v1651 = vand.u32 %v1650, 4294901760
    %1652 = vmatpush1.xpose.msra.mxu0 %v1651
    %v1653 = vand.u32 %v32, 4294901760
    %v1654 = vsub.f32 %v32, %v1653
    %v1655 = vand.u32 %v1654, 4294901760
    %1656 = vmatprep.subr.mxu0 %v1655
    %v1657 = vand.u32 %v31, 4294901760
    %v1658 = vsub.f32 %v31, %v1657
    %v1659 = vand.u32 %v1658, 4294901760
    %1660 = vmatpush1.xpose.msra.mxu0 %v1659
    %v1661 = vand.u32 %v39, 4294901760
    %v1662 = vsub.f32 %v39, %v1661
    %v1663 = vand.u32 %v1662, 4294901760
    %1664 = vmatprep.subr.mxu0 %v1663
    %v1665 = vand.u32 %v38, 4294901760
    %v1666 = vsub.f32 %v38, %v1665
    %v1667 = vand.u32 %v1666, 4294901760
    %1668 = vmatpush1.xpose.msra.mxu0 %v1667
    %v1669 = vand.u32 %v46, 4294901760
    %v1670 = vsub.f32 %v46, %v1669
    %v1671 = vand.u32 %v1670, 4294901760
    %1672 = vmatprep.subr.mxu0 %v1671
    %v1673 = vand.u32 %v45, 4294901760
    %v1674 = vsub.f32 %v45, %v1673
    %v1675 = vand.u32 %v1674, 4294901760
    %1676 = vmatpush1.xpose.msra.mxu0 %v1675
    %v1677 = vand.u32 %v53, 4294901760
    %v1678 = vsub.f32 %v53, %v1677
    %v1679 = vand.u32 %v1678, 4294901760
    %1680 = vmatprep.subr.mxu0 %v1679
    %v1681 = vand.u32 %v52, 4294901760
    %v1682 = vsub.f32 %v52, %v1681
    %v1683 = vand.u32 %v1682, 4294901760
    %1684 = vmatpush1.xpose.msra.mxu0 %v1683
    %v1685 = vand.u32 %v60, 4294901760
    %v1686 = vsub.f32 %v60, %v1685
    %v1687 = vand.u32 %v1686, 4294901760
    %1688 = vmatprep.subr.mxu0 %v1687
    %v1689 = vand.u32 %v59, 4294901760
    %v1690 = vsub.f32 %v59, %v1689
    %v1691 = vand.u32 %v1690, 4294901760
    %1692 = vmatpush1.xpose.msra.mxu0 %v1691
    %v1693 = vand.u32 %v67, 4294901760
    %v1694 = vsub.f32 %v67, %v1693
    %v1695 = vand.u32 %v1694, 4294901760
    %1696 = vmatprep.subr.mxu0 %v1695
    %v1697 = vand.u32 %v66, 4294901760
    %v1698 = vsub.f32 %v66, %v1697
    %v1699 = vand.u32 %v1698, 4294901760
    %1700 = vmatpush1.xpose.msra.mxu0 %v1699
    %v1701 = vand.u32 %v74, 4294901760
    %v1702 = vsub.f32 %v74, %v1701
    %v1703 = vand.u32 %v1702, 4294901760
    %1704 = vmatprep.subr.mxu0 %v1703
    %v1705 = vand.u32 %v73, 4294901760
    %v1706 = vsub.f32 %v73, %v1705
    %v1707 = vand.u32 %v1706, 4294901760
    %1708 = vmatpush1.xpose.msra.mxu0 %v1707
    %v1709 = vand.u32 %v81, 4294901760
    %v1710 = vsub.f32 %v81, %v1709
    %v1711 = vand.u32 %v1710, 4294901760
    %1712 = vmatprep.subr.mxu0 %v1711
    %v1713 = vand.u32 %v80, 4294901760
    %v1714 = vsub.f32 %v80, %v1713
    %v1715 = vand.u32 %v1714, 4294901760
    %1716 = vmatpush1.xpose.msra.mxu0 %v1715
    %v1717 = vand.u32 %v88, 4294901760
    %v1718 = vsub.f32 %v88, %v1717
    %v1719 = vand.u32 %v1718, 4294901760
    %1720 = vmatprep.subr.mxu0 %v1719
    %v1721 = vand.u32 %v87, 4294901760
    %v1722 = vsub.f32 %v87, %v1721
    %v1723 = vand.u32 %v1722, 4294901760
    %1724 = vmatpush1.xpose.msra.mxu0 %v1723
    %v1725 = vand.u32 %v95, 4294901760
    %v1726 = vsub.f32 %v95, %v1725
    %v1727 = vand.u32 %v1726, 4294901760
    %1728 = vmatprep.subr.mxu0 %v1727
    %v1729 = vand.u32 %v94, 4294901760
    %v1730 = vsub.f32 %v94, %v1729
    %v1731 = vand.u32 %v1730, 4294901760
    %1732 = vmatpush1.xpose.msra.mxu0 %v1731
    %v1733 = vand.u32 %v102, 4294901760
    %v1734 = vsub.f32 %v102, %v1733
    %v1735 = vand.u32 %v1734, 4294901760
    %1736 = vmatprep.subr.mxu0 %v1735
    %v1737 = vand.u32 %v101, 4294901760
    %v1738 = vsub.f32 %v101, %v1737
    %v1739 = vand.u32 %v1738, 4294901760
    %1740 = vmatpush1.xpose.msra.mxu0 %v1739
    %v1741 = vand.u32 %v109, 4294901760
    %v1742 = vsub.f32 %v109, %v1741
    %v1743 = vand.u32 %v1742, 4294901760
    %1744 = vmatprep.subr.mxu0 %v1743
    %v1745 = vand.u32 %v108, 4294901760
    %v1746 = vsub.f32 %v108, %v1745
    %v1747 = vand.u32 %v1746, 4294901760
    %1748 = vmatpush1.xpose.msra.mxu0 %v1747
    %v1749 = vand.u32 %v116, 4294901760
    %v1750 = vsub.f32 %v116, %v1749
    %v1751 = vand.u32 %v1750, 4294901760
    %1752 = vmatprep.subr.mxu0 %v1751
    %v1753 = vand.u32 %v115, 4294901760
    %v1754 = vsub.f32 %v115, %v1753
    %v1755 = vand.u32 %v1754, 4294901760
    %1756 = vmatpush1.xpose.msra.mxu0 %v1755
    %v1757 = vand.u32 %v123, 4294901760
    %v1758 = vsub.f32 %v123, %v1757
    %v1759 = vand.u32 %v1758, 4294901760
    %1760 = vmatprep.subr.mxu0 %v1759
    %v1761 = vand.u32 %v122, 4294901760
    %v1762 = vsub.f32 %v122, %v1761
    %v1763 = vand.u32 %v1762, 4294901760
    %1764 = vmatpush1.xpose.msra.mxu0 %v1763
    %v1765 = vand.u32 %v130, 4294901760
    %v1766 = vsub.f32 %v130, %v1765
    %v1767 = vand.u32 %v1766, 4294901760
    %1768 = vmatprep.subr.mxu0 %v1767
    %v1769 = vand.u32 %v129, 4294901760
    %v1770 = vsub.f32 %v129, %v1769
    %v1771 = vand.u32 %v1770, 4294901760
    %1772 = vmatpush1.xpose.msra.mxu0 %v1771
    %1773 = vmatprep.subr.mxu0 0.0
    %1774 = vmatpush1.xpose.msra.mxu0 0.0
    %1775 = vmatprep.subr.mxu0 0.0
    %1776 = vmatpush1.xpose.msra.mxu0 0.0
    %1777 = vmatprep.subr.mxu0 0.0
    %1778 = vmatpush1.xpose.msra.mxu0 0.0
    %1779 = vmatprep.subr.mxu0 0.0
    %1780 = vmatpush1.xpose.msra.mxu0 0.0
    %1781 = vmatprep.subr.mxu0 0.0
    %1782 = vmatpush1.xpose.msra.mxu0 0.0
    %1783 = vmatprep.subr.mxu0 0.0
    %1784 = vmatpush1.xpose.msra.mxu0 0.0
    %1785 = vmatprep.subr.mxu0 0.0
    %1786 = vmatpush1.xpose.msra.mxu0 0.0
    %1787 = vmatprep.subr.mxu0 0.0
    %1788 = vmatpush1.xpose.msra.mxu0 0.0
    %1789 = vmatprep.subr.mxu0 0.0
    %1790 = vmatpush1.xpose.msra.mxu0 0.0
    %1791 = vmatprep.subr.mxu0 0.0
    %1792 = vmatpush1.xpose.msra.mxu0 0.0
    %1793 = vmatprep.subr.mxu0 0.0
    %1794 = vmatpush1.xpose.msra.mxu0 0.0
    %1795 = vmatprep.subr.mxu0 0.0
    %1796 = vmatpush1.xpose.msra.mxu0 0.0
    %1797 = vmatprep.subr.mxu0 0.0
    %1798 = vmatpush1.xpose.msra.mxu0 0.0
    %1799 = vmatprep.subr.mxu0 0.0
    %1800 = vmatpush1.xpose.msra.mxu0 0.0
    %1801 = vmatprep.subr.mxu0 0.0
    %1802 = vmatpush1.xpose.msra.mxu0 0.0
    %1803 = vmatprep.subr.mxu0 0.0
    %1804 = vmatpush1.xpose.msra.mxu0 0.0
    %v1805 = vand.u32 %v18, 4294901760
    %1806 = vmatprep.mubr.f32.mxu0 %v1805
    %v1807 = vand.u32 %v17, 4294901760
    %1808 = vmatmul.mubr.f32.gmra.mrb[0].mxu0 %v1807
    %v1809 = vpop.f32.mrb[0].mxu0
    %v1810 = vadd.f32 %v1642, %v1809
    %v1811 = vpop.f32.mrb[0].mxu0
    %1812 = vdwg.mxu0
    %v1813 = vand.u32 %v25, 4294901760
    %1814 = vmatprep.subr.mxu0 %v1813
    %v1815 = vand.u32 %v24, 4294901760
    %1816 = vmatpush1.xpose.msra.mxu0 %v1815
    %v1817 = vand.u32 %v32, 4294901760
    %1818 = vmatprep.subr.mxu0 %v1817
    %v1819 = vand.u32 %v31, 4294901760
    %1820 = vmatpush1.xpose.msra.mxu0 %v1819
    %v1821 = vand.u32 %v39, 4294901760
    %1822 = vmatprep.subr.mxu0 %v1821
    %v1823 = vand.u32 %v38, 4294901760
    %1824 = vmatpush1.xpose.msra.mxu0 %v1823
    %v1825 = vand.u32 %v46, 4294901760
    %1826 = vmatprep.subr.mxu0 %v1825
    %v1827 = vand.u32 %v45, 4294901760
    %1828 = vmatpush1.xpose.msra.mxu0 %v1827
    %v1829 = vand.u32 %v53, 4294901760
    %1830 = vmatprep.subr.mxu0 %v1829
    %v1831 = vand.u32 %v52, 4294901760
    %1832 = vmatpush1.xpose.msra.mxu0 %v1831
    %v1833 = vand.u32 %v60, 4294901760
    %1834 = vmatprep.subr.mxu0 %v1833
    %v1835 = vand.u32 %v59, 4294901760
    %1836 = vmatpush1.xpose.msra.mxu0 %v1835
    %v1837 = vand.u32 %v67, 4294901760
    %1838 = vmatprep.subr.mxu0 %v1837
    %v1839 = vand.u32 %v66, 4294901760
    %1840 = vmatpush1.xpose.msra.mxu0 %v1839
    %v1841 = vand.u32 %v74, 4294901760
    %1842 = vmatprep.subr.mxu0 %v1841
    %v1843 = vand.u32 %v73, 4294901760
    %1844 = vmatpush1.xpose.msra.mxu0 %v1843
    %v1845 = vand.u32 %v81, 4294901760
    %1846 = vmatprep.subr.mxu0 %v1845
    %v1847 = vand.u32 %v80, 4294901760
    %1848 = vmatpush1.xpose.msra.mxu0 %v1847
    %v1849 = vand.u32 %v88, 4294901760
    %1850 = vmatprep.subr.mxu0 %v1849
    %v1851 = vand.u32 %v87, 4294901760
    %1852 = vmatpush1.xpose.msra.mxu0 %v1851
    %v1853 = vand.u32 %v95, 4294901760
    %1854 = vmatprep.subr.mxu0 %v1853
    %v1855 = vand.u32 %v94, 4294901760
    %1856 = vmatpush1.xpose.msra.mxu0 %v1855
    %v1857 = vand.u32 %v102, 4294901760
    %1858 = vmatprep.subr.mxu0 %v1857
    %v1859 = vand.u32 %v101, 4294901760
    %1860 = vmatpush1.xpose.msra.mxu0 %v1859
    %v1861 = vand.u32 %v109, 4294901760
    %1862 = vmatprep.subr.mxu0 %v1861
    %v1863 = vand.u32 %v108, 4294901760
    %1864 = vmatpush1.xpose.msra.mxu0 %v1863
    %v1865 = vand.u32 %v116, 4294901760
    %1866 = vmatprep.subr.mxu0 %v1865
    %v1867 = vand.u32 %v115, 4294901760
    %1868 = vmatpush1.xpose.msra.mxu0 %v1867
    %v1869 = vand.u32 %v123, 4294901760
    %1870 = vmatprep.subr.mxu0 %v1869
    %v1871 = vand.u32 %v122, 4294901760
    %1872 = vmatpush1.xpose.msra.mxu0 %v1871
    %v1873 = vand.u32 %v130, 4294901760
    %1874 = vmatprep.subr.mxu0 %v1873
    %v1875 = vand.u32 %v129, 4294901760
    %1876 = vmatpush1.xpose.msra.mxu0 %v1875
    %1877 = vmatprep.subr.mxu0 0.0
    %1878 = vmatpush1.xpose.msra.mxu0 0.0
    %1879 = vmatprep.subr.mxu0 0.0
    %1880 = vmatpush1.xpose.msra.mxu0 0.0
    %1881 = vmatprep.subr.mxu0 0.0
    %1882 = vmatpush1.xpose.msra.mxu0 0.0
    %1883 = vmatprep.subr.mxu0 0.0
    %1884 = vmatpush1.xpose.msra.mxu0 0.0
    %1885 = vmatprep.subr.mxu0 0.0
    %1886 = vmatpush1.xpose.msra.mxu0 0.0
    %1887 = vmatprep.subr.mxu0 0.0
    %1888 = vmatpush1.xpose.msra.mxu0 0.0
    %1889 = vmatprep.subr.mxu0 0.0
    %1890 = vmatpush1.xpose.msra.mxu0 0.0
    %1891 = vmatprep.subr.mxu0 0.0
    %1892 = vmatpush1.xpose.msra.mxu0 0.0
    %1893 = vmatprep.subr.mxu0 0.0
    %1894 = vmatpush1.xpose.msra.mxu0 0.0
    %1895 = vmatprep.subr.mxu0 0.0
    %1896 = vmatpush1.xpose.msra.mxu0 0.0
    %1897 = vmatprep.subr.mxu0 0.0
    %1898 = vmatpush1.xpose.msra.mxu0 0.0
    %1899 = vmatprep.subr.mxu0 0.0
    %1900 = vmatpush1.xpose.msra.mxu0 0.0
    %1901 = vmatprep.subr.mxu0 0.0
    %1902 = vmatpush1.xpose.msra.mxu0 0.0
    %1903 = vmatprep.subr.mxu0 0.0
    %1904 = vmatpush1.xpose.msra.mxu0 0.0
    %1905 = vmatprep.subr.mxu0 0.0
    %1906 = vmatpush1.xpose.msra.mxu0 0.0
    %1907 = vmatprep.subr.mxu0 0.0
    %1908 = vmatpush1.xpose.msra.mxu0 0.0
    %v1909 = vand.u32 %v18, 4294901760
    %1910 = vmatprep.mubr.f32.mxu0 %v1909
    %v1911 = vand.u32 %v17, 4294901760
    %1912 = vmatmul.mubr.f32.gmra.mrb[0].mxu0 %v1911
    %v1913 = vpop.f32.mrb[0].mxu0
    %v1914 = vadd.f32 %v1810, %v1913
    %v1915 = vpop.f32.mrb[0].mxu0
    %1916 = vdwg.mxu0
    %v1917 = vand.u32 %v27, 4294901760
    %1918 = vmatprep.subr.mxu0 %v1917
    %v1919 = vand.u32 %v26, 4294901760
    %1920 = vmatpush1.xpose.msra.mxu0 %v1919
    %v1921 = vand.u32 %v34, 4294901760
    %1922 = vmatprep.subr.mxu0 %v1921
    %v1923 = vand.u32 %v33, 4294901760
    %1924 = vmatpush1.xpose.msra.mxu0 %v1923
    %v1925 = vand.u32 %v41, 4294901760
    %1926 = vmatprep.subr.mxu0 %v1925
    %v1927 = vand.u32 %v40, 4294901760
    %1928 = vmatpush1.xpose.msra.mxu0 %v1927
    %v1929 = vand.u32 %v48, 4294901760
    %1930 = vmatprep.subr.mxu0 %v1929
    %v1931 = vand.u32 %v47, 4294901760
    %1932 = vmatpush1.xpose.msra.mxu0 %v1931
    %v1933 = vand.u32 %v55, 4294901760
    %1934 = vmatprep.subr.mxu0 %v1933
    %v1935 = vand.u32 %v54, 4294901760
    %1936 = vmatpush1.xpose.msra.mxu0 %v1935
    %v1937 = vand.u32 %v62, 4294901760
    %1938 = vmatprep.subr.mxu0 %v1937
    %v1939 = vand.u32 %v61, 4294901760
    %1940 = vmatpush1.xpose.msra.mxu0 %v1939
    %v1941 = vand.u32 %v69, 4294901760
    %1942 = vmatprep.subr.mxu0 %v1941
    %v1943 = vand.u32 %v68, 4294901760
    %1944 = vmatpush1.xpose.msra.mxu0 %v1943
    %v1945 = vand.u32 %v76, 4294901760
    %1946 = vmatprep.subr.mxu0 %v1945
    %v1947 = vand.u32 %v75, 4294901760
    %1948 = vmatpush1.xpose.msra.mxu0 %v1947
    %v1949 = vand.u32 %v83, 4294901760
    %1950 = vmatprep.subr.mxu0 %v1949
    %v1951 = vand.u32 %v82, 4294901760
    %1952 = vmatpush1.xpose.msra.mxu0 %v1951
    %v1953 = vand.u32 %v90, 4294901760
    %1954 = vmatprep.subr.mxu0 %v1953
    %v1955 = vand.u32 %v89, 4294901760
    %1956 = vmatpush1.xpose.msra.mxu0 %v1955
    %v1957 = vand.u32 %v97, 4294901760
    %1958 = vmatprep.subr.mxu0 %v1957
    %v1959 = vand.u32 %v96, 4294901760
    %1960 = vmatpush1.xpose.msra.mxu0 %v1959
    %v1961 = vand.u32 %v104, 4294901760
    %1962 = vmatprep.subr.mxu0 %v1961
    %v1963 = vand.u32 %v103, 4294901760
    %1964 = vmatpush1.xpose.msra.mxu0 %v1963
    %v1965 = vand.u32 %v111, 4294901760
    %1966 = vmatprep.subr.mxu0 %v1965
    %v1967 = vand.u32 %v110, 4294901760
    %1968 = vmatpush1.xpose.msra.mxu0 %v1967
    %v1969 = vand.u32 %v118, 4294901760
    %1970 = vmatprep.subr.mxu0 %v1969
    %v1971 = vand.u32 %v117, 4294901760
    %1972 = vmatpush1.xpose.msra.mxu0 %v1971
    %v1973 = vand.u32 %v125, 4294901760
    %1974 = vmatprep.subr.mxu0 %v1973
    %v1975 = vand.u32 %v124, 4294901760
    %1976 = vmatpush1.xpose.msra.mxu0 %v1975
    %v1977 = vand.u32 %v132, 4294901760
    %1978 = vmatprep.subr.mxu0 %v1977
    %v1979 = vand.u32 %v131, 4294901760
    %1980 = vmatpush1.xpose.msra.mxu0 %v1979
    %1981 = vmatprep.subr.mxu0 0.0
    %1982 = vmatpush1.xpose.msra.mxu0 0.0
    %1983 = vmatprep.subr.mxu0 0.0
    %1984 = vmatpush1.xpose.msra.mxu0 0.0
    %1985 = vmatprep.subr.mxu0 0.0
    %1986 = vmatpush1.xpose.msra.mxu0 0.0
    %1987 = vmatprep.subr.mxu0 0.0
    %1988 = vmatpush1.xpose.msra.mxu0 0.0
    %1989 = vmatprep.subr.mxu0 0.0
    %1990 = vmatpush1.xpose.msra.mxu0 0.0
    %1991 = vmatprep.subr.mxu0 0.0
    %1992 = vmatpush1.xpose.msra.mxu0 0.0
    %1993 = vmatprep.subr.mxu0 0.0
    %1994 = vmatpush1.xpose.msra.mxu0 0.0
    %1995 = vmatprep.subr.mxu0 0.0
    %1996 = vmatpush1.xpose.msra.mxu0 0.0
    %1997 = vmatprep.subr.mxu0 0.0
    %1998 = vmatpush1.xpose.msra.mxu0 0.0
    %1999 = vmatprep.subr.mxu0 0.0
    %2000 = vmatpush1.xpose.msra.mxu0 0.0
    %2001 = vmatprep.subr.mxu0 0.0
    %2002 = vmatpush1.xpose.msra.mxu0 0.0
    %2003 = vmatprep.subr.mxu0 0.0
    %2004 = vmatpush1.xpose.msra.mxu0 0.0
    %2005 = vmatprep.subr.mxu0 0.0
    %2006 = vmatpush1.xpose.msra.mxu0 0.0
    %2007 = vmatprep.subr.mxu0 0.0
    %2008 = vmatpush1.xpose.msra.mxu0 0.0
    %2009 = vmatprep.subr.mxu0 0.0
    %2010 = vmatpush1.xpose.msra.mxu0 0.0
    %2011 = vmatprep.subr.mxu0 0.0
    %2012 = vmatpush1.xpose.msra.mxu0 0.0
    %v2013 = vand.u32 %v20, 4294901760
    %v2014 = vsub.f32 %v20, %v2013
    %v2015 = vand.u32 %v2014, 4294901760
    %v2016 = vsub.f32 %v2014, %v2015
    %v2017 = vand.u32 %v2016, 4294901760
    %2018 = vmatprep.mubr.f32.mxu0 %v2017
    %v2019 = vand.u32 %v19, 4294901760
    %v2020 = vsub.f32 %v19, %v2019
    %v2021 = vand.u32 %v2020, 4294901760
    %v2022 = vsub.f32 %v2020, %v2021
    %v2023 = vand.u32 %v2022, 4294901760
    %2024 = vmatmul.mubr.f32.gmra.mrb[0].mxu0 %v2023
    %v2025 = vpop.f32.mrb[0].mxu0
    %v2026 = vadd.f32 %v1914, %v2025
    %v2027 = vpop.f32.mrb[0].mxu0
    %2028 = vdwg.mxu0
    %v2029 = vand.u32 %v27, 4294901760
    %v2030 = vsub.f32 %v27, %v2029
    %v2031 = vand.u32 %v2030, 4294901760
    %v2032 = vsub.f32 %v2030, %v2031
    %v2033 = vand.u32 %v2032, 4294901760
    %2034 = vmatprep.subr.mxu0 %v2033
    %v2035 = vand.u32 %v26, 4294901760
    %v2036 = vsub.f32 %v26, %v2035
    %v2037 = vand.u32 %v2036, 4294901760
    %v2038 = vsub.f32 %v2036, %v2037
    %v2039 = vand.u32 %v2038, 4294901760
    %2040 = vmatpush1.xpose.msra.mxu0 %v2039
    %v2041 = vand.u32 %v34, 4294901760
    %v2042 = vsub.f32 %v34, %v2041
    %v2043 = vand.u32 %v2042, 4294901760
    %v2044 = vsub.f32 %v2042, %v2043
    %v2045 = vand.u32 %v2044, 4294901760
    %2046 = vmatprep.subr.mxu0 %v2045
    %v2047 = vand.u32 %v33, 4294901760
    %v2048 = vsub.f32 %v33, %v2047
    %v2049 = vand.u32 %v2048, 4294901760
    %v2050 = vsub.f32 %v2048, %v2049
    %v2051 = vand.u32 %v2050, 4294901760
    %2052 = vmatpush1.xpose.msra.mxu0 %v2051
    %v2053 = vand.u32 %v41, 4294901760
    %v2054 = vsub.f32 %v41, %v2053
    %v2055 = vand.u32 %v2054, 4294901760
    %v2056 = vsub.f32 %v2054, %v2055
    %v2057 = vand.u32 %v2056, 4294901760
    %2058 = vmatprep.subr.mxu0 %v2057
    %v2059 = vand.u32 %v40, 4294901760
    %v2060 = vsub.f32 %v40, %v2059
    %v2061 = vand.u32 %v2060, 4294901760
    %v2062 = vsub.f32 %v2060, %v2061
    %v2063 = vand.u32 %v2062, 4294901760
    %2064 = vmatpush1.xpose.msra.mxu0 %v2063
    %v2065 = vand.u32 %v48, 4294901760
    %v2066 = vsub.f32 %v48, %v2065
    %v2067 = vand.u32 %v2066, 4294901760
    %v2068 = vsub.f32 %v2066, %v2067
    %v2069 = vand.u32 %v2068, 4294901760
    %2070 = vmatprep.subr.mxu0 %v2069
    %v2071 = vand.u32 %v47, 4294901760
    %v2072 = vsub.f32 %v47, %v2071
    %v2073 = vand.u32 %v2072, 4294901760
    %v2074 = vsub.f32 %v2072, %v2073
    %v2075 = vand.u32 %v2074, 4294901760
    %2076 = vmatpush1.xpose.msra.mxu0 %v2075
    %v2077 = vand.u32 %v55, 4294901760
    %v2078 = vsub.f32 %v55, %v2077
    %v2079 = vand.u32 %v2078, 4294901760
    %v2080 = vsub.f32 %v2078, %v2079
    %v2081 = vand.u32 %v2080, 4294901760
    %2082 = vmatprep.subr.mxu0 %v2081
    %v2083 = vand.u32 %v54, 4294901760
    %v2084 = vsub.f32 %v54, %v2083
    %v2085 = vand.u32 %v2084, 4294901760
    %v2086 = vsub.f32 %v2084, %v2085
    %v2087 = vand.u32 %v2086, 4294901760
    %2088 = vmatpush1.xpose.msra.mxu0 %v2087
    %v2089 = vand.u32 %v62, 4294901760
    %v2090 = vsub.f32 %v62, %v2089
    %v2091 = vand.u32 %v2090, 4294901760
    %v2092 = vsub.f32 %v2090, %v2091
    %v2093 = vand.u32 %v2092, 4294901760
    %2094 = vmatprep.subr.mxu0 %v2093
    %v2095 = vand.u32 %v61, 4294901760
    %v2096 = vsub.f32 %v61, %v2095
    %v2097 = vand.u32 %v2096, 4294901760
    %v2098 = vsub.f32 %v2096, %v2097
    %v2099 = vand.u32 %v2098, 4294901760
    %2100 = vmatpush1.xpose.msra.mxu0 %v2099
    %v2101 = vand.u32 %v69, 4294901760
    %v2102 = vsub.f32 %v69, %v2101
    %v2103 = vand.u32 %v2102, 4294901760
    %v2104 = vsub.f32 %v2102, %v2103
    %v2105 = vand.u32 %v2104, 4294901760
    %2106 = vmatprep.subr.mxu0 %v2105
    %v2107 = vand.u32 %v68, 4294901760
    %v2108 = vsub.f32 %v68, %v2107
    %v2109 = vand.u32 %v2108, 4294901760
    %v2110 = vsub.f32 %v2108, %v2109
    %v2111 = vand.u32 %v2110, 4294901760
    %2112 = vmatpush1.xpose.msra.mxu0 %v2111
    %v2113 = vand.u32 %v76, 4294901760
    %v2114 = vsub.f32 %v76, %v2113
    %v2115 = vand.u32 %v2114, 4294901760
    %v2116 = vsub.f32 %v2114, %v2115
    %v2117 = vand.u32 %v2116, 4294901760
    %2118 = vmatprep.subr.mxu0 %v2117
    %v2119 = vand.u32 %v75, 4294901760
    %v2120 = vsub.f32 %v75, %v2119
    %v2121 = vand.u32 %v2120, 4294901760
    %v2122 = vsub.f32 %v2120, %v2121
    %v2123 = vand.u32 %v2122, 4294901760
    %2124 = vmatpush1.xpose.msra.mxu0 %v2123
    %v2125 = vand.u32 %v83, 4294901760
    %v2126 = vsub.f32 %v83, %v2125
    %v2127 = vand.u32 %v2126, 4294901760
    %v2128 = vsub.f32 %v2126, %v2127
    %v2129 = vand.u32 %v2128, 4294901760
    %2130 = vmatprep.subr.mxu0 %v2129
    %v2131 = vand.u32 %v82, 4294901760
    %v2132 = vsub.f32 %v82, %v2131
    %v2133 = vand.u32 %v2132, 4294901760
    %v2134 = vsub.f32 %v2132, %v2133
    %v2135 = vand.u32 %v2134, 4294901760
    %2136 = vmatpush1.xpose.msra.mxu0 %v2135
    %v2137 = vand.u32 %v90, 4294901760
    %v2138 = vsub.f32 %v90, %v2137
    %v2139 = vand.u32 %v2138, 4294901760
    %v2140 = vsub.f32 %v2138, %v2139
    %v2141 = vand.u32 %v2140, 4294901760
    %2142 = vmatprep.subr.mxu0 %v2141
    %v2143 = vand.u32 %v89, 4294901760
    %v2144 = vsub.f32 %v89, %v2143
    %v2145 = vand.u32 %v2144, 4294901760
    %v2146 = vsub.f32 %v2144, %v2145
    %v2147 = vand.u32 %v2146, 4294901760
    %2148 = vmatpush1.xpose.msra.mxu0 %v2147
    %v2149 = vand.u32 %v97, 4294901760
    %v2150 = vsub.f32 %v97, %v2149
    %v2151 = vand.u32 %v2150, 4294901760
    %v2152 = vsub.f32 %v2150, %v2151
    %v2153 = vand.u32 %v2152, 4294901760
    %2154 = vmatprep.subr.mxu0 %v2153
    %v2155 = vand.u32 %v96, 4294901760
    %v2156 = vsub.f32 %v96, %v2155
    %v2157 = vand.u32 %v2156, 4294901760
    %v2158 = vsub.f32 %v2156, %v2157
    %v2159 = vand.u32 %v2158, 4294901760
    %2160 = vmatpush1.xpose.msra.mxu0 %v2159
    %v2161 = vand.u32 %v104, 4294901760
    %v2162 = vsub.f32 %v104, %v2161
    %v2163 = vand.u32 %v2162, 4294901760
    %v2164 = vsub.f32 %v2162, %v2163
    %v2165 = vand.u32 %v2164, 4294901760
    %2166 = vmatprep.subr.mxu0 %v2165
    %v2167 = vand.u32 %v103, 4294901760
    %v2168 = vsub.f32 %v103, %v2167
    %v2169 = vand.u32 %v2168, 4294901760
    %v2170 = vsub.f32 %v2168, %v2169
    %v2171 = vand.u32 %v2170, 4294901760
    %2172 = vmatpush1.xpose.msra.mxu0 %v2171
    %v2173 = vand.u32 %v111, 4294901760
    %v2174 = vsub.f32 %v111, %v2173
    %v2175 = vand.u32 %v2174, 4294901760
    %v2176 = vsub.f32 %v2174, %v2175
    %v2177 = vand.u32 %v2176, 4294901760
    %2178 = vmatprep.subr.mxu0 %v2177
    %v2179 = vand.u32 %v110, 4294901760
    %v2180 = vsub.f32 %v110, %v2179
    %v2181 = vand.u32 %v2180, 4294901760
    %v2182 = vsub.f32 %v2180, %v2181
    %v2183 = vand.u32 %v2182, 4294901760
    %2184 = vmatpush1.xpose.msra.mxu0 %v2183
    %v2185 = vand.u32 %v118, 4294901760
    %v2186 = vsub.f32 %v118, %v2185
    %v2187 = vand.u32 %v2186, 4294901760
    %v2188 = vsub.f32 %v2186, %v2187
    %v2189 = vand.u32 %v2188, 4294901760
    %2190 = vmatprep.subr.mxu0 %v2189
    %v2191 = vand.u32 %v117, 4294901760
    %v2192 = vsub.f32 %v117, %v2191
    %v2193 = vand.u32 %v2192, 4294901760
    %v2194 = vsub.f32 %v2192, %v2193
    %v2195 = vand.u32 %v2194, 4294901760
    %2196 = vmatpush1.xpose.msra.mxu0 %v2195
    %v2197 = vand.u32 %v125, 4294901760
    %v2198 = vsub.f32 %v125, %v2197
    %v2199 = vand.u32 %v2198, 4294901760
    %v2200 = vsub.f32 %v2198, %v2199
    %v2201 = vand.u32 %v2200, 4294901760
    %2202 = vmatprep.subr.mxu0 %v2201
    %v2203 = vand.u32 %v124, 4294901760
    %v2204 = vsub.f32 %v124, %v2203
    %v2205 = vand.u32 %v2204, 4294901760
    %v2206 = vsub.f32 %v2204, %v2205
    %v2207 = vand.u32 %v2206, 4294901760
    %2208 = vmatpush1.xpose.msra.mxu0 %v2207
    %v2209 = vand.u32 %v132, 4294901760
    %v2210 = vsub.f32 %v132, %v2209
    %v2211 = vand.u32 %v2210, 4294901760
    %v2212 = vsub.f32 %v2210, %v2211
    %v2213 = vand.u32 %v2212, 4294901760
    %2214 = vmatprep.subr.mxu0 %v2213
    %v2215 = vand.u32 %v131, 4294901760
    %v2216 = vsub.f32 %v131, %v2215
    %v2217 = vand.u32 %v2216, 4294901760
    %v2218 = vsub.f32 %v2216, %v2217
    %v2219 = vand.u32 %v2218, 4294901760
    %2220 = vmatpush1.xpose.msra.mxu0 %v2219
    %2221 = vmatprep.subr.mxu0 0.0
    %2222 = vmatpush1.xpose.msra.mxu0 0.0
    %2223 = vmatprep.subr.mxu0 0.0
    %2224 = vmatpush1.xpose.msra.mxu0 0.0
    %2225 = vmatprep.subr.mxu0 0.0
    %2226 = vmatpush1.xpose.msra.mxu0 0.0
    %2227 = vmatprep.subr.mxu0 0.0
    %2228 = vmatpush1.xpose.msra.mxu0 0.0
    %2229 = vmatprep.subr.mxu0 0.0
    %2230 = vmatpush1.xpose.msra.mxu0 0.0
    %2231 = vmatprep.subr.mxu0 0.0
    %2232 = vmatpush1.xpose.msra.mxu0 0.0
    %2233 = vmatprep.subr.mxu0 0.0
    %2234 = vmatpush1.xpose.msra.mxu0 0.0
    %2235 = vmatprep.subr.mxu0 0.0
    %2236 = vmatpush1.xpose.msra.mxu0 0.0
    %2237 = vmatprep.subr.mxu0 0.0
    %2238 = vmatpush1.xpose.msra.mxu0 0.0
    %2239 = vmatprep.subr.mxu0 0.0
    %2240 = vmatpush1.xpose.msra.mxu0 0.0
    %2241 = vmatprep.subr.mxu0 0.0
    %2242 = vmatpush1.xpose.msra.mxu0 0.0
    %2243 = vmatprep.subr.mxu0 0.0
    %2244 = vmatpush1.xpose.msra.mxu0 0.0
    %2245 = vmatprep.subr.mxu0 0.0
    %2246 = vmatpush1.xpose.msra.mxu0 0.0
    %2247 = vmatprep.subr.mxu0 0.0
    %2248 = vmatpush1.xpose.msra.mxu0 0.0
    %2249 = vmatprep.subr.mxu0 0.0
    %2250 = vmatpush1.xpose.msra.mxu0 0.0
    %2251 = vmatprep.subr.mxu0 0.0
    %2252 = vmatpush1.xpose.msra.mxu0 0.0
    %v2253 = vand.u32 %v20, 4294901760
    %2254 = vmatprep.mubr.f32.mxu0 %v2253
    %v2255 = vand.u32 %v19, 4294901760
    %2256 = vmatmul.mubr.f32.gmra.mrb[0].mxu0 %v2255
    %v2257 = vpop.f32.mrb[0].mxu0
    %v2258 = vadd.f32 %v2026, %v2257
    %v2259 = vpop.f32.mrb[0].mxu0
    %2260 = vdwg.mxu0
    %v2261 = vand.u32 %v27, 4294901760
    %v2262 = vsub.f32 %v27, %v2261
    %2263 = vmatprep.subr.mxu0 %v2262
    %v2264 = vand.u32 %v26, 4294901760
    %v2265 = vsub.f32 %v26, %v2264
    %2266 = vmatpush1.xpose.msra.mxu0 %v2265
    %v2267 = vand.u32 %v34, 4294901760
    %v2268 = vsub.f32 %v34, %v2267
    %2269 = vmatprep.subr.mxu0 %v2268
    %v2270 = vand.u32 %v33, 4294901760
    %v2271 = vsub.f32 %v33, %v2270
    %2272 = vmatpush1.xpose.msra.mxu0 %v2271
    %v2273 = vand.u32 %v41, 4294901760
    %v2274 = vsub.f32 %v41, %v2273
    %2275 = vmatprep.subr.mxu0 %v2274
    %v2276 = vand.u32 %v40, 4294901760
    %v2277 = vsub.f32 %v40, %v2276
    %2278 = vmatpush1.xpose.msra.mxu0 %v2277
    %v2279 = vand.u32 %v48, 4294901760
    %v2280 = vsub.f32 %v48, %v2279
    %2281 = vmatprep.subr.mxu0 %v2280
    %v2282 = vand.u32 %v47, 4294901760
    %v2283 = vsub.f32 %v47, %v2282
    %2284 = vmatpush1.xpose.msra.mxu0 %v2283
    %v2285 = vand.u32 %v55, 4294901760
    %v2286 = vsub.f32 %v55, %v2285
    %2287 = vmatprep.subr.mxu0 %v2286
    %v2288 = vand.u32 %v54, 4294901760
    %v2289 = vsub.f32 %v54, %v2288
    %2290 = vmatpush1.xpose.msra.mxu0 %v2289
    %v2291 = vand.u32 %v62, 4294901760
    %v2292 = vsub.f32 %v62, %v2291
    %2293 = vmatprep.subr.mxu0 %v2292
    %v2294 = vand.u32 %v61, 4294901760
    %v2295 = vsub.f32 %v61, %v2294
    %2296 = vmatpush1.xpose.msra.mxu0 %v2295
    %v2297 = vand.u32 %v69, 4294901760
    %v2298 = vsub.f32 %v69, %v2297
    %2299 = vmatprep.subr.mxu0 %v2298
    %v2300 = vand.u32 %v68, 4294901760
    %v2301 = vsub.f32 %v68, %v2300
    %2302 = vmatpush1.xpose.msra.mxu0 %v2301
    %v2303 = vand.u32 %v76, 4294901760
    %v2304 = vsub.f32 %v76, %v2303
    %2305 = vmatprep.subr.mxu0 %v2304
    %v2306 = vand.u32 %v75, 4294901760
    %v2307 = vsub.f32 %v75, %v2306
    %2308 = vmatpush1.xpose.msra.mxu0 %v2307
    %v2309 = vand.u32 %v83, 4294901760
    %v2310 = vsub.f32 %v83, %v2309
    %2311 = vmatprep.subr.mxu0 %v2310
    %v2312 = vand.u32 %v82, 4294901760
    %v2313 = vsub.f32 %v82, %v2312
    %2314 = vmatpush1.xpose.msra.mxu0 %v2313
    %v2315 = vand.u32 %v90, 4294901760
    %v2316 = vsub.f32 %v90, %v2315
    %2317 = vmatprep.subr.mxu0 %v2316
    %v2318 = vand.u32 %v89, 4294901760
    %v2319 = vsub.f32 %v89, %v2318
    %2320 = vmatpush1.xpose.msra.mxu0 %v2319
    %v2321 = vand.u32 %v97, 4294901760
    %v2322 = vsub.f32 %v97, %v2321
    %2323 = vmatprep.subr.mxu0 %v2322
    %v2324 = vand.u32 %v96, 4294901760
    %v2325 = vsub.f32 %v96, %v2324
    %2326 = vmatpush1.xpose.msra.mxu0 %v2325
    %v2327 = vand.u32 %v104, 4294901760
    %v2328 = vsub.f32 %v104, %v2327
    %2329 = vmatprep.subr.mxu0 %v2328
    %v2330 = vand.u32 %v103, 4294901760
    %v2331 = vsub.f32 %v103, %v2330
    %2332 = vmatpush1.xpose.msra.mxu0 %v2331
    %v2333 = vand.u32 %v111, 4294901760
    %v2334 = vsub.f32 %v111, %v2333
    %2335 = vmatprep.subr.mxu0 %v2334
    %v2336 = vand.u32 %v110, 4294901760
    %v2337 = vsub.f32 %v110, %v2336
    %2338 = vmatpush1.xpose.msra.mxu0 %v2337
    %v2339 = vand.u32 %v118, 4294901760
    %v2340 = vsub.f32 %v118, %v2339
    %2341 = vmatprep.subr.mxu0 %v2340
    %v2342 = vand.u32 %v117, 4294901760
    %v2343 = vsub.f32 %v117, %v2342
    %2344 = vmatpush1.xpose.msra.mxu0 %v2343
    %v2345 = vand.u32 %v125, 4294901760
    %v2346 = vsub.f32 %v125, %v2345
    %2347 = vmatprep.subr.mxu0 %v2346
    %v2348 = vand.u32 %v124, 4294901760
    %v2349 = vsub.f32 %v124, %v2348
    %2350 = vmatpush1.xpose.msra.mxu0 %v2349
    %v2351 = vand.u32 %v132, 4294901760
    %v2352 = vsub.f32 %v132, %v2351
    %2353 = vmatprep.subr.mxu0 %v2352
    %v2354 = vand.u32 %v131, 4294901760
    %v2355 = vsub.f32 %v131, %v2354
    %2356 = vmatpush1.xpose.msra.mxu0 %v2355
    %2357 = vmatprep.subr.mxu0 0.0
    %2358 = vmatpush1.xpose.msra.mxu0 0.0
    %2359 = vmatprep.subr.mxu0 0.0
    %2360 = vmatpush1.xpose.msra.mxu0 0.0
    %2361 = vmatprep.subr.mxu0 0.0
    %2362 = vmatpush1.xpose.msra.mxu0 0.0
    %2363 = vmatprep.subr.mxu0 0.0
    %2364 = vmatpush1.xpose.msra.mxu0 0.0
    %2365 = vmatprep.subr.mxu0 0.0
    %2366 = vmatpush1.xpose.msra.mxu0 0.0
    %2367 = vmatprep.subr.mxu0 0.0
    %2368 = vmatpush1.xpose.msra.mxu0 0.0
    %2369 = vmatprep.subr.mxu0 0.0
    %2370 = vmatpush1.xpose.msra.mxu0 0.0
    %2371 = vmatprep.subr.mxu0 0.0
    %2372 = vmatpush1.xpose.msra.mxu0 0.0
    %2373 = vmatprep.subr.mxu0 0.0
    %2374 = vmatpush1.xpose.msra.mxu0 0.0
    %2375 = vmatprep.subr.mxu0 0.0
    %2376 = vmatpush1.xpose.msra.mxu0 0.0
    %2377 = vmatprep.subr.mxu0 0.0
    %2378 = vmatpush1.xpose.msra.mxu0 0.0
    %2379 = vmatprep.subr.mxu0 0.0
    %2380 = vmatpush1.xpose.msra.mxu0 0.0
    %2381 = vmatprep.subr.mxu0 0.0
    %2382 = vmatpush1.xpose.msra.mxu0 0.0
    %2383 = vmatprep.subr.mxu0 0.0
    %2384 = vmatpush1.xpose.msra.mxu0 0.0
    %2385 = vmatprep.subr.mxu0 0.0
    %2386 = vmatpush1.xpose.msra.mxu0 0.0
    %2387 = vmatprep.subr.mxu0 0.0
    %2388 = vmatpush1.xpose.msra.mxu0 0.0
    %v2389 = vand.u32 %v20, 4294901760
    %v2390 = vsub.f32 %v20, %v2389
    %2391 = vmatprep.mubr.f32.mxu0 %v2390
    %v2392 = vand.u32 %v19, 4294901760
    %v2393 = vsub.f32 %v19, %v2392
    %2394 = vmatmul.mubr.f32.gmra.mrb[0].mxu0 %v2393
    %v2395 = vpop.f32.mrb[0].mxu0
    %v2396 = vadd.f32 %v2258, %v2395
    %v2397 = vpop.f32.mrb[0].mxu0
    %2398 = vdwg.mxu0
    %v2399 = vand.u32 %v27, 4294901760
    %2400 = vmatprep.subr.mxu0 %v2399
    %v2401 = vand.u32 %v26, 4294901760
    %2402 = vmatpush1.xpose.msra.mxu0 %v2401
    %v2403 = vand.u32 %v34, 4294901760
    %2404 = vmatprep.subr.mxu0 %v2403
    %v2405 = vand.u32 %v33, 4294901760
    %2406 = vmatpush1.xpose.msra.mxu0 %v2405
    %v2407 = vand.u32 %v41, 4294901760
    %2408 = vmatprep.subr.mxu0 %v2407
    %v2409 = vand.u32 %v40, 4294901760
    %2410 = vmatpush1.xpose.msra.mxu0 %v2409
    %v2411 = vand.u32 %v48, 4294901760
    %2412 = vmatprep.subr.mxu0 %v2411
    %v2413 = vand.u32 %v47, 4294901760
    %2414 = vmatpush1.xpose.msra.mxu0 %v2413
    %v2415 = vand.u32 %v55, 4294901760
    %2416 = vmatprep.subr.mxu0 %v2415
    %v2417 = vand.u32 %v54, 4294901760
    %2418 = vmatpush1.xpose.msra.mxu0 %v2417
    %v2419 = vand.u32 %v62, 4294901760
    %2420 = vmatprep.subr.mxu0 %v2419
    %v2421 = vand.u32 %v61, 4294901760
    %2422 = vmatpush1.xpose.msra.mxu0 %v2421
    %v2423 = vand.u32 %v69, 4294901760
    %2424 = vmatprep.subr.mxu0 %v2423
    %v2425 = vand.u32 %v68, 4294901760
    %2426 = vmatpush1.xpose.msra.mxu0 %v2425
    %v2427 = vand.u32 %v76, 4294901760
    %2428 = vmatprep.subr.mxu0 %v2427
    %v2429 = vand.u32 %v75, 4294901760
    %2430 = vmatpush1.xpose.msra.mxu0 %v2429
    %v2431 = vand.u32 %v83, 4294901760
    %2432 = vmatprep.subr.mxu0 %v2431
    %v2433 = vand.u32 %v82, 4294901760
    %2434 = vmatpush1.xpose.msra.mxu0 %v2433
    %v2435 = vand.u32 %v90, 4294901760
    %2436 = vmatprep.subr.mxu0 %v2435
    %v2437 = vand.u32 %v89, 4294901760
    %2438 = vmatpush1.xpose.msra.mxu0 %v2437
    %v2439 = vand.u32 %v97, 4294901760
    %2440 = vmatprep.subr.mxu0 %v2439
    %v2441 = vand.u32 %v96, 4294901760
    %2442 = vmatpush1.xpose.msra.mxu0 %v2441
    %v2443 = vand.u32 %v104, 4294901760
    %2444 = vmatprep.subr.mxu0 %v2443
    %v2445 = vand.u32 %v103, 4294901760
    %2446 = vmatpush1.xpose.msra.mxu0 %v2445
    %v2447 = vand.u32 %v111, 4294901760
    %2448 = vmatprep.subr.mxu0 %v2447
    %v2449 = vand.u32 %v110, 4294901760
    %2450 = vmatpush1.xpose.msra.mxu0 %v2449
    %v2451 = vand.u32 %v118, 4294901760
    %2452 = vmatprep.subr.mxu0 %v2451
    %v2453 = vand.u32 %v117, 4294901760
    %2454 = vmatpush1.xpose.msra.mxu0 %v2453
    %v2455 = vand.u32 %v125, 4294901760
    %2456 = vmatprep.subr.mxu0 %v2455
    %v2457 = vand.u32 %v124, 4294901760
    %2458 = vmatpush1.xpose.msra.mxu0 %v2457
    %v2459 = vand.u32 %v132, 4294901760
    %2460 = vmatprep.subr.mxu0 %v2459
    %v2461 = vand.u32 %v131, 4294901760
    %2462 = vmatpush1.xpose.msra.mxu0 %v2461
    %2463 = vmatprep.subr.mxu0 0.0
    %2464 = vmatpush1.xpose.msra.mxu0 0.0
    %2465 = vmatprep.subr.mxu0 0.0
    %2466 = vmatpush1.xpose.msra.mxu0 0.0
    %2467 = vmatprep.subr.mxu0 0.0
    %2468 = vmatpush1.xpose.msra.mxu0 0.0
    %2469 = vmatprep.subr.mxu0 0.0
    %2470 = vmatpush1.xpose.msra.mxu0 0.0
    %2471 = vmatprep.subr.mxu0 0.0
    %2472 = vmatpush1.xpose.msra.mxu0 0.0
    %2473 = vmatprep.subr.mxu0 0.0
    %2474 = vmatpush1.xpose.msra.mxu0 0.0
    %2475 = vmatprep.subr.mxu0 0.0
    %2476 = vmatpush1.xpose.msra.mxu0 0.0
    %2477 = vmatprep.subr.mxu0 0.0
    %2478 = vmatpush1.xpose.msra.mxu0 0.0
    %2479 = vmatprep.subr.mxu0 0.0
    %2480 = vmatpush1.xpose.msra.mxu0 0.0
    %2481 = vmatprep.subr.mxu0 0.0
    %2482 = vmatpush1.xpose.msra.mxu0 0.0
    %2483 = vmatprep.subr.mxu0 0.0
    %2484 = vmatpush1.xpose.msra.mxu0 0.0
    %2485 = vmatprep.subr.mxu0 0.0
    %2486 = vmatpush1.xpose.msra.mxu0 0.0
    %2487 = vmatprep.subr.mxu0 0.0
    %2488 = vmatpush1.xpose.msra.mxu0 0.0
    %2489 = vmatprep.subr.mxu0 0.0
    %2490 = vmatpush1.xpose.msra.mxu0 0.0
    %2491 = vmatprep.subr.mxu0 0.0
    %2492 = vmatpush1.xpose.msra.mxu0 0.0
    %2493 = vmatprep.subr.mxu0 0.0
    %2494 = vmatpush1.xpose.msra.mxu0 0.0
    %v2495 = vand.u32 %v20, 4294901760
    %v2496 = vsub.f32 %v20, %v2495
    %v2497 = vand.u32 %v2496, 4294901760
    %2498 = vmatprep.mubr.f32.mxu0 %v2497
    %v2499 = vand.u32 %v19, 4294901760
    %v2500 = vsub.f32 %v19, %v2499
    %v2501 = vand.u32 %v2500, 4294901760
    %2502 = vmatmul.mubr.f32.gmra.mrb[0].mxu0 %v2501
    %v2503 = vpop.f32.mrb[0].mxu0
    %v2504 = vadd.f32 %v2396, %v2503
    %v2505 = vpop.f32.mrb[0].mxu0
    %2506 = vdwg.mxu0
    %v2507 = vand.u32 %v27, 4294901760
    %v2508 = vsub.f32 %v27, %v2507
    %v2509 = vand.u32 %v2508, 4294901760
    %2510 = vmatprep.subr.mxu0 %v2509
    %v2511 = vand.u32 %v26, 4294901760
    %v2512 = vsub.f32 %v26, %v2511
    %v2513 = vand.u32 %v2512, 4294901760
    %2514 = vmatpush1.xpose.msra.mxu0 %v2513
    %v2515 = vand.u32 %v34, 4294901760
    %v2516 = vsub.f32 %v34, %v2515
    %v2517 = vand.u32 %v2516, 4294901760
    %2518 = vmatprep.subr.mxu0 %v2517
    %v2519 = vand.u32 %v33, 4294901760
    %v2520 = vsub.f32 %v33, %v2519
    %v2521 = vand.u32 %v2520, 4294901760
    %2522 = vmatpush1.xpose.msra.mxu0 %v2521
    %v2523 = vand.u32 %v41, 4294901760
    %v2524 = vsub.f32 %v41, %v2523
    %v2525 = vand.u32 %v2524, 4294901760
    %2526 = vmatprep.subr.mxu0 %v2525
    %v2527 = vand.u32 %v40, 4294901760
    %v2528 = vsub.f32 %v40, %v2527
    %v2529 = vand.u32 %v2528, 4294901760
    %2530 = vmatpush1.xpose.msra.mxu0 %v2529
    %v2531 = vand.u32 %v48, 4294901760
    %v2532 = vsub.f32 %v48, %v2531
    %v2533 = vand.u32 %v2532, 4294901760
    %2534 = vmatprep.subr.mxu0 %v2533
    %v2535 = vand.u32 %v47, 4294901760
    %v2536 = vsub.f32 %v47, %v2535
    %v2537 = vand.u32 %v2536, 4294901760
    %2538 = vmatpush1.xpose.msra.mxu0 %v2537
    %v2539 = vand.u32 %v55, 4294901760
    %v2540 = vsub.f32 %v55, %v2539
    %v2541 = vand.u32 %v2540, 4294901760
    %2542 = vmatprep.subr.mxu0 %v2541
    %v2543 = vand.u32 %v54, 4294901760
    %v2544 = vsub.f32 %v54, %v2543
    %v2545 = vand.u32 %v2544, 4294901760
    %2546 = vmatpush1.xpose.msra.mxu0 %v2545
    %v2547 = vand.u32 %v62, 4294901760
    %v2548 = vsub.f32 %v62, %v2547
    %v2549 = vand.u32 %v2548, 4294901760
    %2550 = vmatprep.subr.mxu0 %v2549
    %v2551 = vand.u32 %v61, 4294901760
    %v2552 = vsub.f32 %v61, %v2551
    %v2553 = vand.u32 %v2552, 4294901760
    %2554 = vmatpush1.xpose.msra.mxu0 %v2553
    %v2555 = vand.u32 %v69, 4294901760
    %v2556 = vsub.f32 %v69, %v2555
    %v2557 = vand.u32 %v2556, 4294901760
    %2558 = vmatprep.subr.mxu0 %v2557
    %v2559 = vand.u32 %v68, 4294901760
    %v2560 = vsub.f32 %v68, %v2559
    %v2561 = vand.u32 %v2560, 4294901760
    %2562 = vmatpush1.xpose.msra.mxu0 %v2561
    %v2563 = vand.u32 %v76, 4294901760
    %v2564 = vsub.f32 %v76, %v2563
    %v2565 = vand.u32 %v2564, 4294901760
    %2566 = vmatprep.subr.mxu0 %v2565
    %v2567 = vand.u32 %v75, 4294901760
    %v2568 = vsub.f32 %v75, %v2567
    %v2569 = vand.u32 %v2568, 4294901760
    %2570 = vmatpush1.xpose.msra.mxu0 %v2569
    %v2571 = vand.u32 %v83, 4294901760
    %v2572 = vsub.f32 %v83, %v2571
    %v2573 = vand.u32 %v2572, 4294901760
    %2574 = vmatprep.subr.mxu0 %v2573
    %v2575 = vand.u32 %v82, 4294901760
    %v2576 = vsub.f32 %v82, %v2575
    %v2577 = vand.u32 %v2576, 4294901760
    %2578 = vmatpush1.xpose.msra.mxu0 %v2577
    %v2579 = vand.u32 %v90, 4294901760
    %v2580 = vsub.f32 %v90, %v2579
    %v2581 = vand.u32 %v2580, 4294901760
    %2582 = vmatprep.subr.mxu0 %v2581
    %v2583 = vand.u32 %v89, 4294901760
    %v2584 = vsub.f32 %v89, %v2583
    %v2585 = vand.u32 %v2584, 4294901760
    %2586 = vmatpush1.xpose.msra.mxu0 %v2585
    %v2587 = vand.u32 %v97, 4294901760
    %v2588 = vsub.f32 %v97, %v2587
    %v2589 = vand.u32 %v2588, 4294901760
    %2590 = vmatprep.subr.mxu0 %v2589
    %v2591 = vand.u32 %v96, 4294901760
    %v2592 = vsub.f32 %v96, %v2591
    %v2593 = vand.u32 %v2592, 4294901760
    %2594 = vmatpush1.xpose.msra.mxu0 %v2593
    %v2595 = vand.u32 %v104, 4294901760
    %v2596 = vsub.f32 %v104, %v2595
    %v2597 = vand.u32 %v2596, 4294901760
    %2598 = vmatprep.subr.mxu0 %v2597
    %v2599 = vand.u32 %v103, 4294901760
    %v2600 = vsub.f32 %v103, %v2599
    %v2601 = vand.u32 %v2600, 4294901760
    %2602 = vmatpush1.xpose.msra.mxu0 %v2601
    %v2603 = vand.u32 %v111, 4294901760
    %v2604 = vsub.f32 %v111, %v2603
    %v2605 = vand.u32 %v2604, 4294901760
    %2606 = vmatprep.subr.mxu0 %v2605
    %v2607 = vand.u32 %v110, 4294901760
    %v2608 = vsub.f32 %v110, %v2607
    %v2609 = vand.u32 %v2608, 4294901760
    %2610 = vmatpush1.xpose.msra.mxu0 %v2609
    %v2611 = vand.u32 %v118, 4294901760
    %v2612 = vsub.f32 %v118, %v2611
    %v2613 = vand.u32 %v2612, 4294901760
    %2614 = vmatprep.subr.mxu0 %v2613
    %v2615 = vand.u32 %v117, 4294901760
    %v2616 = vsub.f32 %v117, %v2615
    %v2617 = vand.u32 %v2616, 4294901760
    %2618 = vmatpush1.xpose.msra.mxu0 %v2617
    %v2619 = vand.u32 %v125, 4294901760
    %v2620 = vsub.f32 %v125, %v2619
    %v2621 = vand.u32 %v2620, 4294901760
    %2622 = vmatprep.subr.mxu0 %v2621
    %v2623 = vand.u32 %v124, 4294901760
    %v2624 = vsub.f32 %v124, %v2623
    %v2625 = vand.u32 %v2624, 4294901760
    %2626 = vmatpush1.xpose.msra.mxu0 %v2625
    %v2627 = vand.u32 %v132, 4294901760
    %v2628 = vsub.f32 %v132, %v2627
    %v2629 = vand.u32 %v2628, 4294901760
    %2630 = vmatprep.subr.mxu0 %v2629
    %v2631 = vand.u32 %v131, 4294901760
    %v2632 = vsub.f32 %v131, %v2631
    %v2633 = vand.u32 %v2632, 4294901760
    %2634 = vmatpush1.xpose.msra.mxu0 %v2633
    %2635 = vmatprep.subr.mxu0 0.0
    %2636 = vmatpush1.xpose.msra.mxu0 0.0
    %2637 = vmatprep.subr.mxu0 0.0
    %2638 = vmatpush1.xpose.msra.mxu0 0.0
    %2639 = vmatprep.subr.mxu0 0.0
    %2640 = vmatpush1.xpose.msra.mxu0 0.0
    %2641 = vmatprep.subr.mxu0 0.0
    %2642 = vmatpush1.xpose.msra.mxu0 0.0
    %2643 = vmatprep.subr.mxu0 0.0
    %2644 = vmatpush1.xpose.msra.mxu0 0.0
    %2645 = vmatprep.subr.mxu0 0.0
    %2646 = vmatpush1.xpose.msra.mxu0 0.0
    %2647 = vmatprep.subr.mxu0 0.0
    %2648 = vmatpush1.xpose.msra.mxu0 0.0
    %2649 = vmatprep.subr.mxu0 0.0
    %2650 = vmatpush1.xpose.msra.mxu0 0.0
    %2651 = vmatprep.subr.mxu0 0.0
    %2652 = vmatpush1.xpose.msra.mxu0 0.0
    %2653 = vmatprep.subr.mxu0 0.0
    %2654 = vmatpush1.xpose.msra.mxu0 0.0
    %2655 = vmatprep.subr.mxu0 0.0
    %2656 = vmatpush1.xpose.msra.mxu0 0.0
    %2657 = vmatprep.subr.mxu0 0.0
    %2658 = vmatpush1.xpose.msra.mxu0 0.0
    %2659 = vmatprep.subr.mxu0 0.0
    %2660 = vmatpush1.xpose.msra.mxu0 0.0
    %2661 = vmatprep.subr.mxu0 0.0
    %2662 = vmatpush1.xpose.msra.mxu0 0.0
    %2663 = vmatprep.subr.mxu0 0.0
    %2664 = vmatpush1.xpose.msra.mxu0 0.0
    %2665 = vmatprep.subr.mxu0 0.0
    %2666 = vmatpush1.xpose.msra.mxu0 0.0
    %v2667 = vand.u32 %v20, 4294901760
    %2668 = vmatprep.mubr.f32.mxu0 %v2667
    %v2669 = vand.u32 %v19, 4294901760
    %2670 = vmatmul.mubr.f32.gmra.mrb[0].mxu0 %v2669
    %v2671 = vpop.f32.mrb[0].mxu0
    %v2672 = vadd.f32 %v2504, %v2671
    %v2673 = vpop.f32.mrb[0].mxu0
    %2674 = vdwg.mxu0
    %v2675 = vand.u32 %v27, 4294901760
    %2676 = vmatprep.subr.mxu0 %v2675
    %v2677 = vand.u32 %v26, 4294901760
    %2678 = vmatpush1.xpose.msra.mxu0 %v2677
    %v2679 = vand.u32 %v34, 4294901760
    %2680 = vmatprep.subr.mxu0 %v2679
    %v2681 = vand.u32 %v33, 4294901760
    %2682 = vmatpush1.xpose.msra.mxu0 %v2681
    %v2683 = vand.u32 %v41, 4294901760
    %2684 = vmatprep.subr.mxu0 %v2683
    %v2685 = vand.u32 %v40, 4294901760
    %2686 = vmatpush1.xpose.msra.mxu0 %v2685
    %v2687 = vand.u32 %v48, 4294901760
    %2688 = vmatprep.subr.mxu0 %v2687
    %v2689 = vand.u32 %v47, 4294901760
    %2690 = vmatpush1.xpose.msra.mxu0 %v2689
    %v2691 = vand.u32 %v55, 4294901760
    %2692 = vmatprep.subr.mxu0 %v2691
    %v2693 = vand.u32 %v54, 4294901760
    %2694 = vmatpush1.xpose.msra.mxu0 %v2693
    %v2695 = vand.u32 %v62, 4294901760
    %2696 = vmatprep.subr.mxu0 %v2695
    %v2697 = vand.u32 %v61, 4294901760
    %2698 = vmatpush1.xpose.msra.mxu0 %v2697
    %v2699 = vand.u32 %v69, 4294901760
    %2700 = vmatprep.subr.mxu0 %v2699
    %v2701 = vand.u32 %v68, 4294901760
    %2702 = vmatpush1.xpose.msra.mxu0 %v2701
    %v2703 = vand.u32 %v76, 4294901760
    %2704 = vmatprep.subr.mxu0 %v2703
    %v2705 = vand.u32 %v75, 4294901760
    %2706 = vmatpush1.xpose.msra.mxu0 %v2705
    %v2707 = vand.u32 %v83, 4294901760
    %2708 = vmatprep.subr.mxu0 %v2707
    %v2709 = vand.u32 %v82, 4294901760
    %2710 = vmatpush1.xpose.msra.mxu0 %v2709
    %v2711 = vand.u32 %v90, 4294901760
    %2712 = vmatprep.subr.mxu0 %v2711
    %v2713 = vand.u32 %v89, 4294901760
    %2714 = vmatpush1.xpose.msra.mxu0 %v2713
    %v2715 = vand.u32 %v97, 4294901760
    %2716 = vmatprep.subr.mxu0 %v2715
    %v2717 = vand.u32 %v96, 4294901760
    %2718 = vmatpush1.xpose.msra.mxu0 %v2717
    %v2719 = vand.u32 %v104, 4294901760
    %2720 = vmatprep.subr.mxu0 %v2719
    %v2721 = vand.u32 %v103, 4294901760
    %2722 = vmatpush1.xpose.msra.mxu0 %v2721
    %v2723 = vand.u32 %v111, 4294901760
    %2724 = vmatprep.subr.mxu0 %v2723
    %v2725 = vand.u32 %v110, 4294901760
    %2726 = vmatpush1.xpose.msra.mxu0 %v2725
    %v2727 = vand.u32 %v118, 4294901760
    %2728 = vmatprep.subr.mxu0 %v2727
    %v2729 = vand.u32 %v117, 4294901760
    %2730 = vmatpush1.xpose.msra.mxu0 %v2729
    %v2731 = vand.u32 %v125, 4294901760
    %2732 = vmatprep.subr.mxu0 %v2731
    %v2733 = vand.u32 %v124, 4294901760
    %2734 = vmatpush1.xpose.msra.mxu0 %v2733
    %v2735 = vand.u32 %v132, 4294901760
    %2736 = vmatprep.subr.mxu0 %v2735
    %v2737 = vand.u32 %v131, 4294901760
    %2738 = vmatpush1.xpose.msra.mxu0 %v2737
    %2739 = vmatprep.subr.mxu0 0.0
    %2740 = vmatpush1.xpose.msra.mxu0 0.0
    %2741 = vmatprep.subr.mxu0 0.0
    %2742 = vmatpush1.xpose.msra.mxu0 0.0
    %2743 = vmatprep.subr.mxu0 0.0
    %2744 = vmatpush1.xpose.msra.mxu0 0.0
    %2745 = vmatprep.subr.mxu0 0.0
    %2746 = vmatpush1.xpose.msra.mxu0 0.0
    %2747 = vmatprep.subr.mxu0 0.0
    %2748 = vmatpush1.xpose.msra.mxu0 0.0
    %2749 = vmatprep.subr.mxu0 0.0
    %2750 = vmatpush1.xpose.msra.mxu0 0.0
    %2751 = vmatprep.subr.mxu0 0.0
    %2752 = vmatpush1.xpose.msra.mxu0 0.0
    %2753 = vmatprep.subr.mxu0 0.0
    %2754 = vmatpush1.xpose.msra.mxu0 0.0
    %2755 = vmatprep.subr.mxu0 0.0
    %2756 = vmatpush1.xpose.msra.mxu0 0.0
    %2757 = vmatprep.subr.mxu0 0.0
    %2758 = vmatpush1.xpose.msra.mxu0 0.0
    %2759 = vmatprep.subr.mxu0 0.0
    %2760 = vmatpush1.xpose.msra.mxu0 0.0
    %2761 = vmatprep.subr.mxu0 0.0
    %2762 = vmatpush1.xpose.msra.mxu0 0.0
    %2763 = vmatprep.subr.mxu0 0.0
    %2764 = vmatpush1.xpose.msra.mxu0 0.0
    %2765 = vmatprep.subr.mxu0 0.0
    %2766 = vmatpush1.xpose.msra.mxu0 0.0
    %2767 = vmatprep.subr.mxu0 0.0
    %2768 = vmatpush1.xpose.msra.mxu0 0.0
    %2769 = vmatprep.subr.mxu0 0.0
    %2770 = vmatpush1.xpose.msra.mxu0 0.0
    %v2771 = vand.u32 %v20, 4294901760
    %2772 = vmatprep.mubr.f32.mxu0 %v2771
    %v2773 = vand.u32 %v19, 4294901760
    %2774 = vmatmul.mubr.f32.gmra.mrb[0].mxu0 %v2773
    %v2775 = vpop.f32.mrb[0].mxu0
    %v2776 = vadd.f32 %v2672, %v2775
    %v2777 = vpop.f32.mrb[0].mxu0
    %2778 = vdwg.mxu0
    %2779 = vmatprep.subr.mxu0 0.0
    %v2780 = vand.u32 %v146, 4294901760
    %2781 = vmatpush1.xpose.msra.mxu0 %v2780
    %2782 = vmatprep.subr.mxu0 0.0
    %v2783 = vand.u32 %v149, 4294901760
    %2784 = vmatpush1.xpose.msra.mxu0 %v2783
    %2785 = vmatprep.subr.mxu0 0.0
    %v2786 = vand.u32 %v152, 4294901760
    %2787 = vmatpush1.xpose.msra.mxu0 %v2786
    %2788 = vmatprep.subr.mxu0 0.0
    %v2789 = vand.u32 %v155, 4294901760
    %2790 = vmatpush1.xpose.msra.mxu0 %v2789
    %2791 = vmatprep.subr.mxu0 0.0
    %v2792 = vand.u32 %v158, 4294901760
    %2793 = vmatpush1.xpose.msra.mxu0 %v2792
    %2794 = vmatprep.subr.mxu0 0.0
    %v2795 = vand.u32 %v161, 4294901760
    %2796 = vmatpush1.xpose.msra.mxu0 %v2795
    %2797 = vmatprep.subr.mxu0 0.0
    %v2798 = vand.u32 %v164, 4294901760
    %2799 = vmatpush1.xpose.msra.mxu0 %v2798
    %2800 = vmatprep.subr.mxu0 0.0
    %v2801 = vand.u32 %v167, 4294901760
    %2802 = vmatpush1.xpose.msra.mxu0 %v2801
    %2803 = vmatprep.subr.mxu0 0.0
    %v2804 = vand.u32 %v170, 4294901760
    %2805 = vmatpush1.xpose.msra.mxu0 %v2804
    %2806 = vmatprep.subr.mxu0 0.0
    %v2807 = vand.u32 %v173, 4294901760
    %2808 = vmatpush1.xpose.msra.mxu0 %v2807
    %2809 = vmatprep.subr.mxu0 0.0
    %v2810 = vand.u32 %v176, 4294901760
    %2811 = vmatpush1.xpose.msra.mxu0 %v2810
    %2812 = vmatprep.subr.mxu0 0.0
    %v2813 = vand.u32 %v179, 4294901760
    %2814 = vmatpush1.xpose.msra.mxu0 %v2813
    %2815 = vmatprep.subr.mxu0 0.0
    %v2816 = vand.u32 %v182, 4294901760
    %2817 = vmatpush1.xpose.msra.mxu0 %v2816
    %2818 = vmatprep.subr.mxu0 0.0
    %v2819 = vand.u32 %v185, 4294901760
    %2820 = vmatpush1.xpose.msra.mxu0 %v2819
    %2821 = vmatprep.subr.mxu0 0.0
    %v2822 = vand.u32 %v188, 4294901760
    %2823 = vmatpush1.xpose.msra.mxu0 %v2822
    %2824 = vmatprep.subr.mxu0 0.0
    %v2825 = vand.u32 %v191, 4294901760
    %2826 = vmatpush1.xpose.msra.mxu0 %v2825
    %2827 = vmatprep.subr.mxu0 0.0
    %2828 = vmatpush1.xpose.msra.mxu0 0.0
    %2829 = vmatprep.subr.mxu0 0.0
    %2830 = vmatpush1.xpose.msra.mxu0 0.0
    %2831 = vmatprep.subr.mxu0 0.0
    %2832 = vmatpush1.xpose.msra.mxu0 0.0
    %2833 = vmatprep.subr.mxu0 0.0
    %2834 = vmatpush1.xpose.msra.mxu0 0.0
    %2835 = vmatprep.subr.mxu0 0.0
    %2836 = vmatpush1.xpose.msra.mxu0 0.0
    %2837 = vmatprep.subr.mxu0 0.0
    %2838 = vmatpush1.xpose.msra.mxu0 0.0
    %2839 = vmatprep.subr.mxu0 0.0
    %2840 = vmatpush1.xpose.msra.mxu0 0.0
    %2841 = vmatprep.subr.mxu0 0.0
    %2842 = vmatpush1.xpose.msra.mxu0 0.0
    %2843 = vmatprep.subr.mxu0 0.0
    %2844 = vmatpush1.xpose.msra.mxu0 0.0
    %2845 = vmatprep.subr.mxu0 0.0
    %2846 = vmatpush1.xpose.msra.mxu0 0.0
    %2847 = vmatprep.subr.mxu0 0.0
    %2848 = vmatpush1.xpose.msra.mxu0 0.0
    %2849 = vmatprep.subr.mxu0 0.0
    %2850 = vmatpush1.xpose.msra.mxu0 0.0
    %2851 = vmatprep.subr.mxu0 0.0
    %2852 = vmatpush1.xpose.msra.mxu0 0.0
    %2853 = vmatprep.subr.mxu0 0.0
    %2854 = vmatpush1.xpose.msra.mxu0 0.0
    %2855 = vmatprep.subr.mxu0 0.0
    %2856 = vmatpush1.xpose.msra.mxu0 0.0
    %2857 = vmatprep.subr.mxu0 0.0
    %2858 = vmatpush1.xpose.msra.mxu0 0.0
    %2859 = vmatprep.mubr.f32.mxu0 0.0
    %v2860 = vand.u32 %v143, 4294901760
    %v2861 = vsub.f32 %v143, %v2860
    %v2862 = vand.u32 %v2861, 4294901760
    %v2863 = vsub.f32 %v2861, %v2862
    %v2864 = vand.u32 %v2863, 4294901760
    %2865 = vmatmul.mubr.f32.gmra.mrb[0].mxu0 %v2864
    %v2866 = vpop.f32.mrb[0].mxu0
    %v2867 = vadd.f32 %v2776, %v2866
    %v2868 = vpop.f32.mrb[0].mxu0
    %2869 = vdwg.mxu0
    %2870 = vmatprep.subr.mxu0 0.0
    %v2871 = vand.u32 %v146, 4294901760
    %v2872 = vsub.f32 %v146, %v2871
    %v2873 = vand.u32 %v2872, 4294901760
    %v2874 = vsub.f32 %v2872, %v2873
    %v2875 = vand.u32 %v2874, 4294901760
    %2876 = vmatpush1.xpose.msra.mxu0 %v2875
    %2877 = vmatprep.subr.mxu0 0.0
    %v2878 = vand.u32 %v149, 4294901760
    %v2879 = vsub.f32 %v149, %v2878
    %v2880 = vand.u32 %v2879, 4294901760
    %v2881 = vsub.f32 %v2879, %v2880
    %v2882 = vand.u32 %v2881, 4294901760
    %2883 = vmatpush1.xpose.msra.mxu0 %v2882
    %2884 = vmatprep.subr.mxu0 0.0
    %v2885 = vand.u32 %v152, 4294901760
    %v2886 = vsub.f32 %v152, %v2885
    %v2887 = vand.u32 %v2886, 4294901760
    %v2888 = vsub.f32 %v2886, %v2887
    %v2889 = vand.u32 %v2888, 4294901760
    %2890 = vmatpush1.xpose.msra.mxu0 %v2889
    %2891 = vmatprep.subr.mxu0 0.0
    %v2892 = vand.u32 %v155, 4294901760
    %v2893 = vsub.f32 %v155, %v2892
    %v2894 = vand.u32 %v2893, 4294901760
    %v2895 = vsub.f32 %v2893, %v2894
    %v2896 = vand.u32 %v2895, 4294901760
    %2897 = vmatpush1.xpose.msra.mxu0 %v2896
    %2898 = vmatprep.subr.mxu0 0.0
    %v2899 = vand.u32 %v158, 4294901760
    %v2900 = vsub.f32 %v158, %v2899
    %v2901 = vand.u32 %v2900, 4294901760
    %v2902 = vsub.f32 %v2900, %v2901
    %v2903 = vand.u32 %v2902, 4294901760
    %2904 = vmatpush1.xpose.msra.mxu0 %v2903
    %2905 = vmatprep.subr.mxu0 0.0
    %v2906 = vand.u32 %v161, 4294901760
    %v2907 = vsub.f32 %v161, %v2906
    %v2908 = vand.u32 %v2907, 4294901760
    %v2909 = vsub.f32 %v2907, %v2908
    %v2910 = vand.u32 %v2909, 4294901760
    %2911 = vmatpush1.xpose.msra.mxu0 %v2910
    %2912 = vmatprep.subr.mxu0 0.0
    %v2913 = vand.u32 %v164, 4294901760
    %v2914 = vsub.f32 %v164, %v2913
    %v2915 = vand.u32 %v2914, 4294901760
    %v2916 = vsub.f32 %v2914, %v2915
    %v2917 = vand.u32 %v2916, 4294901760
    %2918 = vmatpush1.xpose.msra.mxu0 %v2917
    %2919 = vmatprep.subr.mxu0 0.0
    %v2920 = vand.u32 %v167, 4294901760
    %v2921 = vsub.f32 %v167, %v2920
    %v2922 = vand.u32 %v2921, 4294901760
    %v2923 = vsub.f32 %v2921, %v2922
    %v2924 = vand.u32 %v2923, 4294901760
    %2925 = vmatpush1.xpose.msra.mxu0 %v2924
    %2926 = vmatprep.subr.mxu0 0.0
    %v2927 = vand.u32 %v170, 4294901760
    %v2928 = vsub.f32 %v170, %v2927
    %v2929 = vand.u32 %v2928, 4294901760
    %v2930 = vsub.f32 %v2928, %v2929
    %v2931 = vand.u32 %v2930, 4294901760
    %2932 = vmatpush1.xpose.msra.mxu0 %v2931
    %2933 = vmatprep.subr.mxu0 0.0
    %v2934 = vand.u32 %v173, 4294901760
    %v2935 = vsub.f32 %v173, %v2934
    %v2936 = vand.u32 %v2935, 4294901760
    %v2937 = vsub.f32 %v2935, %v2936
    %v2938 = vand.u32 %v2937, 4294901760
    %2939 = vmatpush1.xpose.msra.mxu0 %v2938
    %2940 = vmatprep.subr.mxu0 0.0
    %v2941 = vand.u32 %v176, 4294901760
    %v2942 = vsub.f32 %v176, %v2941
    %v2943 = vand.u32 %v2942, 4294901760
    %v2944 = vsub.f32 %v2942, %v2943
    %v2945 = vand.u32 %v2944, 4294901760
    %2946 = vmatpush1.xpose.msra.mxu0 %v2945
    %2947 = vmatprep.subr.mxu0 0.0
    %v2948 = vand.u32 %v179, 4294901760
    %v2949 = vsub.f32 %v179, %v2948
    %v2950 = vand.u32 %v2949, 4294901760
    %v2951 = vsub.f32 %v2949, %v2950
    %v2952 = vand.u32 %v2951, 4294901760
    %2953 = vmatpush1.xpose.msra.mxu0 %v2952
    %2954 = vmatprep.subr.mxu0 0.0
    %v2955 = vand.u32 %v182, 4294901760
    %v2956 = vsub.f32 %v182, %v2955
    %v2957 = vand.u32 %v2956, 4294901760
    %v2958 = vsub.f32 %v2956, %v2957
    %v2959 = vand.u32 %v2958, 4294901760
    %2960 = vmatpush1.xpose.msra.mxu0 %v2959
    %2961 = vmatprep.subr.mxu0 0.0
    %v2962 = vand.u32 %v185, 4294901760
    %v2963 = vsub.f32 %v185, %v2962
    %v2964 = vand.u32 %v2963, 4294901760
    %v2965 = vsub.f32 %v2963, %v2964
    %v2966 = vand.u32 %v2965, 4294901760
    %2967 = vmatpush1.xpose.msra.mxu0 %v2966
    %2968 = vmatprep.subr.mxu0 0.0
    %v2969 = vand.u32 %v188, 4294901760
    %v2970 = vsub.f32 %v188, %v2969
    %v2971 = vand.u32 %v2970, 4294901760
    %v2972 = vsub.f32 %v2970, %v2971
    %v2973 = vand.u32 %v2972, 4294901760
    %2974 = vmatpush1.xpose.msra.mxu0 %v2973
    %2975 = vmatprep.subr.mxu0 0.0
    %v2976 = vand.u32 %v191, 4294901760
    %v2977 = vsub.f32 %v191, %v2976
    %v2978 = vand.u32 %v2977, 4294901760
    %v2979 = vsub.f32 %v2977, %v2978
    %v2980 = vand.u32 %v2979, 4294901760
    %2981 = vmatpush1.xpose.msra.mxu0 %v2980
    %2982 = vmatprep.subr.mxu0 0.0
    %2983 = vmatpush1.xpose.msra.mxu0 0.0
    %2984 = vmatprep.subr.mxu0 0.0
    %2985 = vmatpush1.xpose.msra.mxu0 0.0
    %2986 = vmatprep.subr.mxu0 0.0
    %2987 = vmatpush1.xpose.msra.mxu0 0.0
    %2988 = vmatprep.subr.mxu0 0.0
    %2989 = vmatpush1.xpose.msra.mxu0 0.0
    %2990 = vmatprep.subr.mxu0 0.0
    %2991 = vmatpush1.xpose.msra.mxu0 0.0
    %2992 = vmatprep.subr.mxu0 0.0
    %2993 = vmatpush1.xpose.msra.mxu0 0.0
    %2994 = vmatprep.subr.mxu0 0.0
    %2995 = vmatpush1.xpose.msra.mxu0 0.0
    %2996 = vmatprep.subr.mxu0 0.0
    %2997 = vmatpush1.xpose.msra.mxu0 0.0
    %2998 = vmatprep.subr.mxu0 0.0
    %2999 = vmatpush1.xpose.msra.mxu0 0.0
    %3000 = vmatprep.subr.mxu0 0.0
    %3001 = vmatpush1.xpose.msra.mxu0 0.0
    %3002 = vmatprep.subr.mxu0 0.0
    %3003 = vmatpush1.xpose.msra.mxu0 0.0
    %3004 = vmatprep.subr.mxu0 0.0
    %3005 = vmatpush1.xpose.msra.mxu0 0.0
    %3006 = vmatprep.subr.mxu0 0.0
    %3007 = vmatpush1.xpose.msra.mxu0 0.0
    %3008 = vmatprep.subr.mxu0 0.0
    %3009 = vmatpush1.xpose.msra.mxu0 0.0
    %3010 = vmatprep.subr.mxu0 0.0
    %3011 = vmatpush1.xpose.msra.mxu0 0.0
    %3012 = vmatprep.subr.mxu0 0.0
    %3013 = vmatpush1.xpose.msra.mxu0 0.0
    %3014 = vmatprep.mubr.f32.mxu0 0.0
    %v3015 = vand.u32 %v143, 4294901760
    %3016 = vmatmul.mubr.f32.gmra.mrb[0].mxu0 %v3015
    %v3017 = vpop.f32.mrb[0].mxu0
    %v3018 = vadd.f32 %v2867, %v3017
    %v3019 = vpop.f32.mrb[0].mxu0
    %3020 = vdwg.mxu0
    %3021 = vmatprep.subr.mxu0 0.0
    %v3022 = vand.u32 %v146, 4294901760
    %v3023 = vsub.f32 %v146, %v3022
    %3024 = vmatpush1.xpose.msra.mxu0 %v3023
    %3025 = vmatprep.subr.mxu0 0.0
    %v3026 = vand.u32 %v149, 4294901760
    %v3027 = vsub.f32 %v149, %v3026
    %3028 = vmatpush1.xpose.msra.mxu0 %v3027
    %3029 = vmatprep.subr.mxu0 0.0
    %v3030 = vand.u32 %v152, 4294901760
    %v3031 = vsub.f32 %v152, %v3030
    %3032 = vmatpush1.xpose.msra.mxu0 %v3031
    %3033 = vmatprep.subr.mxu0 0.0
    %v3034 = vand.u32 %v155, 4294901760
    %v3035 = vsub.f32 %v155, %v3034
    %3036 = vmatpush1.xpose.msra.mxu0 %v3035
    %3037 = vmatprep.subr.mxu0 0.0
    %v3038 = vand.u32 %v158, 4294901760
    %v3039 = vsub.f32 %v158, %v3038
    %3040 = vmatpush1.xpose.msra.mxu0 %v3039
    %3041 = vmatprep.subr.mxu0 0.0
    %v3042 = vand.u32 %v161, 4294901760
    %v3043 = vsub.f32 %v161, %v3042
    %3044 = vmatpush1.xpose.msra.mxu0 %v3043
    %3045 = vmatprep.subr.mxu0 0.0
    %v3046 = vand.u32 %v164, 4294901760
    %v3047 = vsub.f32 %v164, %v3046
    %3048 = vmatpush1.xpose.msra.mxu0 %v3047
    %3049 = vmatprep.subr.mxu0 0.0
    %v3050 = vand.u32 %v167, 4294901760
    %v3051 = vsub.f32 %v167, %v3050
    %3052 = vmatpush1.xpose.msra.mxu0 %v3051
    %3053 = vmatprep.subr.mxu0 0.0
    %v3054 = vand.u32 %v170, 4294901760
    %v3055 = vsub.f32 %v170, %v3054
    %3056 = vmatpush1.xpose.msra.mxu0 %v3055
    %3057 = vmatprep.subr.mxu0 0.0
    %v3058 = vand.u32 %v173, 4294901760
    %v3059 = vsub.f32 %v173, %v3058
    %3060 = vmatpush1.xpose.msra.mxu0 %v3059
    %3061 = vmatprep.subr.mxu0 0.0
    %v3062 = vand.u32 %v176, 4294901760
    %v3063 = vsub.f32 %v176, %v3062
    %3064 = vmatpush1.xpose.msra.mxu0 %v3063
    %3065 = vmatprep.subr.mxu0 0.0
    %v3066 = vand.u32 %v179, 4294901760
    %v3067 = vsub.f32 %v179, %v3066
    %3068 = vmatpush1.xpose.msra.mxu0 %v3067
    %3069 = vmatprep.subr.mxu0 0.0
    %v3070 = vand.u32 %v182, 4294901760
    %v3071 = vsub.f32 %v182, %v3070
    %3072 = vmatpush1.xpose.msra.mxu0 %v3071
    %3073 = vmatprep.subr.mxu0 0.0
    %v3074 = vand.u32 %v185, 4294901760
    %v3075 = vsub.f32 %v185, %v3074
    %3076 = vmatpush1.xpose.msra.mxu0 %v3075
    %3077 = vmatprep.subr.mxu0 0.0
    %v3078 = vand.u32 %v188, 4294901760
    %v3079 = vsub.f32 %v188, %v3078
    %3080 = vmatpush1.xpose.msra.mxu0 %v3079
    %3081 = vmatprep.subr.mxu0 0.0
    %v3082 = vand.u32 %v191, 4294901760
    %v3083 = vsub.f32 %v191, %v3082
    %3084 = vmatpush1.xpose.msra.mxu0 %v3083
    %3085 = vmatprep.subr.mxu0 0.0
    %3086 = vmatpush1.xpose.msra.mxu0 0.0
    %3087 = vmatprep.subr.mxu0 0.0
    %3088 = vmatpush1.xpose.msra.mxu0 0.0
    %3089 = vmatprep.subr.mxu0 0.0
    %3090 = vmatpush1.xpose.msra.mxu0 0.0
    %3091 = vmatprep.subr.mxu0 0.0
    %3092 = vmatpush1.xpose.msra.mxu0 0.0
    %3093 = vmatprep.subr.mxu0 0.0
    %3094 = vmatpush1.xpose.msra.mxu0 0.0
    %3095 = vmatprep.subr.mxu0 0.0
    %3096 = vmatpush1.xpose.msra.mxu0 0.0
    %3097 = vmatprep.subr.mxu0 0.0
    %3098 = vmatpush1.xpose.msra.mxu0 0.0
    %3099 = vmatprep.subr.mxu0 0.0
    %3100 = vmatpush1.xpose.msra.mxu0 0.0
    %3101 = vmatprep.subr.mxu0 0.0
    %3102 = vmatpush1.xpose.msra.mxu0 0.0
    %3103 = vmatprep.subr.mxu0 0.0
    %3104 = vmatpush1.xpose.msra.mxu0 0.0
    %3105 = vmatprep.subr.mxu0 0.0
    %3106 = vmatpush1.xpose.msra.mxu0 0.0
    %3107 = vmatprep.subr.mxu0 0.0
    %3108 = vmatpush1.xpose.msra.mxu0 0.0
    %3109 = vmatprep.subr.mxu0 0.0
    %3110 = vmatpush1.xpose.msra.mxu0 0.0
    %3111 = vmatprep.subr.mxu0 0.0
    %3112 = vmatpush1.xpose.msra.mxu0 0.0
    %3113 = vmatprep.subr.mxu0 0.0
    %3114 = vmatpush1.xpose.msra.mxu0 0.0
    %3115 = vmatprep.subr.mxu0 0.0
    %3116 = vmatpush1.xpose.msra.mxu0 0.0
    %3117 = vmatprep.mubr.f32.mxu0 0.0
    %v3118 = vand.u32 %v143, 4294901760
    %v3119 = vsub.f32 %v143, %v3118
    %3120 = vmatmul.mubr.f32.gmra.mrb[0].mxu0 %v3119
    %v3121 = vpop.f32.mrb[0].mxu0
    %v3122 = vadd.f32 %v3018, %v3121
    %v3123 = vpop.f32.mrb[0].mxu0
    %3124 = vdwg.mxu0
    %3125 = vmatprep.subr.mxu0 0.0
    %v3126 = vand.u32 %v146, 4294901760
    %3127 = vmatpush1.xpose.msra.mxu0 %v3126
    %3128 = vmatprep.subr.mxu0 0.0
    %v3129 = vand.u32 %v149, 4294901760
    %3130 = vmatpush1.xpose.msra.mxu0 %v3129
    %3131 = vmatprep.subr.mxu0 0.0
    %v3132 = vand.u32 %v152, 4294901760
    %3133 = vmatpush1.xpose.msra.mxu0 %v3132
    %3134 = vmatprep.subr.mxu0 0.0
    %v3135 = vand.u32 %v155, 4294901760
    %3136 = vmatpush1.xpose.msra.mxu0 %v3135
    %3137 = vmatprep.subr.mxu0 0.0
    %v3138 = vand.u32 %v158, 4294901760
    %3139 = vmatpush1.xpose.msra.mxu0 %v3138
    %3140 = vmatprep.subr.mxu0 0.0
    %v3141 = vand.u32 %v161, 4294901760
    %3142 = vmatpush1.xpose.msra.mxu0 %v3141
    %3143 = vmatprep.subr.mxu0 0.0
    %v3144 = vand.u32 %v164, 4294901760
    %3145 = vmatpush1.xpose.msra.mxu0 %v3144
    %3146 = vmatprep.subr.mxu0 0.0
    %v3147 = vand.u32 %v167, 4294901760
    %3148 = vmatpush1.xpose.msra.mxu0 %v3147
    %3149 = vmatprep.subr.mxu0 0.0
    %v3150 = vand.u32 %v170, 4294901760
    %3151 = vmatpush1.xpose.msra.mxu0 %v3150
    %3152 = vmatprep.subr.mxu0 0.0
    %v3153 = vand.u32 %v173, 4294901760
    %3154 = vmatpush1.xpose.msra.mxu0 %v3153
    %3155 = vmatprep.subr.mxu0 0.0
    %v3156 = vand.u32 %v176, 4294901760
    %3157 = vmatpush1.xpose.msra.mxu0 %v3156
    %3158 = vmatprep.subr.mxu0 0.0
    %v3159 = vand.u32 %v179, 4294901760
    %3160 = vmatpush1.xpose.msra.mxu0 %v3159
    %3161 = vmatprep.subr.mxu0 0.0
    %v3162 = vand.u32 %v182, 4294901760
    %3163 = vmatpush1.xpose.msra.mxu0 %v3162
    %3164 = vmatprep.subr.mxu0 0.0
    %v3165 = vand.u32 %v185, 4294901760
    %3166 = vmatpush1.xpose.msra.mxu0 %v3165
    %3167 = vmatprep.subr.mxu0 0.0
    %v3168 = vand.u32 %v188, 4294901760
    %3169 = vmatpush1.xpose.msra.mxu0 %v3168
    %3170 = vmatprep.subr.mxu0 0.0
    %v3171 = vand.u32 %v191, 4294901760
    %3172 = vmatpush1.xpose.msra.mxu0 %v3171
    %3173 = vmatprep.subr.mxu0 0.0
    %3174 = vmatpush1.xpose.msra.mxu0 0.0
    %3175 = vmatprep.subr.mxu0 0.0
    %3176 = vmatpush1.xpose.msra.mxu0 0.0
    %3177 = vmatprep.subr.mxu0 0.0
    %3178 = vmatpush1.xpose.msra.mxu0 0.0
    %3179 = vmatprep.subr.mxu0 0.0
    %3180 = vmatpush1.xpose.msra.mxu0 0.0
    %3181 = vmatprep.subr.mxu0 0.0
    %3182 = vmatpush1.xpose.msra.mxu0 0.0
    %3183 = vmatprep.subr.mxu0 0.0
    %3184 = vmatpush1.xpose.msra.mxu0 0.0
    %3185 = vmatprep.subr.mxu0 0.0
    %3186 = vmatpush1.xpose.msra.mxu0 0.0
    %3187 = vmatprep.subr.mxu0 0.0
    %3188 = vmatpush1.xpose.msra.mxu0 0.0
    %3189 = vmatprep.subr.mxu0 0.0
    %3190 = vmatpush1.xpose.msra.mxu0 0.0
    %3191 = vmatprep.subr.mxu0 0.0
    %3192 = vmatpush1.xpose.msra.mxu0 0.0
    %3193 = vmatprep.subr.mxu0 0.0
    %3194 = vmatpush1.xpose.msra.mxu0 0.0
    %3195 = vmatprep.subr.mxu0 0.0
    %3196 = vmatpush1.xpose.msra.mxu0 0.0
    %3197 = vmatprep.subr.mxu0 0.0
    %3198 = vmatpush1.xpose.msra.mxu0 0.0
    %3199 = vmatprep.subr.mxu0 0.0
    %3200 = vmatpush1.xpose.msra.mxu0 0.0
    %3201 = vmatprep.subr.mxu0 0.0
    %3202 = vmatpush1.xpose.msra.mxu0 0.0
    %3203 = vmatprep.subr.mxu0 0.0
    %3204 = vmatpush1.xpose.msra.mxu0 0.0
    %3205 = vmatprep.mubr.f32.mxu0 0.0
    %v3206 = vand.u32 %v143, 4294901760
    %v3207 = vsub.f32 %v143, %v3206
    %v3208 = vand.u32 %v3207, 4294901760
    %3209 = vmatmul.mubr.f32.gmra.mrb[0].mxu0 %v3208
    %v3210 = vpop.f32.mrb[0].mxu0
    %v3211 = vadd.f32 %v3122, %v3210
    %v3212 = vpop.f32.mrb[0].mxu0
    %3213 = vdwg.mxu0
    %3214 = vmatprep.subr.mxu0 0.0
    %v3215 = vand.u32 %v146, 4294901760
    %v3216 = vsub.f32 %v146, %v3215
    %v3217 = vand.u32 %v3216, 4294901760
    %3218 = vmatpush1.xpose.msra.mxu0 %v3217
    %3219 = vmatprep.subr.mxu0 0.0
    %v3220 = vand.u32 %v149, 4294901760
    %v3221 = vsub.f32 %v149, %v3220
    %v3222 = vand.u32 %v3221, 4294901760
    %3223 = vmatpush1.xpose.msra.mxu0 %v3222
    %3224 = vmatprep.subr.mxu0 0.0
    %v3225 = vand.u32 %v152, 4294901760
    %v3226 = vsub.f32 %v152, %v3225
    %v3227 = vand.u32 %v3226, 4294901760
    %3228 = vmatpush1.xpose.msra.mxu0 %v3227
    %3229 = vmatprep.subr.mxu0 0.0
    %v3230 = vand.u32 %v155, 4294901760
    %v3231 = vsub.f32 %v155, %v3230
    %v3232 = vand.u32 %v3231, 4294901760
    %3233 = vmatpush1.xpose.msra.mxu0 %v3232
    %3234 = vmatprep.subr.mxu0 0.0
    %v3235 = vand.u32 %v158, 4294901760
    %v3236 = vsub.f32 %v158, %v3235
    %v3237 = vand.u32 %v3236, 4294901760
    %3238 = vmatpush1.xpose.msra.mxu0 %v3237
    %3239 = vmatprep.subr.mxu0 0.0
    %v3240 = vand.u32 %v161, 4294901760
    %v3241 = vsub.f32 %v161, %v3240
    %v3242 = vand.u32 %v3241, 4294901760
    %3243 = vmatpush1.xpose.msra.mxu0 %v3242
    %3244 = vmatprep.subr.mxu0 0.0
    %v3245 = vand.u32 %v164, 4294901760
    %v3246 = vsub.f32 %v164, %v3245
    %v3247 = vand.u32 %v3246, 4294901760
    %3248 = vmatpush1.xpose.msra.mxu0 %v3247
    %3249 = vmatprep.subr.mxu0 0.0
    %v3250 = vand.u32 %v167, 4294901760
    %v3251 = vsub.f32 %v167, %v3250
    %v3252 = vand.u32 %v3251, 4294901760
    %3253 = vmatpush1.xpose.msra.mxu0 %v3252
    %3254 = vmatprep.subr.mxu0 0.0
    %v3255 = vand.u32 %v170, 4294901760
    %v3256 = vsub.f32 %v170, %v3255
    %v3257 = vand.u32 %v3256, 4294901760
    %3258 = vmatpush1.xpose.msra.mxu0 %v3257
    %3259 = vmatprep.subr.mxu0 0.0
    %v3260 = vand.u32 %v173, 4294901760
    %v3261 = vsub.f32 %v173, %v3260
    %v3262 = vand.u32 %v3261, 4294901760
    %3263 = vmatpush1.xpose.msra.mxu0 %v3262
    %3264 = vmatprep.subr.mxu0 0.0
    %v3265 = vand.u32 %v176, 4294901760
    %v3266 = vsub.f32 %v176, %v3265
    %v3267 = vand.u32 %v3266, 4294901760
    %3268 = vmatpush1.xpose.msra.mxu0 %v3267
    %3269 = vmatprep.subr.mxu0 0.0
    %v3270 = vand.u32 %v179, 4294901760
    %v3271 = vsub.f32 %v179, %v3270
    %v3272 = vand.u32 %v3271, 4294901760
    %3273 = vmatpush1.xpose.msra.mxu0 %v3272
    %3274 = vmatprep.subr.mxu0 0.0
    %v3275 = vand.u32 %v182, 4294901760
    %v3276 = vsub.f32 %v182, %v3275
    %v3277 = vand.u32 %v3276, 4294901760
    %3278 = vmatpush1.xpose.msra.mxu0 %v3277
    %3279 = vmatprep.subr.mxu0 0.0
    %v3280 = vand.u32 %v185, 4294901760
    %v3281 = vsub.f32 %v185, %v3280
    %v3282 = vand.u32 %v3281, 4294901760
    %3283 = vmatpush1.xpose.msra.mxu0 %v3282
    %3284 = vmatprep.subr.mxu0 0.0
    %v3285 = vand.u32 %v188, 4294901760
    %v3286 = vsub.f32 %v188, %v3285
    %v3287 = vand.u32 %v3286, 4294901760
    %3288 = vmatpush1.xpose.msra.mxu0 %v3287
    %3289 = vmatprep.subr.mxu0 0.0
    %v3290 = vand.u32 %v191, 4294901760
    %v3291 = vsub.f32 %v191, %v3290
    %v3292 = vand.u32 %v3291, 4294901760
    %3293 = vmatpush1.xpose.msra.mxu0 %v3292
    %3294 = vmatprep.subr.mxu0 0.0
    %3295 = vmatpush1.xpose.msra.mxu0 0.0
    %3296 = vmatprep.subr.mxu0 0.0
    %3297 = vmatpush1.xpose.msra.mxu0 0.0
    %3298 = vmatprep.subr.mxu0 0.0
    %3299 = vmatpush1.xpose.msra.mxu0 0.0
    %3300 = vmatprep.subr.mxu0 0.0
    %3301 = vmatpush1.xpose.msra.mxu0 0.0
    %3302 = vmatprep.subr.mxu0 0.0
    %3303 = vmatpush1.xpose.msra.mxu0 0.0
    %3304 = vmatprep.subr.mxu0 0.0
    %3305 = vmatpush1.xpose.msra.mxu0 0.0
    %3306 = vmatprep.subr.mxu0 0.0
    %3307 = vmatpush1.xpose.msra.mxu0 0.0
    %3308 = vmatprep.subr.mxu0 0.0
    %3309 = vmatpush1.xpose.msra.mxu0 0.0
    %3310 = vmatprep.subr.mxu0 0.0
    %3311 = vmatpush1.xpose.msra.mxu0 0.0
    %3312 = vmatprep.subr.mxu0 0.0
    %3313 = vmatpush1.xpose.msra.mxu0 0.0
    %3314 = vmatprep.subr.mxu0 0.0
    %3315 = vmatpush1.xpose.msra.mxu0 0.0
    %3316 = vmatprep.subr.mxu0 0.0
    %3317 = vmatpush1.xpose.msra.mxu0 0.0
    %3318 = vmatprep.subr.mxu0 0.0
    %3319 = vmatpush1.xpose.msra.mxu0 0.0
    %3320 = vmatprep.subr.mxu0 0.0
    %3321 = vmatpush1.xpose.msra.mxu0 0.0
    %3322 = vmatprep.subr.mxu0 0.0
    %3323 = vmatpush1.xpose.msra.mxu0 0.0
    %3324 = vmatprep.subr.mxu0 0.0
    %3325 = vmatpush1.xpose.msra.mxu0 0.0
    %3326 = vmatprep.mubr.f32.mxu0 0.0
    %v3327 = vand.u32 %v143, 4294901760
    %3328 = vmatmul.mubr.f32.gmra.mrb[0].mxu0 %v3327
    %v3329 = vpop.f32.mrb[0].mxu0
    %v3330 = vadd.f32 %v3211, %v3329
    %v3331 = vpop.f32.mrb[0].mxu0
    %3332 = vdwg.mxu0
    %3333 = vmatprep.subr.mxu0 0.0
    %v3334 = vand.u32 %v146, 4294901760
    %3335 = vmatpush1.xpose.msra.mxu0 %v3334
    %3336 = vmatprep.subr.mxu0 0.0
    %v3337 = vand.u32 %v149, 4294901760
    %3338 = vmatpush1.xpose.msra.mxu0 %v3337
    %3339 = vmatprep.subr.mxu0 0.0
    %v3340 = vand.u32 %v152, 4294901760
    %3341 = vmatpush1.xpose.msra.mxu0 %v3340
    %3342 = vmatprep.subr.mxu0 0.0
    %v3343 = vand.u32 %v155, 4294901760
    %3344 = vmatpush1.xpose.msra.mxu0 %v3343
    %3345 = vmatprep.subr.mxu0 0.0
    %v3346 = vand.u32 %v158, 4294901760
    %3347 = vmatpush1.xpose.msra.mxu0 %v3346
    %3348 = vmatprep.subr.mxu0 0.0
    %v3349 = vand.u32 %v161, 4294901760
    %3350 = vmatpush1.xpose.msra.mxu0 %v3349
    %3351 = vmatprep.subr.mxu0 0.0
    %v3352 = vand.u32 %v164, 4294901760
    %3353 = vmatpush1.xpose.msra.mxu0 %v3352
    %3354 = vmatprep.subr.mxu0 0.0
    %v3355 = vand.u32 %v167, 4294901760
    %3356 = vmatpush1.xpose.msra.mxu0 %v3355
    %3357 = vmatprep.subr.mxu0 0.0
    %v3358 = vand.u32 %v170, 4294901760
    %3359 = vmatpush1.xpose.msra.mxu0 %v3358
    %3360 = vmatprep.subr.mxu0 0.0
    %v3361 = vand.u32 %v173, 4294901760
    %3362 = vmatpush1.xpose.msra.mxu0 %v3361
    %3363 = vmatprep.subr.mxu0 0.0
    %v3364 = vand.u32 %v176, 4294901760
    %3365 = vmatpush1.xpose.msra.mxu0 %v3364
    %3366 = vmatprep.subr.mxu0 0.0
    %v3367 = vand.u32 %v179, 4294901760
    %3368 = vmatpush1.xpose.msra.mxu0 %v3367
    %3369 = vmatprep.subr.mxu0 0.0
    %v3370 = vand.u32 %v182, 4294901760
    %3371 = vmatpush1.xpose.msra.mxu0 %v3370
    %3372 = vmatprep.subr.mxu0 0.0
    %v3373 = vand.u32 %v185, 4294901760
    %3374 = vmatpush1.xpose.msra.mxu0 %v3373
    %3375 = vmatprep.subr.mxu0 0.0
    %v3376 = vand.u32 %v188, 4294901760
    %3377 = vmatpush1.xpose.msra.mxu0 %v3376
    %3378 = vmatprep.subr.mxu0 0.0
    %v3379 = vand.u32 %v191, 4294901760
    %3380 = vmatpush1.xpose.msra.mxu0 %v3379
    %3381 = vmatprep.subr.mxu0 0.0
    %3382 = vmatpush1.xpose.msra.mxu0 0.0
    %3383 = vmatprep.subr.mxu0 0.0
    %3384 = vmatpush1.xpose.msra.mxu0 0.0
    %3385 = vmatprep.subr.mxu0 0.0
    %3386 = vmatpush1.xpose.msra.mxu0 0.0
    %3387 = vmatprep.subr.mxu0 0.0
    %3388 = vmatpush1.xpose.msra.mxu0 0.0
    %3389 = vmatprep.subr.mxu0 0.0
    %3390 = vmatpush1.xpose.msra.mxu0 0.0
    %3391 = vmatprep.subr.mxu0 0.0
    %3392 = vmatpush1.xpose.msra.mxu0 0.0
    %3393 = vmatprep.subr.mxu0 0.0
    %3394 = vmatpush1.xpose.msra.mxu0 0.0
    %3395 = vmatprep.subr.mxu0 0.0
    %3396 = vmatpush1.xpose.msra.mxu0 0.0
    %3397 = vmatprep.subr.mxu0 0.0
    %3398 = vmatpush1.xpose.msra.mxu0 0.0
    %3399 = vmatprep.subr.mxu0 0.0
    %3400 = vmatpush1.xpose.msra.mxu0 0.0
    %3401 = vmatprep.subr.mxu0 0.0
    %3402 = vmatpush1.xpose.msra.mxu0 0.0
    %3403 = vmatprep.subr.mxu0 0.0
    %3404 = vmatpush1.xpose.msra.mxu0 0.0
    %3405 = vmatprep.subr.mxu0 0.0
    %3406 = vmatpush1.xpose.msra.mxu0 0.0
    %3407 = vmatprep.subr.mxu0 0.0
    %3408 = vmatpush1.xpose.msra.mxu0 0.0
    %3409 = vmatprep.subr.mxu0 0.0
    %3410 = vmatpush1.xpose.msra.mxu0 0.0
    %3411 = vmatprep.subr.mxu0 0.0
    %3412 = vmatpush1.xpose.msra.mxu0 0.0
    %3413 = vmatprep.mubr.f32.mxu0 0.0
    %v3414 = vand.u32 %v143, 4294901760
    %3415 = vmatmul.mubr.f32.gmra.mrb[0].mxu0 %v3414
    %v3416 = vpop.f32.mrb[0].mxu0
    %v3417 = vadd.f32 %v3330, %v3416
    %v3418 = vpop.f32.mrb[0].mxu0
    %3419 = vdwg.mxu0
    %3420 = vst [vmem:[#allocation2] sm:$0xff] %v3417
    // Predicated region
    $region14: #{tpu_custom_call.1} parent=1 // pred_check
      _
    $region15: #{tpu_custom_call.1} parent=1 // pred_check_branch
      %3422 = sbr.rel (0) target = $region17
    $region16: #{tpu_custom_call.1} parent=1 // pred_region
      %s3424 = ssub.s32 128, 128
      %3425 = vsyncadd [#allocation3], %s3424
      %s3427 = sshll.u32 [#allocation2], 4
      %s3428 = int_to_ptr.vmem [resolvable:$true] %s3427
      %3430 = dma.vmem_to_hbm [thread:$0]  %s3428, 128, %s3, [#allocation3]
    $region17: #{tpu_custom_call.1} parent=1 // pred_fallthru
      _
    // Predicated region
    $region18: #{tpu_custom_call.1} parent=1 // pred_check
      _
    $region19: #{tpu_custom_call.1} parent=1 // pred_check_branch
      %3432 = sbr.rel (0) target = $region21
    $region20: #{tpu_custom_call.1} parent=1 // pred_region
      %3433 = dma.done [#allocation3], 128
    $region21: #{tpu_custom_call.1} parent=1 // pred_fallthru
      _
    %3434 = vsyncpa [#allocation3], 1

</llo_original>
